<compile_context>
chip_gen: v5e
topology: v5e:2x2
jax: 0.10.0
libtpu: 0.0.40
codegen_flags: <defaults>
</compile_context>

<pallas_src>
import functools

import jax
import jax.numpy as jnp
from jax import lax
from jax.experimental import pallas as pl
from jax.experimental.pallas import tpu as pltpu

EPS = 1e-5
NEG_SLOPE = 0.01


def _fused_kernel(x_ref, w_ref, s_ref, o_ref, buf):
    """All layers for one batch element, fully VMEM-resident.

    x_ref: (1, H, W, CP)        input (channels zero-padded to CP)
    w_ref: (L, 9*CP, CP)        BN-folded conv weights, K ordered (kh, kw, ci)
    s_ref: (L, 1, CP)           folded bias+BN shift per layer
    o_ref: (1, H, W, CP)        output of the last layer
    buf:   (2, H+2, W+2, CP)    ping-pong activation buffers with halo ring
    """
    H = o_ref.shape[1]
    W = o_ref.shape[2]
    CP = o_ref.shape[3]
    L = w_ref.shape[0]

    # Zero both buffers once per batch element: the halo ring must stay zero
    # (pad=1 conv); interiors are fully overwritten each layer.
    buf[...] = jnp.zeros(buf.shape, buf.dtype)
    buf[0, 1:H + 1, 1:W + 1, :] = x_ref[0].astype(buf.dtype)

    for layer in range(L):                      # static unroll, L is small
        src = layer % 2
        dst = 1 - src

        # Build the shifted-window operand once: (H*W, 9*CP), K = (kh, kw, ci).
        taps = []
        for kh in range(3):
            for kw in range(3):
                taps.append(
                    buf[src, kh:kh + H, kw:kw + W, :].reshape(H * W, CP))
        patches = jnp.concatenate(taps, axis=-1)

        # Single K=9*CP GEMM on the MXU (BN scale already folded into weights).
        y = jnp.dot(patches, w_ref[layer],
                    preferred_element_type=jnp.float32)      # (H*W, CP)
        y = y + s_ref[layer]                                  # bias + BN shift
        y = jnp.where(y > 0, y, NEG_SLOPE * y)                # LeakyReLU(0.01)

        if layer == L - 1:
            o_ref[0] = y.reshape(H, W, CP).astype(o_ref.dtype)
        else:
            buf[dst, 1:H + 1, 1:W + 1, :] = (
                y.reshape(H, W, CP).astype(buf.dtype))


def _prep_params(params, cp, compute_dtype):
    """Fold BN into weights/shift, pad channels to CP, stack per layer."""
    w_list, s_list = [], []
    for p in params:
        cout, cin = p["w"].shape[0], p["w"].shape[1]
        scale = p["gamma"] / jnp.sqrt(p["var"] + EPS)               # (Cout,)
        shift = p["b"] * scale + (p["beta"] - p["mean"] * scale)    # (Cout,)
        w_f = p["w"] * scale[:, None, None, None]                   # fold BN
        # (Cout, Cin, 3, 3) -> (3, 3, Cin, Cout), pad channels, flatten K.
        w_t = jnp.transpose(w_f, (2, 3, 1, 0))
        w_t = jnp.pad(w_t, ((0, 0), (0, 0), (0, cp - cin), (0, cp - cout)))
        w_list.append(w_t.reshape(9 * cp, cp).astype(compute_dtype))
        s_list.append(jnp.pad(shift, (0, cp - cout))
                      .reshape(1, cp).astype(jnp.float32))
    return jnp.stack(w_list), jnp.stack(s_list)


def multilayer_conv_dropout_norm_nonlin(x_nchw, params,
                                        compute_dtype=jnp.float32):
    """params: list of dicts with keys w, b, gamma, beta, mean, var (eval mode).

    compute_dtype controls the activation/weight dtype inside the kernel
    (jnp.bfloat16 halves VMEM/HBM bytes on v6e/v7x; f32 kept as the default
    here to match the f32 reference bit-closely).
    """
    B, cin0, H, W = x_nchw.shape
    L = len(params)
    cout_final = params[-1]["w"].shape[0]

    # Lane-dense channel count (multiple of 128), shared by every layer.
    cmax = max([cin0] + [p["w"].shape[0] for p in params])
    CP = ((cmax + 127) // 128) * 128
    CP = max(CP, 128)

    # NCHW -> NHWC, channel-pad once for the whole fused stack.
    x = jnp.transpose(x_nchw, (0, 2, 3, 1))
    x = jnp.pad(x, ((0, 0), (0, 0), (0, 0), (0, CP - cin0)))
    x = x.astype(compute_dtype)

    w_all, s_all = _prep_params(params, CP, compute_dtype)

    itemsize = jnp.dtype(compute_dtype).itemsize
    flops = 2 * B * H * W * 9 * CP * CP * L
    bytes_accessed = (B * H * W * CP * itemsize          # input
                      + L * 9 * CP * CP * itemsize       # weights
                      + L * CP * 4                       # shifts
                      + B * H * W * CP * 4)              # output

    out = pl.pallas_call(
        _fused_kernel,
        out_shape=jax.ShapeDtypeStruct((B, H, W, CP), jnp.float32),
        grid_spec=pltpu.PrefetchScalarGridSpec(
            num_scalar_prefetch=0,
            grid=(B,),
            in_specs=[
                pl.BlockSpec((1, H, W, CP), lambda b: (b, 0, 0, 0)),
                pl.BlockSpec((L, 9 * CP, CP), lambda b: (0, 0, 0)),
                pl.BlockSpec((L, 1, CP), lambda b: (0, 0, 0)),
            ],
            out_specs=pl.BlockSpec((1, H, W, CP), lambda b: (b, 0, 0, 0)),
            scratch_shapes=[pltpu.VMEM((2, H + 2, W + 2, CP), compute_dtype)],
        ),
        compiler_params=pltpu.CompilerParams(
            dimension_semantics=("parallel",),
            vmem_limit_bytes=32 * 1024 * 1024),
        cost_estimate=pl.CostEstimate(flops=flops, transcendentals=0,
                                      bytes_accessed=bytes_accessed),
    )(x, w_all, s_all)

    out = out[..., :cout_final]                 # drop padded channels
    return jnp.transpose(out, (0, 3, 1, 2))     # NHWC -> NCHW


def _reference(x_nchw, params):
    """Plain-JAX reference (eval-mode semantics) for validation."""
    x = x_nchw
    for p in params:
        y = lax.conv_general_dilated(
            x, p["w"], window_strides=(1, 1), padding=((1, 1), (1, 1)),
            dimension_numbers=("NCHW", "OIHW", "NCHW"))
        y = y + p["b"].reshape(1, -1, 1, 1)
        scale = (p["gamma"] / jnp.sqrt(p["var"] + EPS)).reshape(1, -1, 1, 1)
        shift = (p["beta"] - p["mean"] * p["gamma"]
                 / jnp.sqrt(p["var"] + EPS)).reshape(1, -1, 1, 1)
        y = y * scale + shift
        x = jnp.where(y > 0, y, NEG_SLOPE * y)
    return x


def make_params(key, input_channels, output_channels, num_layers=2):
    params = []
    cin = input_channels
    for _ in range(num_layers):
        key, k1, k2, k3, k4, k5, k6 = jax.random.split(key, 7)
        params.append({
            "w": 0.1 * jax.random.normal(k1, (output_channels, cin, 3, 3),
                                         jnp.float32),
            "b": 0.1 * jax.random.normal(k2, (output_channels,), jnp.float32),
            "gamma": 1.0 + 0.1 * jax.random.normal(k3, (output_channels,),
                                                   jnp.float32),
            "beta": 0.1 * jax.random.normal(k4, (output_channels,),
                                            jnp.float32),
            "mean": 0.1 * jax.random.normal(k5, (output_channels,),
                                            jnp.float32),
            "var": jnp.abs(1.0 + 0.1 * jax.random.normal(
                k6, (output_channels,), jnp.float32)),
        })
        cin = output_channels
    return params


if __name__ == "__main__":
    B, Cin, Cout, H, W = 2, 4, 8, 16, 16
    num_layers = 2

    key = jax.random.PRNGKey(0)
    kx, kp = jax.random.split(key)
    x = jax.random.normal(kx, (B, Cin, H, W), jnp.float32)
    params = make_params(kp, Cin, Cout, num_layers)

    fwd = jax.jit(functools.partial(multilayer_conv_dropout_norm_nonlin,
                                    params=params))
    out = fwd(x)
    jax.block_until_ready(out)

    ref = _reference(x, params)
    assert out.shape == (B, Cout, H, W)
    assert jnp.allclose(out, ref, atol=1e-3, rtol=1e-3), "mismatch vs reference"

    print("KERNEL_OK")
</pallas_src>

<mosaic_0001>
module attributes {stable_mosaic.version = 11 : i64} {
  func.func @_fused_kernel(%arg0: i32, %arg1: memref<1x16x16x128xf32, #tpu.memory_space<vmem>>, %arg2: memref<2x1152x128xf32, #tpu.memory_space<vmem>>, %arg3: memref<2x1x128xf32, #tpu.memory_space<vmem>>, %arg4: memref<1x16x16x128xf32, #tpu.memory_space<vmem>>, %arg5: memref<2x18x18x128xf32, #tpu.memory_space<vmem>>) attributes {dimension_semantics = [#tpu.dimension_semantics<parallel>], iteration_bounds = array<i64: 2>, scalar_prefetch = 0 : i64, scratch_operands = 1 : i64, tpu.core_type = #tpu.core_type<tc>, window_params = [{transform_indices = @transform_0, window_bounds = array<i64: 1, 16, 16, 128>}, {pipeline_mode = #tpu.pipeline_mode<synchronous>, transform_indices = @transform_1, window_bounds = array<i64: 2, 1152, 128>}, {pipeline_mode = #tpu.pipeline_mode<synchronous>, transform_indices = @transform_2, window_bounds = array<i64: 2, 1, 128>}, {transform_indices = @transform_3, window_bounds = array<i64: 1, 16, 16, 128>}]} {
    %cst = arith.constant 0.000000e+00 : f32
    %0 = vector.broadcast %cst : f32 to vector<2x18x18x128xf32>
    %c0 = arith.constant 0 : index
    %c0_0 = arith.constant 0 : index
    %c0_1 = arith.constant 0 : index
    %c0_2 = arith.constant 0 : index
    %1 = vector.load %arg5[%c0, %c0_0, %c0_1, %c0_2] : memref<2x18x18x128xf32, #tpu.memory_space<vmem>>, vector<2x18x18x128xf32>
    tpu.vector_store %arg5[%c0, %c0_0, %c0_1, %c0_2], %0 {strides = array<i32>} : memref<2x18x18x128xf32, #tpu.memory_space<vmem>>, vector<2x18x18x128xf32>,
    %c0_3 = arith.constant 0 : index
    %c0_4 = arith.constant 0 : index
    %c0_5 = arith.constant 0 : index
    %c0_6 = arith.constant 0 : index
    %2 = vector.load %arg1[%c0_3, %c0_4, %c0_5, %c0_6] : memref<1x16x16x128xf32, #tpu.memory_space<vmem>>, vector<1x16x16x128xf32>
    %3 = vector.shape_cast %2 : vector<1x16x16x128xf32> to vector<16x16x128xf32>
    %c0_7 = arith.constant 0 : index
    %c1 = arith.constant 1 : index
    %c1_8 = arith.constant 1 : index
    %c0_9 = arith.constant 0 : index
    %4 = vector.load %arg5[%c0_7, %c1, %c1_8, %c0_9] : memref<2x18x18x128xf32, #tpu.memory_space<vmem>>, vector<1x16x16x128xf32>
    %5 = vector.shape_cast %4 : vector<1x16x16x128xf32> to vector<16x16x128xf32>
    %6 = vector.shape_cast %3 : vector<16x16x128xf32> to vector<1x16x16x128xf32>
    tpu.vector_store %arg5[%c0_7, %c1, %c1_8, %c0_9], %6 {strides = array<i32>} : memref<2x18x18x128xf32, #tpu.memory_space<vmem>>, vector<1x16x16x128xf32>,
    %c0_10 = arith.constant 0 : index
    %c0_11 = arith.constant 0 : index
    %c0_12 = arith.constant 0 : index
    %c0_13 = arith.constant 0 : index
    %7 = vector.load %arg5[%c0_10, %c0_11, %c0_12, %c0_13] : memref<2x18x18x128xf32, #tpu.memory_space<vmem>>, vector<1x16x16x128xf32>
    %8 = vector.shape_cast %7 : vector<1x16x16x128xf32> to vector<16x16x128xf32>
    %9 = vector.shape_cast %8 : vector<16x16x128xf32> to vector<256x128xf32>
    %c0_14 = arith.constant 0 : index
    %c0_15 = arith.constant 0 : index
    %c1_16 = arith.constant 1 : index
    %c0_17 = arith.constant 0 : index
    %10 = vector.load %arg5[%c0_14, %c0_15, %c1_16, %c0_17] : memref<2x18x18x128xf32, #tpu.memory_space<vmem>>, vector<1x16x16x128xf32>
    %11 = vector.shape_cast %10 : vector<1x16x16x128xf32> to vector<16x16x128xf32>
    %12 = vector.shape_cast %11 : vector<16x16x128xf32> to vector<256x128xf32>
    %c0_18 = arith.constant 0 : index
    %c0_19 = arith.constant 0 : index
    %c2 = arith.constant 2 : index
    %c0_20 = arith.constant 0 : index
    %13 = vector.load %arg5[%c0_18, %c0_19, %c2, %c0_20] : memref<2x18x18x128xf32, #tpu.memory_space<vmem>>, vector<1x16x16x128xf32>
    %14 = vector.shape_cast %13 : vector<1x16x16x128xf32> to vector<16x16x128xf32>
    %15 = vector.shape_cast %14 : vector<16x16x128xf32> to vector<256x128xf32>
    %c0_21 = arith.constant 0 : index
    %c1_22 = arith.constant 1 : index
    %c0_23 = arith.constant 0 : index
    %c0_24 = arith.constant 0 : index
    %16 = vector.load %arg5[%c0_21, %c1_22, %c0_23, %c0_24] : memref<2x18x18x128xf32, #tpu.memory_space<vmem>>, vector<1x16x16x128xf32>
    %17 = vector.shape_cast %16 : vector<1x16x16x128xf32> to vector<16x16x128xf32>
    %18 = vector.shape_cast %17 : vector<16x16x128xf32> to vector<256x128xf32>
    %c0_25 = arith.constant 0 : index
    %c1_26 = arith.constant 1 : index
    %c1_27 = arith.constant 1 : index
    %c0_28 = arith.constant 0 : index
    %19 = vector.load %arg5[%c0_25, %c1_26, %c1_27, %c0_28] : memref<2x18x18x128xf32, #tpu.memory_space<vmem>>, vector<1x16x16x128xf32>
    %20 = vector.shape_cast %19 : vector<1x16x16x128xf32> to vector<16x16x128xf32>
    %21 = vector.shape_cast %20 : vector<16x16x128xf32> to vector<256x128xf32>
    %c0_29 = arith.constant 0 : index
    %c1_30 = arith.constant 1 : index
    %c2_31 = arith.constant 2 : index
    %c0_32 = arith.constant 0 : index
    %22 = vector.load %arg5[%c0_29, %c1_30, %c2_31, %c0_32] : memref<2x18x18x128xf32, #tpu.memory_space<vmem>>, vector<1x16x16x128xf32>
    %23 = vector.shape_cast %22 : vector<1x16x16x128xf32> to vector<16x16x128xf32>
    %24 = vector.shape_cast %23 : vector<16x16x128xf32> to vector<256x128xf32>
    %c0_33 = arith.constant 0 : index
    %c2_34 = arith.constant 2 : index
    %c0_35 = arith.constant 0 : index
    %c0_36 = arith.constant 0 : index
    %25 = vector.load %arg5[%c0_33, %c2_34, %c0_35, %c0_36] : memref<2x18x18x128xf32, #tpu.memory_space<vmem>>, vector<1x16x16x128xf32>
    %26 = vector.shape_cast %25 : vector<1x16x16x128xf32> to vector<16x16x128xf32>
    %27 = vector.shape_cast %26 : vector<16x16x128xf32> to vector<256x128xf32>
    %c0_37 = arith.constant 0 : index
    %c2_38 = arith.constant 2 : index
    %c1_39 = arith.constant 1 : index
    %c0_40 = arith.constant 0 : index
    %28 = vector.load %arg5[%c0_37, %c2_38, %c1_39, %c0_40] : memref<2x18x18x128xf32, #tpu.memory_space<vmem>>, vector<1x16x16x128xf32>
    %29 = vector.shape_cast %28 : vector<1x16x16x128xf32> to vector<16x16x128xf32>
    %30 = vector.shape_cast %29 : vector<16x16x128xf32> to vector<256x128xf32>
    %c0_41 = arith.constant 0 : index
    %c2_42 = arith.constant 2 : index
    %c2_43 = arith.constant 2 : index
    %c0_44 = arith.constant 0 : index
    %31 = vector.load %arg5[%c0_41, %c2_42, %c2_43, %c0_44] : memref<2x18x18x128xf32, #tpu.memory_space<vmem>>, vector<1x16x16x128xf32>
    %32 = vector.shape_cast %31 : vector<1x16x16x128xf32> to vector<16x16x128xf32>
    %33 = vector.shape_cast %32 : vector<16x16x128xf32> to vector<256x128xf32>
    %34 = tpu.concatenate %9, %12, %15, %18, %21, %24, %27, %30, %33 in 1 : vector<256x128xf32>, vector<256x128xf32>, vector<256x128xf32>, vector<256x128xf32>, vector<256x128xf32>, vector<256x128xf32>, vector<256x128xf32>, vector<256x128xf32>, vector<256x128xf32> -> vector<256x1152xf32>
    %c0_45 = arith.constant 0 : index
    %c0_46 = arith.constant 0 : index
    %c0_47 = arith.constant 0 : index
    %35 = vector.load %arg2[%c0_45, %c0_46, %c0_47] : memref<2x1152x128xf32, #tpu.memory_space<vmem>>, vector<1x1152x128xf32>
    %36 = vector.shape_cast %35 : vector<1x1152x128xf32> to vector<1152x128xf32>
    %cst_48 = arith.constant dense<0.000000e+00> : vector<256x128xf32>
    %37 = tpu.matmul %34, %36, %cst_48 {dimension_numbers = #tpu.dot_dimension_numbers<[1], [0], [0], [1], [0, 0, 1, 1], [], []>} : vector<256x1152xf32>, vector<1152x128xf32>, vector<256x128xf32> -> vector<256x128xf32>
    %c0_49 = arith.constant 0 : index
    %c0_50 = arith.constant 0 : index
    %c0_51 = arith.constant 0 : index
    %38 = vector.load %arg3[%c0_49, %c0_50, %c0_51] : memref<2x1x128xf32, #tpu.memory_space<vmem>>, vector<1x1x128xf32>
    %39 = vector.shape_cast %38 : vector<1x1x128xf32> to vector<1x128xf32>
    %40 = vector.broadcast %39 : vector<1x128xf32> to vector<256x128xf32>
    %41 = arith.addf %37, %40 : vector<256x128xf32>
    %cst_52 = arith.constant 0.000000e+00 : f32
    %42 = vector.broadcast %cst_52 : f32 to vector<256x128xf32>
    %43 = arith.cmpf ogt, %41, %42 : vector<256x128xf32>
    %cst_53 = arith.constant 0.00999999977 : f32
    %44 = vector.broadcast %cst_53 : f32 to vector<256x128xf32>
    %45 = arith.mulf %44, %41 : vector<256x128xf32>
    %46 = arith.select %43, %41, %45 : vector<256x128xi1>, vector<256x128xf32>
    %47 = vector.shape_cast %46 : vector<256x128xf32> to vector<16x16x128xf32>
    %c1_54 = arith.constant 1 : index
    %c1_55 = arith.constant 1 : index
    %c1_56 = arith.constant 1 : index
    %c0_57 = arith.constant 0 : index
    %48 = vector.load %arg5[%c1_54, %c1_55, %c1_56, %c0_57] : memref<2x18x18x128xf32, #tpu.memory_space<vmem>>, vector<1x16x16x128xf32>
    %49 = vector.shape_cast %48 : vector<1x16x16x128xf32> to vector<16x16x128xf32>
    %50 = vector.shape_cast %47 : vector<16x16x128xf32> to vector<1x16x16x128xf32>
    tpu.vector_store %arg5[%c1_54, %c1_55, %c1_56, %c0_57], %50 {strides = array<i32>} : memref<2x18x18x128xf32, #tpu.memory_space<vmem>>, vector<1x16x16x128xf32>,
    %c1_58 = arith.constant 1 : index
    %c0_59 = arith.constant 0 : index
    %c0_60 = arith.constant 0 : index
    %c0_61 = arith.constant 0 : index
    %51 = vector.load %arg5[%c1_58, %c0_59, %c0_60, %c0_61] : memref<2x18x18x128xf32, #tpu.memory_space<vmem>>, vector<1x16x16x128xf32>
    %52 = vector.shape_cast %51 : vector<1x16x16x128xf32> to vector<16x16x128xf32>
    %53 = vector.shape_cast %52 : vector<16x16x128xf32> to vector<256x128xf32>
    %c1_62 = arith.constant 1 : index
    %c0_63 = arith.constant 0 : index
    %c1_64 = arith.constant 1 : index
    %c0_65 = arith.constant 0 : index
    %54 = vector.load %arg5[%c1_62, %c0_63, %c1_64, %c0_65] : memref<2x18x18x128xf32, #tpu.memory_space<vmem>>, vector<1x16x16x128xf32>
    %55 = vector.shape_cast %54 : vector<1x16x16x128xf32> to vector<16x16x128xf32>
    %56 = vector.shape_cast %55 : vector<16x16x128xf32> to vector<256x128xf32>
    %c1_66 = arith.constant 1 : index
    %c0_67 = arith.constant 0 : index
    %c2_68 = arith.constant 2 : index
    %c0_69 = arith.constant 0 : index
    %57 = vector.load %arg5[%c1_66, %c0_67, %c2_68, %c0_69] : memref<2x18x18x128xf32, #tpu.memory_space<vmem>>, vector<1x16x16x128xf32>
    %58 = vector.shape_cast %57 : vector<1x16x16x128xf32> to vector<16x16x128xf32>
    %59 = vector.shape_cast %58 : vector<16x16x128xf32> to vector<256x128xf32>
    %c1_70 = arith.constant 1 : index
    %c1_71 = arith.constant 1 : index
    %c0_72 = arith.constant 0 : index
    %c0_73 = arith.constant 0 : index
    %60 = vector.load %arg5[%c1_70, %c1_71, %c0_72, %c0_73] : memref<2x18x18x128xf32, #tpu.memory_space<vmem>>, vector<1x16x16x128xf32>
    %61 = vector.shape_cast %60 : vector<1x16x16x128xf32> to vector<16x16x128xf32>
    %62 = vector.shape_cast %61 : vector<16x16x128xf32> to vector<256x128xf32>
    %c1_74 = arith.constant 1 : index
    %c1_75 = arith.constant 1 : index
    %c1_76 = arith.constant 1 : index
    %c0_77 = arith.constant 0 : index
    %63 = vector.load %arg5[%c1_74, %c1_75, %c1_76, %c0_77] : memref<2x18x18x128xf32, #tpu.memory_space<vmem>>, vector<1x16x16x128xf32>
    %64 = vector.shape_cast %63 : vector<1x16x16x128xf32> to vector<16x16x128xf32>
    %65 = vector.shape_cast %64 : vector<16x16x128xf32> to vector<256x128xf32>
    %c1_78 = arith.constant 1 : index
    %c1_79 = arith.constant 1 : index
    %c2_80 = arith.constant 2 : index
    %c0_81 = arith.constant 0 : index
    %66 = vector.load %arg5[%c1_78, %c1_79, %c2_80, %c0_81] : memref<2x18x18x128xf32, #tpu.memory_space<vmem>>, vector<1x16x16x128xf32>
    %67 = vector.shape_cast %66 : vector<1x16x16x128xf32> to vector<16x16x128xf32>
    %68 = vector.shape_cast %67 : vector<16x16x128xf32> to vector<256x128xf32>
    %c1_82 = arith.constant 1 : index
    %c2_83 = arith.constant 2 : index
    %c0_84 = arith.constant 0 : index
    %c0_85 = arith.constant 0 : index
    %69 = vector.load %arg5[%c1_82, %c2_83, %c0_84, %c0_85] : memref<2x18x18x128xf32, #tpu.memory_space<vmem>>, vector<1x16x16x128xf32>
    %70 = vector.shape_cast %69 : vector<1x16x16x128xf32> to vector<16x16x128xf32>
    %71 = vector.shape_cast %70 : vector<16x16x128xf32> to vector<256x128xf32>
    %c1_86 = arith.constant 1 : index
    %c2_87 = arith.constant 2 : index
    %c1_88 = arith.constant 1 : index
    %c0_89 = arith.constant 0 : index
    %72 = vector.load %arg5[%c1_86, %c2_87, %c1_88, %c0_89] : memref<2x18x18x128xf32, #tpu.memory_space<vmem>>, vector<1x16x16x128xf32>
    %73 = vector.shape_cast %72 : vector<1x16x16x128xf32> to vector<16x16x128xf32>
    %74 = vector.shape_cast %73 : vector<16x16x128xf32> to vector<256x128xf32>
    %c1_90 = arith.constant 1 : index
    %c2_91 = arith.constant 2 : index
    %c2_92 = arith.constant 2 : index
    %c0_93 = arith.constant 0 : index
    %75 = vector.load %arg5[%c1_90, %c2_91, %c2_92, %c0_93] : memref<2x18x18x128xf32, #tpu.memory_space<vmem>>, vector<1x16x16x128xf32>
    %76 = vector.shape_cast %75 : vector<1x16x16x128xf32> to vector<16x16x128xf32>
    %77 = vector.shape_cast %76 : vector<16x16x128xf32> to vector<256x128xf32>
    %78 = tpu.concatenate %53, %56, %59, %62, %65, %68, %71, %74, %77 in 1 : vector<256x128xf32>, vector<256x128xf32>, vector<256x128xf32>, vector<256x128xf32>, vector<256x128xf32>, vector<256x128xf32>, vector<256x128xf32>, vector<256x128xf32>, vector<256x128xf32> -> vector<256x1152xf32>
    %c1_94 = arith.constant 1 : index
    %c0_95 = arith.constant 0 : index
    %c0_96 = arith.constant 0 : index
    %79 = vector.load %arg2[%c1_94, %c0_95, %c0_96] : memref<2x1152x128xf32, #tpu.memory_space<vmem>>, vector<1x1152x128xf32>
    %80 = vector.shape_cast %79 : vector<1x1152x128xf32> to vector<1152x128xf32>
    %cst_97 = arith.constant dense<0.000000e+00> : vector<256x128xf32>
    %81 = tpu.matmul %78, %80, %cst_97 {dimension_numbers = #tpu.dot_dimension_numbers<[1], [0], [0], [1], [0, 0, 1, 1], [], []>} : vector<256x1152xf32>, vector<1152x128xf32>, vector<256x128xf32> -> vector<256x128xf32>
    %c1_98 = arith.constant 1 : index
    %c0_99 = arith.constant 0 : index
    %c0_100 = arith.constant 0 : index
    %82 = vector.load %arg3[%c1_98, %c0_99, %c0_100] : memref<2x1x128xf32, #tpu.memory_space<vmem>>, vector<1x1x128xf32>
    %83 = vector.shape_cast %82 : vector<1x1x128xf32> to vector<1x128xf32>
    %84 = vector.broadcast %83 : vector<1x128xf32> to vector<256x128xf32>
    %85 = arith.addf %81, %84 : vector<256x128xf32>
    %cst_101 = arith.constant 0.000000e+00 : f32
    %86 = vector.broadcast %cst_101 : f32 to vector<256x128xf32>
    %87 = arith.cmpf ogt, %85, %86 : vector<256x128xf32>
    %cst_102 = arith.constant 0.00999999977 : f32
    %88 = vector.broadcast %cst_102 : f32 to vector<256x128xf32>
    %89 = arith.mulf %88, %85 : vector<256x128xf32>
    %90 = arith.select %87, %85, %89 : vector<256x128xi1>, vector<256x128xf32>
    %91 = vector.shape_cast %90 : vector<256x128xf32> to vector<16x16x128xf32>
    %c0_103 = arith.constant 0 : index
    %c0_104 = arith.constant 0 : index
    %c0_105 = arith.constant 0 : index
    %c0_106 = arith.constant 0 : index
    %92 = vector.load %arg4[%c0_103, %c0_104, %c0_105, %c0_106] : memref<1x16x16x128xf32, #tpu.memory_space<vmem>>, vector<1x16x16x128xf32>
    %93 = vector.shape_cast %92 : vector<1x16x16x128xf32> to vector<16x16x128xf32>
    %94 = vector.shape_cast %91 : vector<16x16x128xf32> to vector<1x16x16x128xf32>
    tpu.vector_store %arg4[%c0_103, %c0_104, %c0_105, %c0_106], %94 {strides = array<i32>} : memref<1x16x16x128xf32, #tpu.memory_space<vmem>>, vector<1x16x16x128xf32>,
    return
  }
  func.func @transform_0(%arg0: i32) -> (i32, i32, i32, i32) {
    %c0_i32 = arith.constant 0 : i32
    %c0_i32_0 = arith.constant 0 : i32
    %c0_i32_1 = arith.constant 0 : i32
    %c0_i32_2 = arith.constant 0 : i32
    return %arg0, %c0_i32, %c0_i32_0, %c0_i32_1 : i32, i32, i32, i32
  }
  func.func @transform_1(%arg0: i32) -> (i32, i32, i32) {
    %c0_i32 = arith.constant 0 : i32
    %c0_i32_0 = arith.constant 0 : i32
    %c0_i32_1 = arith.constant 0 : i32
    %c0_i32_2 = arith.constant 0 : i32
    return %c0_i32, %c0_i32_0, %c0_i32_1 : i32, i32, i32
  }
  func.func @transform_2(%arg0: i32) -> (i32, i32, i32) {
    %c0_i32 = arith.constant 0 : i32
    %c0_i32_0 = arith.constant 0 : i32
    %c0_i32_1 = arith.constant 0 : i32
    %c0_i32_2 = arith.constant 0 : i32
    return %c0_i32, %c0_i32_0, %c0_i32_1 : i32, i32, i32
  }
  func.func @transform_3(%arg0: i32) -> (i32, i32, i32, i32) {
    %c0_i32 = arith.constant 0 : i32
    %c0_i32_0 = arith.constant 0 : i32
    %c0_i32_1 = arith.constant 0 : i32
    %c0_i32_2 = arith.constant 0 : i32
    return %arg0, %c0_i32, %c0_i32_0, %c0_i32_1 : i32, i32, i32, i32
  }
}

</mosaic_0001>

<llo_original>
// kernel: multilayer_conv_dropout_norm_nonlin.1
$region0: #{multilayer_conv_dropout_norm_nonlin.1}
  #allocation0 [shape = 'u32[]', space=smem, size = 0x4, offset = 0x4, fixed_abs, tag = 'smem constant byte address 0x4 - core index']
  #allocation1 [shape = 'u32[72,128]{1,0:T(1,128)}', space=vmem, size = 0x9000, scoped, tag = 'internal scratch']
  #allocation2 [shape = 'f32[2,18,18,128]{3,2,1,0:T(8,128)}', space=vmem, size = 0x6c000, scoped, tag = 'scratch operand']
  %s0 = inlined_call_operand.vmem [shape: f32[2,16,16,128], index: 0, kind: input, shape index: {}]
  %s1 = inlined_call_operand.hbm [shape: f32[2,1152,128], index: 1, kind: input, shape index: {}]
  %s2 = inlined_call_operand.hbm [shape: f32[2,1,128], index: 2, kind: input, shape index: {}]
  %s3 = inlined_call_operand.vmem [shape: f32[2,16,16,128], index: 3, kind: output, shape index: {}]
  %s4 = sld [smem:[#allocation0]]
  $region53: #{multilayer_conv_dropout_norm_nonlin.1} parent=0
    _
  %s6 = ssub.s32 1, %s4
  %s7 = scalar_select 0, %s6, %s4
  $region1: #{multilayer_conv_dropout_norm_nonlin.1} parent=0
    #allocation3 [shape = 'u8[1179648]{0}', space=vmem, size = 0x120000, scoped, tag = 'input window, operand 1, single buffered']
    #allocation4 [shape = 's32[2]{0}', space=sflag, size = 0x8, scoped, tag = 'scoped memory for multilayer_conv_dropout_norm_nonlin.1']
    #allocation5 [shape = 'u8[1024]{0}', space=vmem, size = 0x400, scoped, tag = 'input window, operand 2, single buffered']
    #allocation6 [shape = 's32[1]{0}', space=sflag, size = 0x4, scoped, tag = 'scoped memory for multilayer_conv_dropout_norm_nonlin.1']
    %8 = vsyncpa [#allocation4], 0
    %9 = vsyncpa [#allocation6], 0
    loop: start=0, step=1, limit=4
    $region2: #{multilayer_conv_dropout_norm_nonlin.1} parent=1 // loop_pre_header
      _
    $region3: #{multilayer_conv_dropout_norm_nonlin.1} parent=1 // loop_header
      %s11 = sphi 0, %s15
      %p12 = scmp.ge.s32.totalorder %s11, 4
      %s21 = sphi 0, %s23
      %s24 = sphi 0, %s21
      %s25 = sphi 0, %s24
      %s41 = sphi 0, %s25
      %s45 = sphi 0, %s45
      %s47 = sphi 0, %s45
      %s48 = sphi 0, %s47
      %s62 = sphi 0, %s48
      %s66 = sphi 0, %s66
      %s68 = sphi 0, %s66
      %s69 = sphi 0, %s68
      %s83 = sphi 0, %s69
      %s89 = sphi 0, %s91
      %s92 = sphi 0, %s89
      %s93 = sphi 0, %s92
      %s109 = sphi 0, %s93
    $region4: #{multilayer_conv_dropout_norm_nonlin.1} parent=1 // loop_header_branch
      %14 = sbr.rel (%p12) target = $region8
    $region5: #{multilayer_conv_dropout_norm_nonlin.1} parent=1 // loop_body
      %s16 = ssub.s32 %s11, 1
      %s17 = ssub.s32 %s11, 2
      %s18 = sadd.s32 %s11, 1
      %s19 = ssub.s32 %s11, %s18
      %p20 = scmp.eq.s32.totalorder %s19, 0
      %s22 = sadd.s32 %s21, 1
      %s23 = scalar_select %p20, %s21, %s22
      %p26 = pneg %p20
      %p27 = scmp.eq.s32.totalorder %s11, 1
      %p28 = por %p26, %p27
      %p29 = scmp.ne.s32.totalorder %s21, %s24
      %p30 = scmp.eq.s32.totalorder %s11, 0
      %p31 = por %p29, %p30
      %p32 = scmp.ne.s32.totalorder %s21, %s24
      %p33 = scmp.eq.s32.totalorder %s16, 1
      %p34 = por %p32, %p33
      %p35 = scmp.ne.s32.totalorder %s24, %s25
      %p36 = scmp.eq.s32.totalorder %s16, 0
      %p37 = por %p35, %p36
      %p38 = scmp.ne.s32.totalorder %s24, %s25
      %p39 = scmp.eq.s32.totalorder %s17, 1
      %p40 = por %p38, %p39
      %p42 = scmp.ne.s32.totalorder %s25, %s41
      %p43 = scmp.eq.s32.totalorder %s17, 0
      %p44 = por %p42, %p43
      %s46 = sadd.s32 %s45, 1
      %p49 = scmp.eq.s32.totalorder %s11, 1
      %p50 = scmp.ne.s32.totalorder %s45, %s47
      %p51 = scmp.eq.s32.totalorder %s11, 0
      %p52 = por %p50, %p51
      %p53 = scmp.ne.s32.totalorder %s45, %s47
      %p54 = scmp.eq.s32.totalorder %s16, 1
      %p55 = por %p53, %p54
      %p56 = scmp.ne.s32.totalorder %s47, %s48
      %p57 = scmp.eq.s32.totalorder %s16, 0
      %p58 = por %p56, %p57
      %p59 = scmp.ne.s32.totalorder %s47, %s48
      %p60 = scmp.eq.s32.totalorder %s17, 1
      %p61 = por %p59, %p60
      %p63 = scmp.ne.s32.totalorder %s48, %s62
      %p64 = scmp.eq.s32.totalorder %s17, 0
      %p65 = por %p63, %p64
      %s67 = sadd.s32 %s66, 1
      %p70 = scmp.eq.s32.totalorder %s11, 1
      %p71 = scmp.ne.s32.totalorder %s66, %s68
      %p72 = scmp.eq.s32.totalorder %s11, 0
      %p73 = por %p71, %p72
      %p74 = scmp.ne.s32.totalorder %s66, %s68
      %p75 = scmp.eq.s32.totalorder %s16, 1
      %p76 = por %p74, %p75
      %p77 = scmp.ne.s32.totalorder %s68, %s69
      %p78 = scmp.eq.s32.totalorder %s16, 0
      %p79 = por %p77, %p78
      %p80 = scmp.ne.s32.totalorder %s68, %s69
      %p81 = scmp.eq.s32.totalorder %s17, 1
      %p82 = por %p80, %p81
      %p84 = scmp.ne.s32.totalorder %s69, %s83
      %p85 = scmp.eq.s32.totalorder %s17, 0
      %p86 = por %p84, %p85
      %s87 = ssub.s32 %s11, %s18
      %p88 = scmp.eq.s32.totalorder %s87, 0
      %s90 = sadd.s32 %s89, 1
      %s91 = scalar_select %p88, %s89, %s90
      %p94 = pneg %p88
      %p95 = scmp.eq.s32.totalorder %s11, 1
      %p96 = por %p94, %p95
      %p97 = scmp.ne.s32.totalorder %s89, %s92
      %p98 = scmp.eq.s32.totalorder %s11, 0
      %p99 = por %p97, %p98
      %p100 = scmp.ne.s32.totalorder %s89, %s92
      %p101 = scmp.eq.s32.totalorder %s16, 1
      %p102 = por %p100, %p101
      %p103 = scmp.ne.s32.totalorder %s92, %s93
      %p104 = scmp.eq.s32.totalorder %s16, 0
      %p105 = por %p103, %p104
      %p106 = scmp.ne.s32.totalorder %s92, %s93
      %p107 = scmp.eq.s32.totalorder %s17, 1
      %p108 = por %p106, %p107
      %p110 = scmp.ne.s32.totalorder %s93, %s109
      %p111 = scmp.eq.s32.totalorder %s17, 0
      %p112 = por %p110, %p111
      %p113 = scmp.le.s32.totalorder 1, %s11
      %p114 = scmp.lt.s32.totalorder %s11, 3
      %p115 = pnand %p113, %p114
      %p116 = pneg %p115
      // Predicated region
      $region9: #{multilayer_conv_dropout_norm_nonlin.1} parent=5 // pred_check
        _
      $region10: #{multilayer_conv_dropout_norm_nonlin.1} parent=5 // pred_check_branch
        %118 = sbr.rel (%p115) target = $region12
      $region11: #{multilayer_conv_dropout_norm_nonlin.1} parent=5 // pred_region
        %s119 = ssub.s32 %s11, 1
        // Predicated region
        $region13: #{multilayer_conv_dropout_norm_nonlin.1} parent=11 // pred_check
          %p120 = pneg %p58
        $region14: #{multilayer_conv_dropout_norm_nonlin.1} parent=11 // pred_check_branch
          %122 = sbr.rel (%p120) target = $region16
        $region15: #{multilayer_conv_dropout_norm_nonlin.1} parent=11 // pred_region
          %124 = vsyncadd [#allocation4], 0
          %s125 = sshll.u32 %s1, 4
          %s126 = int_to_ptr.hbm [resolvable:$true] %s125
          %s127 = sshll.u32 [#allocation3], 4
          %s128 = int_to_ptr.vmem [resolvable:$true] %s127
          %133 = dma.hbm_to_vmem [thread:$0]  %s126, 36864, %s128, [#allocation4], 128, 128, 8
        $region16: #{multilayer_conv_dropout_norm_nonlin.1} parent=11 // pred_fallthru
          _
        // Predicated region
        $region17: #{multilayer_conv_dropout_norm_nonlin.1} parent=11 // pred_check
          %p134 = pneg %p79
        $region18: #{multilayer_conv_dropout_norm_nonlin.1} parent=11 // pred_check_branch
          %136 = sbr.rel (%p134) target = $region20
        $region19: #{multilayer_conv_dropout_norm_nonlin.1} parent=11 // pred_region
          %138 = vsyncadd [#allocation6], 0
          %s139 = sshll.u32 %s2, 4
          %s140 = int_to_ptr.hbm [resolvable:$true] %s139
          %s141 = sshll.u32 [#allocation5], 4
          %s142 = int_to_ptr.vmem [resolvable:$true] %s141
          %147 = dma.hbm_to_vmem [thread:$0]  %s140, 32, %s142, [#allocation6], 16, 16, 1
        $region20: #{multilayer_conv_dropout_norm_nonlin.1} parent=11 // pred_fallthru
          _
      $region12: #{multilayer_conv_dropout_norm_nonlin.1} parent=5 // pred_fallthru
        _
      %p148 = scmp.lt.s32.totalorder %s11, 2
      // Predicated region
      $region21: #{multilayer_conv_dropout_norm_nonlin.1} parent=5 // pred_check
        %p149 = pneg %p148
      $region22: #{multilayer_conv_dropout_norm_nonlin.1} parent=5 // pred_check_branch
        %151 = sbr.rel (%p149) target = $region24
      $region23: #{multilayer_conv_dropout_norm_nonlin.1} parent=5 // pred_region
        // Predicated region
        $region25: #{multilayer_conv_dropout_norm_nonlin.1} parent=23 // pred_check
          %p152 = pneg %p31
        $region26: #{multilayer_conv_dropout_norm_nonlin.1} parent=23 // pred_check_branch
          %154 = sbr.rel (%p152) target = $region28
        $region27: #{multilayer_conv_dropout_norm_nonlin.1} parent=23 // pred_region
          %p155 = scmp.lt.s32.totalorder %s11, 1
          %s156 = scalar_select %p155, %s11, 1
          %s157 = smul.addr %s156, 32
          %s158 = smul.addr %s157, 8
          %s159 = scalar_lea.vmem %s0, %s158
        $region28: #{multilayer_conv_dropout_norm_nonlin.1} parent=23 // pred_fallthru
          _
      $region24: #{multilayer_conv_dropout_norm_nonlin.1} parent=5 // pred_fallthru
        _
      %p160 = scmp.le.s32.totalorder 1, %s11
      %p161 = scmp.lt.s32.totalorder %s11, 3
      %p162 = pnand %p160, %p161
      %p163 = pneg %p162
      // Predicated region
      $region29: #{multilayer_conv_dropout_norm_nonlin.1} parent=5 // pred_check
        _
      $region30: #{multilayer_conv_dropout_norm_nonlin.1} parent=5 // pred_check_branch
        %165 = sbr.rel (%p162) target = $region32
      $region31: #{multilayer_conv_dropout_norm_nonlin.1} parent=5 // pred_region
        %s166 = ssub.s32 %s11, 1
        // Predicated region
        $region33: #{multilayer_conv_dropout_norm_nonlin.1} parent=31 // pred_check
          %p167 = pneg %p58
        $region34: #{multilayer_conv_dropout_norm_nonlin.1} parent=31 // pred_check_branch
          %169 = sbr.rel (%p167) target = $region36
        $region35: #{multilayer_conv_dropout_norm_nonlin.1} parent=31 // pred_region
          %171 = dma.done [#allocation4], 36864
        $region36: #{multilayer_conv_dropout_norm_nonlin.1} parent=31 // pred_fallthru
          _
        // Predicated region
        $region37: #{multilayer_conv_dropout_norm_nonlin.1} parent=31 // pred_check
          %p172 = pneg %p79
        $region38: #{multilayer_conv_dropout_norm_nonlin.1} parent=31 // pred_check_branch
          %174 = sbr.rel (%p172) target = $region40
        $region39: #{multilayer_conv_dropout_norm_nonlin.1} parent=31 // pred_region
          %176 = dma.done [#allocation6], 32
        $region40: #{multilayer_conv_dropout_norm_nonlin.1} parent=31 // pred_fallthru
          _
        %p177 = scmp.lt.s32.totalorder %s16, 1
        %s178 = scalar_select %p177, %s16, 1
        %s179 = smul.addr %s178, 32
        %s180 = smul.addr %s179, 8
        %s181 = scalar_lea.vmem %s0, %s180
        %p182 = pneg %p37
        %p183 = pneg %p34
        %p184 = pneg %p58
        %p185 = pneg %p55
        %p186 = pneg %p79
        %p187 = pneg %p76
        %p188 = pneg %p105
        %p189 = pneg %p102
        %p190 = scmp.lt.s32.totalorder %s16, 1
        %s191 = scalar_select %p190, %s16, 1
        %s192 = smul.addr %s191, 32
        %s193 = smul.addr %s192, 8
        %s194 = scalar_lea.vmem %s3, %s193
        %p195 = scmp.lt.s32.totalorder %s16, 1
        %s196 = scalar_select %p195, %s16, 1
        %s197 = smul.addr %s196, 32
        %s198 = smul.addr %s197, 8
        %s199 = scalar_lea.vmem %s0, %s198
        %p200 = scmp.lt.s32.totalorder %s16, 1
        %s201 = scalar_select %p200, %s16, 1
        %s202 = smul.addr %s201, 32
        %s203 = smul.addr %s202, 8
        %s204 = scalar_lea.vmem %s3, %s203
        %205 = vst [vmem:[#allocation2] sm:$0xff] 0.0
        %206 = vst [vmem:[#allocation2 + $0x8] sm:$0xff] 0.0
        %207 = vst [vmem:[#allocation2 + $0x10] sm:$0x3] 0.0
        %208 = vst [vmem:[#allocation2 + $0x18] sm:$0xff] 0.0
        %209 = vst [vmem:[#allocation2 + $0x20] sm:$0xff] 0.0
        %210 = vst [vmem:[#allocation2 + $0x28] sm:$0x3] 0.0
        %211 = vst [vmem:[#allocation2 + $0x30] sm:$0xff] 0.0
        %212 = vst [vmem:[#allocation2 + $0x38] sm:$0xff] 0.0
        %213 = vst [vmem:[#allocation2 + $0x40] sm:$0x3] 0.0
        %214 = vst [vmem:[#allocation2 + $0x48] sm:$0xff] 0.0
        %215 = vst [vmem:[#allocation2 + $0x50] sm:$0xff] 0.0
        %216 = vst [vmem:[#allocation2 + $0x58] sm:$0x3] 0.0
        %217 = vst [vmem:[#allocation2 + $0x60] sm:$0xff] 0.0
        %218 = vst [vmem:[#allocation2 + $0x68] sm:$0xff] 0.0
        %219 = vst [vmem:[#allocation2 + $0x70] sm:$0x3] 0.0
        %220 = vst [vmem:[#allocation2 + $0x78] sm:$0xff] 0.0
        %221 = vst [vmem:[#allocation2 + $0x80] sm:$0xff] 0.0
        %222 = vst [vmem:[#allocation2 + $0x88] sm:$0x3] 0.0
        %223 = vst [vmem:[#allocation2 + $0x90] sm:$0xff] 0.0
        %224 = vst [vmem:[#allocation2 + $0x98] sm:$0xff] 0.0
        %225 = vst [vmem:[#allocation2 + $0xa0] sm:$0x3] 0.0
        %226 = vst [vmem:[#allocation2 + $0xa8] sm:$0xff] 0.0
        %227 = vst [vmem:[#allocation2 + $0xb0] sm:$0xff] 0.0
        %228 = vst [vmem:[#allocation2 + $0xb8] sm:$0x3] 0.0
        %229 = vst [vmem:[#allocation2 + $0xc0] sm:$0xff] 0.0
        %230 = vst [vmem:[#allocation2 + $0xc8] sm:$0xff] 0.0
        %231 = vst [vmem:[#allocation2 + $0xd0] sm:$0x3] 0.0
        %232 = vst [vmem:[#allocation2 + $0xd8] sm:$0xff] 0.0
        %233 = vst [vmem:[#allocation2 + $0xe0] sm:$0xff] 0.0
        %234 = vst [vmem:[#allocation2 + $0xe8] sm:$0x3] 0.0
        %235 = vst [vmem:[#allocation2 + $0xf0] sm:$0xff] 0.0
        %236 = vst [vmem:[#allocation2 + $0xf8] sm:$0xff] 0.0
        %237 = vst [vmem:[#allocation2 + $0x100] sm:$0x3] 0.0
        %238 = vst [vmem:[#allocation2 + $0x108] sm:$0xff] 0.0
        %239 = vst [vmem:[#allocation2 + $0x110] sm:$0xff] 0.0
        %240 = vst [vmem:[#allocation2 + $0x118] sm:$0x3] 0.0
        %241 = vst [vmem:[#allocation2 + $0x120] sm:$0xff] 0.0
        %242 = vst [vmem:[#allocation2 + $0x128] sm:$0xff] 0.0
        %243 = vst [vmem:[#allocation2 + $0x130] sm:$0x3] 0.0
        %244 = vst [vmem:[#allocation2 + $0x138] sm:$0xff] 0.0
        %245 = vst [vmem:[#allocation2 + $0x140] sm:$0xff] 0.0
        %246 = vst [vmem:[#allocation2 + $0x148] sm:$0x3] 0.0
        %247 = vst [vmem:[#allocation2 + $0x150] sm:$0xff] 0.0
        %248 = vst [vmem:[#allocation2 + $0x158] sm:$0xff] 0.0
        %249 = vst [vmem:[#allocation2 + $0x160] sm:$0x3] 0.0
        %250 = vst [vmem:[#allocation2 + $0x168] sm:$0xff] 0.0
        %251 = vst [vmem:[#allocation2 + $0x170] sm:$0xff] 0.0
        %252 = vst [vmem:[#allocation2 + $0x178] sm:$0x3] 0.0
        %253 = vst [vmem:[#allocation2 + $0x180] sm:$0xff] 0.0
        %254 = vst [vmem:[#allocation2 + $0x188] sm:$0xff] 0.0
        %255 = vst [vmem:[#allocation2 + $0x190] sm:$0x3] 0.0
        %256 = vst [vmem:[#allocation2 + $0x198] sm:$0xff] 0.0
        %257 = vst [vmem:[#allocation2 + $0x1a0] sm:$0xff] 0.0
        %258 = vst [vmem:[#allocation2 + $0x1a8] sm:$0x3] 0.0
        %259 = vst [vmem:[#allocation2 + $0x1b0] sm:$0xff] 0.0
        %260 = vst [vmem:[#allocation2 + $0x1b8] sm:$0xff] 0.0
        %261 = vst [vmem:[#allocation2 + $0x1c0] sm:$0x3] 0.0
        %262 = vst [vmem:[#allocation2 + $0x1c8] sm:$0xff] 0.0
        %263 = vst [vmem:[#allocation2 + $0x1d0] sm:$0xff] 0.0
        %264 = vst [vmem:[#allocation2 + $0x1d8] sm:$0x3] 0.0
        %265 = vst [vmem:[#allocation2 + $0x1e0] sm:$0xff] 0.0
        %266 = vst [vmem:[#allocation2 + $0x1e8] sm:$0xff] 0.0
        %267 = vst [vmem:[#allocation2 + $0x1f0] sm:$0x3] 0.0
        %268 = vst [vmem:[#allocation2 + $0x1f8] sm:$0xff] 0.0
        %269 = vst [vmem:[#allocation2 + $0x200] sm:$0xff] 0.0
        %270 = vst [vmem:[#allocation2 + $0x208] sm:$0x3] 0.0
        %271 = vst [vmem:[#allocation2 + $0x210] sm:$0xff] 0.0
        %272 = vst [vmem:[#allocation2 + $0x218] sm:$0xff] 0.0
        %273 = vst [vmem:[#allocation2 + $0x220] sm:$0x3] 0.0
        %274 = vst [vmem:[#allocation2 + $0x228] sm:$0xff] 0.0
        %275 = vst [vmem:[#allocation2 + $0x230] sm:$0xff] 0.0
        %276 = vst [vmem:[#allocation2 + $0x238] sm:$0x3] 0.0
        %277 = vst [vmem:[#allocation2 + $0x240] sm:$0xff] 0.0
        %278 = vst [vmem:[#allocation2 + $0x248] sm:$0xff] 0.0
        %279 = vst [vmem:[#allocation2 + $0x250] sm:$0x3] 0.0
        %280 = vst [vmem:[#allocation2 + $0x258] sm:$0xff] 0.0
        %281 = vst [vmem:[#allocation2 + $0x260] sm:$0xff] 0.0
        %282 = vst [vmem:[#allocation2 + $0x268] sm:$0x3] 0.0
        %283 = vst [vmem:[#allocation2 + $0x270] sm:$0xff] 0.0
        %284 = vst [vmem:[#allocation2 + $0x278] sm:$0xff] 0.0
        %285 = vst [vmem:[#allocation2 + $0x280] sm:$0x3] 0.0
        %286 = vst [vmem:[#allocation2 + $0x288] sm:$0xff] 0.0
        %287 = vst [vmem:[#allocation2 + $0x290] sm:$0xff] 0.0
        %288 = vst [vmem:[#allocation2 + $0x298] sm:$0x3] 0.0
        %289 = vst [vmem:[#allocation2 + $0x2a0] sm:$0xff] 0.0
        %290 = vst [vmem:[#allocation2 + $0x2a8] sm:$0xff] 0.0
        %291 = vst [vmem:[#allocation2 + $0x2b0] sm:$0x3] 0.0
        %292 = vst [vmem:[#allocation2 + $0x2b8] sm:$0xff] 0.0
        %293 = vst [vmem:[#allocation2 + $0x2c0] sm:$0xff] 0.0
        %294 = vst [vmem:[#allocation2 + $0x2c8] sm:$0x3] 0.0
        %295 = vst [vmem:[#allocation2 + $0x2d0] sm:$0xff] 0.0
        %296 = vst [vmem:[#allocation2 + $0x2d8] sm:$0xff] 0.0
        %297 = vst [vmem:[#allocation2 + $0x2e0] sm:$0x3] 0.0
        %298 = vst [vmem:[#allocation2 + $0x2e8] sm:$0xff] 0.0
        %299 = vst [vmem:[#allocation2 + $0x2f0] sm:$0xff] 0.0
        %300 = vst [vmem:[#allocation2 + $0x2f8] sm:$0x3] 0.0
        %301 = vst [vmem:[#allocation2 + $0x300] sm:$0xff] 0.0
        %302 = vst [vmem:[#allocation2 + $0x308] sm:$0xff] 0.0
        %303 = vst [vmem:[#allocation2 + $0x310] sm:$0x3] 0.0
        %304 = vst [vmem:[#allocation2 + $0x318] sm:$0xff] 0.0
        %305 = vst [vmem:[#allocation2 + $0x320] sm:$0xff] 0.0
        %306 = vst [vmem:[#allocation2 + $0x328] sm:$0x3] 0.0
        %307 = vst [vmem:[#allocation2 + $0x330] sm:$0xff] 0.0
        %308 = vst [vmem:[#allocation2 + $0x338] sm:$0xff] 0.0
        %309 = vst [vmem:[#allocation2 + $0x340] sm:$0x3] 0.0
        %310 = vst [vmem:[#allocation2 + $0x348] sm:$0xff] 0.0
        %311 = vst [vmem:[#allocation2 + $0x350] sm:$0xff] 0.0
        %312 = vst [vmem:[#allocation2 + $0x358] sm:$0x3] 0.0
        %v313 = vld [vmem:[%s199] sm:$0xff]
        %v314 = vld [vmem:[%s199 + $0x8] sm:$0xff]
        %v315 = vld [vmem:[%s199 + $0x10] sm:$0xff]
        %v316 = vld [vmem:[%s199 + $0x18] sm:$0xff]
        %v317 = vld [vmem:[%s199 + $0x20] sm:$0xff]
        %v318 = vld [vmem:[%s199 + $0x28] sm:$0xff]
        %v319 = vld [vmem:[%s199 + $0x30] sm:$0xff]
        %v320 = vld [vmem:[%s199 + $0x38] sm:$0xff]
        %v321 = vld [vmem:[%s199 + $0x40] sm:$0xff]
        %v322 = vld [vmem:[%s199 + $0x48] sm:$0xff]
        %v323 = vld [vmem:[%s199 + $0x50] sm:$0xff]
        %v324 = vld [vmem:[%s199 + $0x58] sm:$0xff]
        %v325 = vld [vmem:[%s199 + $0x60] sm:$0xff]
        %v326 = vld [vmem:[%s199 + $0x68] sm:$0xff]
        %v327 = vld [vmem:[%s199 + $0x70] sm:$0xff]
        %v328 = vld [vmem:[%s199 + $0x78] sm:$0xff]
        %v329 = vld [vmem:[%s199 + $0x80] sm:$0xff]
        %v330 = vld [vmem:[%s199 + $0x88] sm:$0xff]
        %v331 = vld [vmem:[%s199 + $0x90] sm:$0xff]
        %v332 = vld [vmem:[%s199 + $0x98] sm:$0xff]
        %v333 = vld [vmem:[%s199 + $0xa0] sm:$0xff]
        %v334 = vld [vmem:[%s199 + $0xa8] sm:$0xff]
        %v335 = vld [vmem:[%s199 + $0xb0] sm:$0xff]
        %v336 = vld [vmem:[%s199 + $0xb8] sm:$0xff]
        %v337 = vld [vmem:[%s199 + $0xc0] sm:$0xff]
        %v338 = vld [vmem:[%s199 + $0xc8] sm:$0xff]
        %v339 = vld [vmem:[%s199 + $0xd0] sm:$0xff]
        %v340 = vld [vmem:[%s199 + $0xd8] sm:$0xff]
        %v341 = vld [vmem:[%s199 + $0xe0] sm:$0xff]
        %v342 = vld [vmem:[%s199 + $0xe8] sm:$0xff]
        %v343 = vld [vmem:[%s199 + $0xf0] sm:$0xff]
        %v344 = vld [vmem:[%s199 + $0xf8] sm:$0xff]
        %s345 = scalar_lea.vmem [#allocation2], 24
        %346 = vst [vmem:[%s345 + $0x1] sm:$0xff] %v313
        %347 = vst [vmem:[%s345 + $0x9] sm:$0xff] %v314
        %348 = vst [vmem:[%s345 + $0x19] sm:$0xff] %v315
        %349 = vst [vmem:[%s345 + $0x21] sm:$0xff] %v316
        %350 = vst [vmem:[%s345 + $0x31] sm:$0xff] %v317
        %351 = vst [vmem:[%s345 + $0x39] sm:$0xff] %v318
        %352 = vst [vmem:[%s345 + $0x49] sm:$0xff] %v319
        %353 = vst [vmem:[%s345 + $0x51] sm:$0xff] %v320
        %354 = vst [vmem:[%s345 + $0x61] sm:$0xff] %v321
        %355 = vst [vmem:[%s345 + $0x69] sm:$0xff] %v322
        %356 = vst [vmem:[%s345 + $0x79] sm:$0xff] %v323
        %357 = vst [vmem:[%s345 + $0x81] sm:$0xff] %v324
        %358 = vst [vmem:[%s345 + $0x91] sm:$0xff] %v325
        %359 = vst [vmem:[%s345 + $0x99] sm:$0xff] %v326
        %360 = vst [vmem:[%s345 + $0xa9] sm:$0xff] %v327
        %361 = vst [vmem:[%s345 + $0xb1] sm:$0xff] %v328
        %362 = vst [vmem:[%s345 + $0xc1] sm:$0xff] %v329
        %363 = vst [vmem:[%s345 + $0xc9] sm:$0xff] %v330
        %364 = vst [vmem:[%s345 + $0xd9] sm:$0xff] %v331
        %365 = vst [vmem:[%s345 + $0xe1] sm:$0xff] %v332
        %366 = vst [vmem:[%s345 + $0xf1] sm:$0xff] %v333
        %367 = vst [vmem:[%s345 + $0xf9] sm:$0xff] %v334
        %368 = vst [vmem:[%s345 + $0x109] sm:$0xff] %v335
        %369 = vst [vmem:[%s345 + $0x111] sm:$0xff] %v336
        %370 = vst [vmem:[%s345 + $0x121] sm:$0xff] %v337
        %371 = vst [vmem:[%s345 + $0x129] sm:$0xff] %v338
        %372 = vst [vmem:[%s345 + $0x139] sm:$0xff] %v339
        %373 = vst [vmem:[%s345 + $0x141] sm:$0xff] %v340
        %374 = vst [vmem:[%s345 + $0x151] sm:$0xff] %v341
        %375 = vst [vmem:[%s345 + $0x159] sm:$0xff] %v342
        %376 = vst [vmem:[%s345 + $0x169] sm:$0xff] %v343
        %377 = vst [vmem:[%s345 + $0x171] sm:$0xff] %v344
        %v378 = vld [vmem:[#allocation2] sm:$0xff]
        %v379 = vld [vmem:[#allocation2 + $0x8] sm:$0xff]
        %v380 = vld [vmem:[#allocation2 + $0x18] sm:$0xff]
        %v381 = vld [vmem:[#allocation2 + $0x20] sm:$0xff]
        %v382 = vld [vmem:[#allocation2 + $0x30] sm:$0xff]
        %v383 = vld [vmem:[#allocation2 + $0x38] sm:$0xff]
        %v384 = vld [vmem:[#allocation2 + $0x48] sm:$0xff]
        %v385 = vld [vmem:[#allocation2 + $0x50] sm:$0xff]
        %v386 = vld [vmem:[#allocation2 + $0x60] sm:$0xff]
        %v387 = vld [vmem:[#allocation2 + $0x68] sm:$0xff]
        %v388 = vld [vmem:[#allocation2 + $0x78] sm:$0xff]
        %v389 = vld [vmem:[#allocation2 + $0x80] sm:$0xff]
        %v390 = vld [vmem:[#allocation2 + $0x90] sm:$0xff]
        %v391 = vld [vmem:[#allocation2 + $0x98] sm:$0xff]
        %v392 = vld [vmem:[#allocation2 + $0xa8] sm:$0xff]
        %v393 = vld [vmem:[#allocation2 + $0xb0] sm:$0xff]
        %v394 = vld [vmem:[#allocation2 + $0xc0] sm:$0xff]
        %v395 = vld [vmem:[#allocation2 + $0xc8] sm:$0xff]
        %v396 = vld [vmem:[#allocation2 + $0xd8] sm:$0xff]
        %v397 = vld [vmem:[#allocation2 + $0xe0] sm:$0xff]
        %v398 = vld [vmem:[#allocation2 + $0xf0] sm:$0xff]
        %v399 = vld [vmem:[#allocation2 + $0xf8] sm:$0xff]
        %v400 = vld [vmem:[#allocation2 + $0x108] sm:$0xff]
        %v401 = vld [vmem:[#allocation2 + $0x110] sm:$0xff]
        %v402 = vld [vmem:[#allocation2 + $0x120] sm:$0xff]
        %v403 = vld [vmem:[#allocation2 + $0x128] sm:$0xff]
        %v404 = vld [vmem:[#allocation2 + $0x138] sm:$0xff]
        %v405 = vld [vmem:[#allocation2 + $0x140] sm:$0xff]
        %v406 = vld [vmem:[#allocation2 + $0x150] sm:$0xff]
        %v407 = vld [vmem:[#allocation2 + $0x158] sm:$0xff]
        %v408 = vld [vmem:[#allocation2 + $0x168] sm:$0xff]
        %v409 = vld [vmem:[#allocation2 + $0x170] sm:$0xff]
        %v410 = vld [vmem:[#allocation2 + $0x1] sm:$0xff]
        %v411 = vld [vmem:[#allocation2 + $0x9] sm:$0xff]
        %v412 = vld [vmem:[#allocation2 + $0x19] sm:$0xff]
        %v413 = vld [vmem:[#allocation2 + $0x21] sm:$0xff]
        %v414 = vld [vmem:[#allocation2 + $0x31] sm:$0xff]
        %v415 = vld [vmem:[#allocation2 + $0x39] sm:$0xff]
        %v416 = vld [vmem:[#allocation2 + $0x49] sm:$0xff]
        %v417 = vld [vmem:[#allocation2 + $0x51] sm:$0xff]
        %v418 = vld [vmem:[#allocation2 + $0x61] sm:$0xff]
        %v419 = vld [vmem:[#allocation2 + $0x69] sm:$0xff]
        %v420 = vld [vmem:[#allocation2 + $0x79] sm:$0xff]
        %v421 = vld [vmem:[#allocation2 + $0x81] sm:$0xff]
        %v422 = vld [vmem:[#allocation2 + $0x91] sm:$0xff]
        %v423 = vld [vmem:[#allocation2 + $0x99] sm:$0xff]
        %v424 = vld [vmem:[#allocation2 + $0xa9] sm:$0xff]
        %v425 = vld [vmem:[#allocation2 + $0xb1] sm:$0xff]
        %v426 = vld [vmem:[#allocation2 + $0xc1] sm:$0xff]
        %v427 = vld [vmem:[#allocation2 + $0xc9] sm:$0xff]
        %v428 = vld [vmem:[#allocation2 + $0xd9] sm:$0xff]
        %v429 = vld [vmem:[#allocation2 + $0xe1] sm:$0xff]
        %v430 = vld [vmem:[#allocation2 + $0xf1] sm:$0xff]
        %v431 = vld [vmem:[#allocation2 + $0xf9] sm:$0xff]
        %v432 = vld [vmem:[#allocation2 + $0x109] sm:$0xff]
        %v433 = vld [vmem:[#allocation2 + $0x111] sm:$0xff]
        %v434 = vld [vmem:[#allocation2 + $0x121] sm:$0xff]
        %v435 = vld [vmem:[#allocation2 + $0x129] sm:$0xff]
        %v436 = vld [vmem:[#allocation2 + $0x139] sm:$0xff]
        %v437 = vld [vmem:[#allocation2 + $0x141] sm:$0xff]
        %v438 = vld [vmem:[#allocation2 + $0x151] sm:$0xff]
        %v439 = vld [vmem:[#allocation2 + $0x159] sm:$0xff]
        %v440 = vld [vmem:[#allocation2 + $0x169] sm:$0xff]
        %v441 = vld [vmem:[#allocation2 + $0x171] sm:$0xff]
        %v442 = vld [vmem:[#allocation2 + $0x2] sm:$0xff]
        %v443 = vld [vmem:[#allocation2 + $0xa] sm:$0xff]
        %v444 = vld [vmem:[#allocation2 + $0x1a] sm:$0xff]
        %v445 = vld [vmem:[#allocation2 + $0x22] sm:$0xff]
        %v446 = vld [vmem:[#allocation2 + $0x32] sm:$0xff]
        %v447 = vld [vmem:[#allocation2 + $0x3a] sm:$0xff]
        %v448 = vld [vmem:[#allocation2 + $0x4a] sm:$0xff]
        %v449 = vld [vmem:[#allocation2 + $0x52] sm:$0xff]
        %v450 = vld [vmem:[#allocation2 + $0x62] sm:$0xff]
        %v451 = vld [vmem:[#allocation2 + $0x6a] sm:$0xff]
        %v452 = vld [vmem:[#allocation2 + $0x7a] sm:$0xff]
        %v453 = vld [vmem:[#allocation2 + $0x82] sm:$0xff]
        %v454 = vld [vmem:[#allocation2 + $0x92] sm:$0xff]
        %v455 = vld [vmem:[#allocation2 + $0x9a] sm:$0xff]
        %v456 = vld [vmem:[#allocation2 + $0xaa] sm:$0xff]
        %v457 = vld [vmem:[#allocation2 + $0xb2] sm:$0xff]
        %v458 = vld [vmem:[#allocation2 + $0xc2] sm:$0xff]
        %v459 = vld [vmem:[#allocation2 + $0xca] sm:$0xff]
        %v460 = vld [vmem:[#allocation2 + $0xda] sm:$0xff]
        %v461 = vld [vmem:[#allocation2 + $0xe2] sm:$0xff]
        %v462 = vld [vmem:[#allocation2 + $0xf2] sm:$0xff]
        %v463 = vld [vmem:[#allocation2 + $0xfa] sm:$0xff]
        %v464 = vld [vmem:[#allocation2 + $0x10a] sm:$0xff]
        %v465 = vld [vmem:[#allocation2 + $0x112] sm:$0xff]
        %v466 = vld [vmem:[#allocation2 + $0x122] sm:$0xff]
        %v467 = vld [vmem:[#allocation2 + $0x12a] sm:$0xff]
        %v468 = vld [vmem:[#allocation2 + $0x13a] sm:$0xff]
        %v469 = vld [vmem:[#allocation2 + $0x142] sm:$0xff]
        %v470 = vld [vmem:[#allocation2 + $0x152] sm:$0xff]
        %v471 = vld [vmem:[#allocation2 + $0x15a] sm:$0xff]
        %v472 = vld [vmem:[#allocation2 + $0x16a] sm:$0xff]
        %v473 = vld [vmem:[#allocation2 + $0x172] sm:$0xff]
        %v474 = vld [vmem:[%s345] sm:$0xff]
        %v475 = vld [vmem:[%s345 + $0x8] sm:$0xff]
        %v476 = vld [vmem:[%s345 + $0x18] sm:$0xff]
        %v477 = vld [vmem:[%s345 + $0x20] sm:$0xff]
        %v478 = vld [vmem:[%s345 + $0x30] sm:$0xff]
        %v479 = vld [vmem:[%s345 + $0x38] sm:$0xff]
        %v480 = vld [vmem:[%s345 + $0x48] sm:$0xff]
        %v481 = vld [vmem:[%s345 + $0x50] sm:$0xff]
        %v482 = vld [vmem:[%s345 + $0x60] sm:$0xff]
        %v483 = vld [vmem:[%s345 + $0x68] sm:$0xff]
        %v484 = vld [vmem:[%s345 + $0x78] sm:$0xff]
        %v485 = vld [vmem:[%s345 + $0x80] sm:$0xff]
        %v486 = vld [vmem:[%s345 + $0x90] sm:$0xff]
        %v487 = vld [vmem:[%s345 + $0x98] sm:$0xff]
        %v488 = vld [vmem:[%s345 + $0xa8] sm:$0xff]
        %v489 = vld [vmem:[%s345 + $0xb0] sm:$0xff]
        %v490 = vld [vmem:[%s345 + $0xc0] sm:$0xff]
        %v491 = vld [vmem:[%s345 + $0xc8] sm:$0xff]
        %v492 = vld [vmem:[%s345 + $0xd8] sm:$0xff]
        %v493 = vld [vmem:[%s345 + $0xe0] sm:$0xff]
        %v494 = vld [vmem:[%s345 + $0xf0] sm:$0xff]
        %v495 = vld [vmem:[%s345 + $0xf8] sm:$0xff]
        %v496 = vld [vmem:[%s345 + $0x108] sm:$0xff]
        %v497 = vld [vmem:[%s345 + $0x110] sm:$0xff]
        %v498 = vld [vmem:[%s345 + $0x120] sm:$0xff]
        %v499 = vld [vmem:[%s345 + $0x128] sm:$0xff]
        %v500 = vld [vmem:[%s345 + $0x138] sm:$0xff]
        %v501 = vld [vmem:[%s345 + $0x140] sm:$0xff]
        %v502 = vld [vmem:[%s345 + $0x150] sm:$0xff]
        %v503 = vld [vmem:[%s345 + $0x158] sm:$0xff]
        %v504 = vld [vmem:[%s345 + $0x168] sm:$0xff]
        %v505 = vld [vmem:[%s345 + $0x170] sm:$0xff]
        %v506 = vld [vmem:[%s345 + $0x1] sm:$0xff]
        %v507 = vld [vmem:[%s345 + $0x9] sm:$0xff]
        %v508 = vld [vmem:[%s345 + $0x19] sm:$0xff]
        %v509 = vld [vmem:[%s345 + $0x21] sm:$0xff]
        %v510 = vld [vmem:[%s345 + $0x31] sm:$0xff]
        %v511 = vld [vmem:[%s345 + $0x39] sm:$0xff]
        %v512 = vld [vmem:[%s345 + $0x49] sm:$0xff]
        %v513 = vld [vmem:[%s345 + $0x51] sm:$0xff]
        %v514 = vld [vmem:[%s345 + $0x61] sm:$0xff]
        %v515 = vld [vmem:[%s345 + $0x69] sm:$0xff]
        %v516 = vld [vmem:[%s345 + $0x79] sm:$0xff]
        %v517 = vld [vmem:[%s345 + $0x81] sm:$0xff]
        %v518 = vld [vmem:[%s345 + $0x91] sm:$0xff]
        %v519 = vld [vmem:[%s345 + $0x99] sm:$0xff]
        %v520 = vld [vmem:[%s345 + $0xa9] sm:$0xff]
        %v521 = vld [vmem:[%s345 + $0xb1] sm:$0xff]
        %v522 = vld [vmem:[%s345 + $0xc1] sm:$0xff]
        %v523 = vld [vmem:[%s345 + $0xc9] sm:$0xff]
        %v524 = vld [vmem:[%s345 + $0xd9] sm:$0xff]
        %v525 = vld [vmem:[%s345 + $0xe1] sm:$0xff]
        %v526 = vld [vmem:[%s345 + $0xf1] sm:$0xff]
        %v527 = vld [vmem:[%s345 + $0xf9] sm:$0xff]
        %v528 = vld [vmem:[%s345 + $0x109] sm:$0xff]
        %v529 = vld [vmem:[%s345 + $0x111] sm:$0xff]
        %v530 = vld [vmem:[%s345 + $0x121] sm:$0xff]
        %v531 = vld [vmem:[%s345 + $0x129] sm:$0xff]
        %v532 = vld [vmem:[%s345 + $0x139] sm:$0xff]
        %v533 = vld [vmem:[%s345 + $0x141] sm:$0xff]
        %v534 = vld [vmem:[%s345 + $0x151] sm:$0xff]
        %v535 = vld [vmem:[%s345 + $0x159] sm:$0xff]
        %v536 = vld [vmem:[%s345 + $0x169] sm:$0xff]
        %v537 = vld [vmem:[%s345 + $0x171] sm:$0xff]
        %v538 = vld [vmem:[%s345 + $0x2] sm:$0xff]
        %v539 = vld [vmem:[%s345 + $0xa] sm:$0xff]
        %v540 = vld [vmem:[%s345 + $0x1a] sm:$0xff]
        %v541 = vld [vmem:[%s345 + $0x22] sm:$0xff]
        %v542 = vld [vmem:[%s345 + $0x32] sm:$0xff]
        %v543 = vld [vmem:[%s345 + $0x3a] sm:$0xff]
        %v544 = vld [vmem:[%s345 + $0x4a] sm:$0xff]
        %v545 = vld [vmem:[%s345 + $0x52] sm:$0xff]
        %v546 = vld [vmem:[%s345 + $0x62] sm:$0xff]
        %v547 = vld [vmem:[%s345 + $0x6a] sm:$0xff]
        %v548 = vld [vmem:[%s345 + $0x7a] sm:$0xff]
        %v549 = vld [vmem:[%s345 + $0x82] sm:$0xff]
        %v550 = vld [vmem:[%s345 + $0x92] sm:$0xff]
        %v551 = vld [vmem:[%s345 + $0x9a] sm:$0xff]
        %v552 = vld [vmem:[%s345 + $0xaa] sm:$0xff]
        %v553 = vld [vmem:[%s345 + $0xb2] sm:$0xff]
        %v554 = vld [vmem:[%s345 + $0xc2] sm:$0xff]
        %v555 = vld [vmem:[%s345 + $0xca] sm:$0xff]
        %v556 = vld [vmem:[%s345 + $0xda] sm:$0xff]
        %v557 = vld [vmem:[%s345 + $0xe2] sm:$0xff]
        %v558 = vld [vmem:[%s345 + $0xf2] sm:$0xff]
        %v559 = vld [vmem:[%s345 + $0xfa] sm:$0xff]
        %v560 = vld [vmem:[%s345 + $0x10a] sm:$0xff]
        %v561 = vld [vmem:[%s345 + $0x112] sm:$0xff]
        %v562 = vld [vmem:[%s345 + $0x122] sm:$0xff]
        %v563 = vld [vmem:[%s345 + $0x12a] sm:$0xff]
        %v564 = vld [vmem:[%s345 + $0x13a] sm:$0xff]
        %v565 = vld [vmem:[%s345 + $0x142] sm:$0xff]
        %v566 = vld [vmem:[%s345 + $0x152] sm:$0xff]
        %v567 = vld [vmem:[%s345 + $0x15a] sm:$0xff]
        %v568 = vld [vmem:[%s345 + $0x16a] sm:$0xff]
        %v569 = vld [vmem:[%s345 + $0x172] sm:$0xff]
        %s570 = scalar_lea.vmem [#allocation2], 48
        %v571 = vld [vmem:[%s570] sm:$0xff]
        %v572 = vld [vmem:[%s570 + $0x8] sm:$0xff]
        %v573 = vld [vmem:[%s570 + $0x18] sm:$0xff]
        %v574 = vld [vmem:[%s570 + $0x20] sm:$0xff]
        %v575 = vld [vmem:[%s570 + $0x30] sm:$0xff]
        %v576 = vld [vmem:[%s570 + $0x38] sm:$0xff]
        %v577 = vld [vmem:[%s570 + $0x48] sm:$0xff]
        %v578 = vld [vmem:[%s570 + $0x50] sm:$0xff]
        %v579 = vld [vmem:[%s570 + $0x60] sm:$0xff]
        %v580 = vld [vmem:[%s570 + $0x68] sm:$0xff]
        %v581 = vld [vmem:[%s570 + $0x78] sm:$0xff]
        %v582 = vld [vmem:[%s570 + $0x80] sm:$0xff]
        %v583 = vld [vmem:[%s570 + $0x90] sm:$0xff]
        %v584 = vld [vmem:[%s570 + $0x98] sm:$0xff]
        %v585 = vld [vmem:[%s570 + $0xa8] sm:$0xff]
        %v586 = vld [vmem:[%s570 + $0xb0] sm:$0xff]
        %v587 = vld [vmem:[%s570 + $0xc0] sm:$0xff]
        %v588 = vld [vmem:[%s570 + $0xc8] sm:$0xff]
        %v589 = vld [vmem:[%s570 + $0xd8] sm:$0xff]
        %v590 = vld [vmem:[%s570 + $0xe0] sm:$0xff]
        %v591 = vld [vmem:[%s570 + $0xf0] sm:$0xff]
        %v592 = vld [vmem:[%s570 + $0xf8] sm:$0xff]
        %v593 = vld [vmem:[%s570 + $0x108] sm:$0xff]
        %v594 = vld [vmem:[%s570 + $0x110] sm:$0xff]
        %v595 = vld [vmem:[%s570 + $0x120] sm:$0xff]
        %v596 = vld [vmem:[%s570 + $0x128] sm:$0xff]
        %v597 = vld [vmem:[%s570 + $0x138] sm:$0xff]
        %v598 = vld [vmem:[%s570 + $0x140] sm:$0xff]
        %v599 = vld [vmem:[%s570 + $0x150] sm:$0xff]
        %v600 = vld [vmem:[%s570 + $0x158] sm:$0xff]
        %v601 = vld [vmem:[%s570 + $0x168] sm:$0xff]
        %v602 = vld [vmem:[%s570 + $0x170] sm:$0xff]
        %v603 = vld [vmem:[%s570 + $0x1] sm:$0xff]
        %v604 = vld [vmem:[%s570 + $0x9] sm:$0xff]
        %v605 = vld [vmem:[%s570 + $0x19] sm:$0xff]
        %v606 = vld [vmem:[%s570 + $0x21] sm:$0xff]
        %v607 = vld [vmem:[%s570 + $0x31] sm:$0xff]
        %v608 = vld [vmem:[%s570 + $0x39] sm:$0xff]
        %v609 = vld [vmem:[%s570 + $0x49] sm:$0xff]
        %v610 = vld [vmem:[%s570 + $0x51] sm:$0xff]
        %v611 = vld [vmem:[%s570 + $0x61] sm:$0xff]
        %v612 = vld [vmem:[%s570 + $0x69] sm:$0xff]
        %v613 = vld [vmem:[%s570 + $0x79] sm:$0xff]
        %v614 = vld [vmem:[%s570 + $0x81] sm:$0xff]
        %v615 = vld [vmem:[%s570 + $0x91] sm:$0xff]
        %v616 = vld [vmem:[%s570 + $0x99] sm:$0xff]
        %v617 = vld [vmem:[%s570 + $0xa9] sm:$0xff]
        %v618 = vld [vmem:[%s570 + $0xb1] sm:$0xff]
        %v619 = vld [vmem:[%s570 + $0xc1] sm:$0xff]
        %v620 = vld [vmem:[%s570 + $0xc9] sm:$0xff]
        %v621 = vld [vmem:[%s570 + $0xd9] sm:$0xff]
        %v622 = vld [vmem:[%s570 + $0xe1] sm:$0xff]
        %v623 = vld [vmem:[%s570 + $0xf1] sm:$0xff]
        %v624 = vld [vmem:[%s570 + $0xf9] sm:$0xff]
        %v625 = vld [vmem:[%s570 + $0x109] sm:$0xff]
        %v626 = vld [vmem:[%s570 + $0x111] sm:$0xff]
        %v627 = vld [vmem:[%s570 + $0x121] sm:$0xff]
        %v628 = vld [vmem:[%s570 + $0x129] sm:$0xff]
        %v629 = vld [vmem:[%s570 + $0x139] sm:$0xff]
        %v630 = vld [vmem:[%s570 + $0x141] sm:$0xff]
        %v631 = vld [vmem:[%s570 + $0x151] sm:$0xff]
        %v632 = vld [vmem:[%s570 + $0x159] sm:$0xff]
        %v633 = vld [vmem:[%s570 + $0x169] sm:$0xff]
        %v634 = vld [vmem:[%s570 + $0x171] sm:$0xff]
        %v635 = vld [vmem:[%s570 + $0x2] sm:$0xff]
        %v636 = vld [vmem:[%s570 + $0xa] sm:$0xff]
        %v637 = vld [vmem:[%s570 + $0x1a] sm:$0xff]
        %v638 = vld [vmem:[%s570 + $0x22] sm:$0xff]
        %v639 = vld [vmem:[%s570 + $0x32] sm:$0xff]
        %v640 = vld [vmem:[%s570 + $0x3a] sm:$0xff]
        %v641 = vld [vmem:[%s570 + $0x4a] sm:$0xff]
        %v642 = vld [vmem:[%s570 + $0x52] sm:$0xff]
        %v643 = vld [vmem:[%s570 + $0x62] sm:$0xff]
        %v644 = vld [vmem:[%s570 + $0x6a] sm:$0xff]
        %v645 = vld [vmem:[%s570 + $0x7a] sm:$0xff]
        %v646 = vld [vmem:[%s570 + $0x82] sm:$0xff]
        %v647 = vld [vmem:[%s570 + $0x92] sm:$0xff]
        %v648 = vld [vmem:[%s570 + $0x9a] sm:$0xff]
        %v649 = vld [vmem:[%s570 + $0xaa] sm:$0xff]
        %v650 = vld [vmem:[%s570 + $0xb2] sm:$0xff]
        %v651 = vld [vmem:[%s570 + $0xc2] sm:$0xff]
        %v652 = vld [vmem:[%s570 + $0xca] sm:$0xff]
        %v653 = vld [vmem:[%s570 + $0xda] sm:$0xff]
        %v654 = vld [vmem:[%s570 + $0xe2] sm:$0xff]
        %v655 = vld [vmem:[%s570 + $0xf2] sm:$0xff]
        %v656 = vld [vmem:[%s570 + $0xfa] sm:$0xff]
        %v657 = vld [vmem:[%s570 + $0x10a] sm:$0xff]
        %v658 = vld [vmem:[%s570 + $0x112] sm:$0xff]
        %v659 = vld [vmem:[%s570 + $0x122] sm:$0xff]
        %v660 = vld [vmem:[%s570 + $0x12a] sm:$0xff]
        %v661 = vld [vmem:[%s570 + $0x13a] sm:$0xff]
        %v662 = vld [vmem:[%s570 + $0x142] sm:$0xff]
        %v663 = vld [vmem:[%s570 + $0x152] sm:$0xff]
        %v664 = vld [vmem:[%s570 + $0x15a] sm:$0xff]
        %v665 = vld [vmem:[%s570 + $0x16a] sm:$0xff]
        %v666 = vld [vmem:[%s570 + $0x172] sm:$0xff]
        %v667 = vld [vmem:[#allocation3] sm:$0xff]
        %v668 = vld [vmem:[#allocation3 + $0x8] sm:$0xff]
        %v669 = vld [vmem:[#allocation3 + $0x10] sm:$0xff]
        %v670 = vld [vmem:[#allocation3 + $0x18] sm:$0xff]
        %v671 = vld [vmem:[#allocation3 + $0x20] sm:$0xff]
        %v672 = vld [vmem:[#allocation3 + $0x28] sm:$0xff]
        %v673 = vld [vmem:[#allocation3 + $0x30] sm:$0xff]
        %v674 = vld [vmem:[#allocation3 + $0x38] sm:$0xff]
        %v675 = vld [vmem:[#allocation3 + $0x40] sm:$0xff]
        %v676 = vld [vmem:[#allocation3 + $0x48] sm:$0xff]
        %v677 = vld [vmem:[#allocation3 + $0x50] sm:$0xff]
        %v678 = vld [vmem:[#allocation3 + $0x58] sm:$0xff]
        %v679 = vld [vmem:[#allocation3 + $0x60] sm:$0xff]
        %v680 = vld [vmem:[#allocation3 + $0x68] sm:$0xff]
        %v681 = vld [vmem:[#allocation3 + $0x70] sm:$0xff]
        %v682 = vld [vmem:[#allocation3 + $0x78] sm:$0xff]
        %v683 = vld [vmem:[#allocation3 + $0x80] sm:$0xff]
        %v684 = vld [vmem:[#allocation3 + $0x88] sm:$0xff]
        %v685 = vld [vmem:[#allocation3 + $0x90] sm:$0xff]
        %v686 = vld [vmem:[#allocation3 + $0x98] sm:$0xff]
        %v687 = vld [vmem:[#allocation3 + $0xa0] sm:$0xff]
        %v688 = vld [vmem:[#allocation3 + $0xa8] sm:$0xff]
        %v689 = vld [vmem:[#allocation3 + $0xb0] sm:$0xff]
        %v690 = vld [vmem:[#allocation3 + $0xb8] sm:$0xff]
        %v691 = vld [vmem:[#allocation3 + $0xc0] sm:$0xff]
        %v692 = vld [vmem:[#allocation3 + $0xc8] sm:$0xff]
        %v693 = vld [vmem:[#allocation3 + $0xd0] sm:$0xff]
        %v694 = vld [vmem:[#allocation3 + $0xd8] sm:$0xff]
        %v695 = vld [vmem:[#allocation3 + $0xe0] sm:$0xff]
        %v696 = vld [vmem:[#allocation3 + $0xe8] sm:$0xff]
        %v697 = vld [vmem:[#allocation3 + $0xf0] sm:$0xff]
        %v698 = vld [vmem:[#allocation3 + $0xf8] sm:$0xff]
        %v699 = vld [vmem:[#allocation3 + $0x100] sm:$0xff]
        %v700 = vld [vmem:[#allocation3 + $0x108] sm:$0xff]
        %v701 = vld [vmem:[#allocation3 + $0x110] sm:$0xff]
        %v702 = vld [vmem:[#allocation3 + $0x118] sm:$0xff]
        %v703 = vld [vmem:[#allocation3 + $0x120] sm:$0xff]
        %v704 = vld [vmem:[#allocation3 + $0x128] sm:$0xff]
        %v705 = vld [vmem:[#allocation3 + $0x130] sm:$0xff]
        %v706 = vld [vmem:[#allocation3 + $0x138] sm:$0xff]
        %v707 = vld [vmem:[#allocation3 + $0x140] sm:$0xff]
        %v708 = vld [vmem:[#allocation3 + $0x148] sm:$0xff]
        %v709 = vld [vmem:[#allocation3 + $0x150] sm:$0xff]
        %v710 = vld [vmem:[#allocation3 + $0x158] sm:$0xff]
        %v711 = vld [vmem:[#allocation3 + $0x160] sm:$0xff]
        %v712 = vld [vmem:[#allocation3 + $0x168] sm:$0xff]
        %v713 = vld [vmem:[#allocation3 + $0x170] sm:$0xff]
        %v714 = vld [vmem:[#allocation3 + $0x178] sm:$0xff]
        %v715 = vld [vmem:[#allocation3 + $0x180] sm:$0xff]
        %v716 = vld [vmem:[#allocation3 + $0x188] sm:$0xff]
        %v717 = vld [vmem:[#allocation3 + $0x190] sm:$0xff]
        %v718 = vld [vmem:[#allocation3 + $0x198] sm:$0xff]
        %v719 = vld [vmem:[#allocation3 + $0x1a0] sm:$0xff]
        %v720 = vld [vmem:[#allocation3 + $0x1a8] sm:$0xff]
        %v721 = vld [vmem:[#allocation3 + $0x1b0] sm:$0xff]
        %v722 = vld [vmem:[#allocation3 + $0x1b8] sm:$0xff]
        %v723 = vld [vmem:[#allocation3 + $0x1c0] sm:$0xff]
        %v724 = vld [vmem:[#allocation3 + $0x1c8] sm:$0xff]
        %v725 = vld [vmem:[#allocation3 + $0x1d0] sm:$0xff]
        %v726 = vld [vmem:[#allocation3 + $0x1d8] sm:$0xff]
        %v727 = vld [vmem:[#allocation3 + $0x1e0] sm:$0xff]
        %v728 = vld [vmem:[#allocation3 + $0x1e8] sm:$0xff]
        %v729 = vld [vmem:[#allocation3 + $0x1f0] sm:$0xff]
        %v730 = vld [vmem:[#allocation3 + $0x1f8] sm:$0xff]
        %v731 = vld [vmem:[#allocation3 + $0x200] sm:$0xff]
        %v732 = vld [vmem:[#allocation3 + $0x208] sm:$0xff]
        %v733 = vld [vmem:[#allocation3 + $0x210] sm:$0xff]
        %v734 = vld [vmem:[#allocation3 + $0x218] sm:$0xff]
        %v735 = vld [vmem:[#allocation3 + $0x220] sm:$0xff]
        %v736 = vld [vmem:[#allocation3 + $0x228] sm:$0xff]
        %v737 = vld [vmem:[#allocation3 + $0x230] sm:$0xff]
        %v738 = vld [vmem:[#allocation3 + $0x238] sm:$0xff]
        %v739 = vld [vmem:[#allocation3 + $0x240] sm:$0xff]
        %v740 = vld [vmem:[#allocation3 + $0x248] sm:$0xff]
        %v741 = vld [vmem:[#allocation3 + $0x250] sm:$0xff]
        %v742 = vld [vmem:[#allocation3 + $0x258] sm:$0xff]
        %v743 = vld [vmem:[#allocation3 + $0x260] sm:$0xff]
        %v744 = vld [vmem:[#allocation3 + $0x268] sm:$0xff]
        %v745 = vld [vmem:[#allocation3 + $0x270] sm:$0xff]
        %v746 = vld [vmem:[#allocation3 + $0x278] sm:$0xff]
        %v747 = vld [vmem:[#allocation3 + $0x280] sm:$0xff]
        %v748 = vld [vmem:[#allocation3 + $0x288] sm:$0xff]
        %v749 = vld [vmem:[#allocation3 + $0x290] sm:$0xff]
        %v750 = vld [vmem:[#allocation3 + $0x298] sm:$0xff]
        %v751 = vld [vmem:[#allocation3 + $0x2a0] sm:$0xff]
        %v752 = vld [vmem:[#allocation3 + $0x2a8] sm:$0xff]
        %v753 = vld [vmem:[#allocation3 + $0x2b0] sm:$0xff]
        %v754 = vld [vmem:[#allocation3 + $0x2b8] sm:$0xff]
        %v755 = vld [vmem:[#allocation3 + $0x2c0] sm:$0xff]
        %v756 = vld [vmem:[#allocation3 + $0x2c8] sm:$0xff]
        %v757 = vld [vmem:[#allocation3 + $0x2d0] sm:$0xff]
        %v758 = vld [vmem:[#allocation3 + $0x2d8] sm:$0xff]
        %v759 = vld [vmem:[#allocation3 + $0x2e0] sm:$0xff]
        %v760 = vld [vmem:[#allocation3 + $0x2e8] sm:$0xff]
        %v761 = vld [vmem:[#allocation3 + $0x2f0] sm:$0xff]
        %v762 = vld [vmem:[#allocation3 + $0x2f8] sm:$0xff]
        %v763 = vld [vmem:[#allocation3 + $0x300] sm:$0xff]
        %v764 = vld [vmem:[#allocation3 + $0x308] sm:$0xff]
        %v765 = vld [vmem:[#allocation3 + $0x310] sm:$0xff]
        %v766 = vld [vmem:[#allocation3 + $0x318] sm:$0xff]
        %v767 = vld [vmem:[#allocation3 + $0x320] sm:$0xff]
        %v768 = vld [vmem:[#allocation3 + $0x328] sm:$0xff]
        %v769 = vld [vmem:[#allocation3 + $0x330] sm:$0xff]
        %v770 = vld [vmem:[#allocation3 + $0x338] sm:$0xff]
        %v771 = vld [vmem:[#allocation3 + $0x340] sm:$0xff]
        %v772 = vld [vmem:[#allocation3 + $0x348] sm:$0xff]
        %v773 = vld [vmem:[#allocation3 + $0x350] sm:$0xff]
        %v774 = vld [vmem:[#allocation3 + $0x358] sm:$0xff]
        %v775 = vld [vmem:[#allocation3 + $0x360] sm:$0xff]
        %v776 = vld [vmem:[#allocation3 + $0x368] sm:$0xff]
        %v777 = vld [vmem:[#allocation3 + $0x370] sm:$0xff]
        %v778 = vld [vmem:[#allocation3 + $0x378] sm:$0xff]
        %v779 = vld [vmem:[#allocation3 + $0x380] sm:$0xff]
        %v780 = vld [vmem:[#allocation3 + $0x388] sm:$0xff]
        %v781 = vld [vmem:[#allocation3 + $0x390] sm:$0xff]
        %v782 = vld [vmem:[#allocation3 + $0x398] sm:$0xff]
        %v783 = vld [vmem:[#allocation3 + $0x3a0] sm:$0xff]
        %v784 = vld [vmem:[#allocation3 + $0x3a8] sm:$0xff]
        %v785 = vld [vmem:[#allocation3 + $0x3b0] sm:$0xff]
        %v786 = vld [vmem:[#allocation3 + $0x3b8] sm:$0xff]
        %v787 = vld [vmem:[#allocation3 + $0x3c0] sm:$0xff]
        %v788 = vld [vmem:[#allocation3 + $0x3c8] sm:$0xff]
        %v789 = vld [vmem:[#allocation3 + $0x3d0] sm:$0xff]
        %v790 = vld [vmem:[#allocation3 + $0x3d8] sm:$0xff]
        %v791 = vld [vmem:[#allocation3 + $0x3e0] sm:$0xff]
        %v792 = vld [vmem:[#allocation3 + $0x3e8] sm:$0xff]
        %v793 = vld [vmem:[#allocation3 + $0x3f0] sm:$0xff]
        %v794 = vld [vmem:[#allocation3 + $0x3f8] sm:$0xff]
        %v795 = vld [vmem:[#allocation3 + $0x400] sm:$0xff]
        %v796 = vld [vmem:[#allocation3 + $0x408] sm:$0xff]
        %v797 = vld [vmem:[#allocation3 + $0x410] sm:$0xff]
        %v798 = vld [vmem:[#allocation3 + $0x418] sm:$0xff]
        %v799 = vld [vmem:[#allocation3 + $0x420] sm:$0xff]
        %v800 = vld [vmem:[#allocation3 + $0x428] sm:$0xff]
        %v801 = vld [vmem:[#allocation3 + $0x430] sm:$0xff]
        %v802 = vld [vmem:[#allocation3 + $0x438] sm:$0xff]
        %v803 = vld [vmem:[#allocation3 + $0x440] sm:$0xff]
        %v804 = vld [vmem:[#allocation3 + $0x448] sm:$0xff]
        %v805 = vld [vmem:[#allocation3 + $0x450] sm:$0xff]
        %v806 = vld [vmem:[#allocation3 + $0x458] sm:$0xff]
        %v807 = vld [vmem:[#allocation3 + $0x460] sm:$0xff]
        %v808 = vld [vmem:[#allocation3 + $0x468] sm:$0xff]
        %v809 = vld [vmem:[#allocation3 + $0x470] sm:$0xff]
        %v810 = vld [vmem:[#allocation3 + $0x478] sm:$0xff]
        %v811 = vld [vmem:[#allocation5] sm:$0x1]
        %v813 = vperm.slane %v811, 0
        %815 = vmatpush.msra.mxu0 %v682
        %816 = vmatpush.msra.mxu0 %v681
        %817 = vmatpush.msra.mxu0 %v680
        %818 = vmatpush.msra.mxu0 %v679
        %819 = vmatpush.msra.mxu0 %v678
        %820 = vmatpush.msra.mxu0 %v677
        %821 = vmatpush.msra.mxu0 %v676
        %822 = vmatpush.msra.mxu0 %v675
        %823 = vmatpush.msra.mxu0 %v674
        %824 = vmatpush.msra.mxu0 %v673
        %825 = vmatpush.msra.mxu0 %v672
        %826 = vmatpush.msra.mxu0 %v671
        %827 = vmatpush.msra.mxu0 %v670
        %828 = vmatpush.msra.mxu0 %v669
        %829 = vmatpush.msra.mxu0 %v668
        %830 = vmatpush.msra.mxu0 %v667
        %831 = vmatmul.f32.gmra.mxu0 %v378
        %v832 = vpop.f32.mrf.mxu0
        %v833 = vadd.f32 %v813, %v832
        %834 = vmatmul.f32.gmra.mxu0 %v379
        %v835 = vpop.f32.mrf.mxu0
        %v836 = vadd.f32 %v813, %v835
        %837 = vmatmul.f32.gmra.mxu0 %v380
        %v838 = vpop.f32.mrf.mxu0
        %v839 = vadd.f32 %v813, %v838
        %840 = vmatmul.f32.gmra.mxu0 %v381
        %v841 = vpop.f32.mrf.mxu0
        %v842 = vadd.f32 %v813, %v841
        %843 = vmatmul.f32.gmra.mxu0 %v382
        %v844 = vpop.f32.mrf.mxu0
        %v845 = vadd.f32 %v813, %v844
        %846 = vmatmul.f32.gmra.mxu0 %v383
        %v847 = vpop.f32.mrf.mxu0
        %v848 = vadd.f32 %v813, %v847
        %849 = vmatmul.f32.gmra.mxu0 %v384
        %v850 = vpop.f32.mrf.mxu0
        %v851 = vadd.f32 %v813, %v850
        %852 = vmatmul.f32.gmra.mxu0 %v385
        %v853 = vpop.f32.mrf.mxu0
        %v854 = vadd.f32 %v813, %v853
        %855 = vmatmul.f32.gmra.mxu0 %v386
        %v856 = vpop.f32.mrf.mxu0
        %v857 = vadd.f32 %v813, %v856
        %858 = vmatmul.f32.gmra.mxu0 %v387
        %v859 = vpop.f32.mrf.mxu0
        %v860 = vadd.f32 %v813, %v859
        %861 = vmatmul.f32.gmra.mxu0 %v388
        %v862 = vpop.f32.mrf.mxu0
        %v863 = vadd.f32 %v813, %v862
        %864 = vmatmul.f32.gmra.mxu0 %v389
        %v865 = vpop.f32.mrf.mxu0
        %v866 = vadd.f32 %v813, %v865
        %867 = vmatmul.f32.gmra.mxu0 %v390
        %v868 = vpop.f32.mrf.mxu0
        %v869 = vadd.f32 %v813, %v868
        %870 = vmatmul.f32.gmra.mxu0 %v391
        %v871 = vpop.f32.mrf.mxu0
        %v872 = vadd.f32 %v813, %v871
        %873 = vmatmul.f32.gmra.mxu0 %v392
        %v874 = vpop.f32.mrf.mxu0
        %v875 = vadd.f32 %v813, %v874
        %876 = vmatmul.f32.gmra.mxu0 %v393
        %v877 = vpop.f32.mrf.mxu0
        %v878 = vadd.f32 %v813, %v877
        %879 = vmatmul.f32.gmra.mxu0 %v394
        %v880 = vpop.f32.mrf.mxu0
        %v881 = vadd.f32 %v813, %v880
        %882 = vmatmul.f32.gmra.mxu0 %v395
        %v883 = vpop.f32.mrf.mxu0
        %v884 = vadd.f32 %v813, %v883
        %885 = vmatmul.f32.gmra.mxu0 %v396
        %v886 = vpop.f32.mrf.mxu0
        %v887 = vadd.f32 %v813, %v886
        %888 = vmatmul.f32.gmra.mxu0 %v397
        %v889 = vpop.f32.mrf.mxu0
        %v890 = vadd.f32 %v813, %v889
        %891 = vmatmul.f32.gmra.mxu0 %v398
        %v892 = vpop.f32.mrf.mxu0
        %v893 = vadd.f32 %v813, %v892
        %894 = vmatmul.f32.gmra.mxu0 %v399
        %v895 = vpop.f32.mrf.mxu0
        %v896 = vadd.f32 %v813, %v895
        %897 = vmatmul.f32.gmra.mxu0 %v400
        %v898 = vpop.f32.mrf.mxu0
        %v899 = vadd.f32 %v813, %v898
        %900 = vmatmul.f32.gmra.mxu0 %v401
        %v901 = vpop.f32.mrf.mxu0
        %v902 = vadd.f32 %v813, %v901
        %903 = vmatmul.f32.gmra.mxu0 %v402
        %v904 = vpop.f32.mrf.mxu0
        %v905 = vadd.f32 %v813, %v904
        %906 = vmatmul.f32.gmra.mxu0 %v403
        %v907 = vpop.f32.mrf.mxu0
        %v908 = vadd.f32 %v813, %v907
        %909 = vmatmul.f32.gmra.mxu0 %v404
        %v910 = vpop.f32.mrf.mxu0
        %v911 = vadd.f32 %v813, %v910
        %912 = vmatmul.f32.gmra.mxu0 %v405
        %v913 = vpop.f32.mrf.mxu0
        %v914 = vadd.f32 %v813, %v913
        %915 = vmatmul.f32.gmra.mxu0 %v406
        %v916 = vpop.f32.mrf.mxu0
        %v917 = vadd.f32 %v813, %v916
        %918 = vmatmul.f32.gmra.mxu0 %v407
        %v919 = vpop.f32.mrf.mxu0
        %v920 = vadd.f32 %v813, %v919
        %921 = vmatmul.f32.gmra.mxu0 %v408
        %v922 = vpop.f32.mrf.mxu0
        %v923 = vadd.f32 %v813, %v922
        %924 = vmatmul.f32.gmra.mxu0 %v409
        %v925 = vpop.f32.mrf.mxu0
        %v926 = vadd.f32 %v813, %v925
        %927 = vdwg.mxu0
        %928 = vmatpush.msra.mxu0 %v698
        %929 = vmatpush.msra.mxu0 %v697
        %930 = vmatpush.msra.mxu0 %v696
        %931 = vmatpush.msra.mxu0 %v695
        %932 = vmatpush.msra.mxu0 %v694
        %933 = vmatpush.msra.mxu0 %v693
        %934 = vmatpush.msra.mxu0 %v692
        %935 = vmatpush.msra.mxu0 %v691
        %936 = vmatpush.msra.mxu0 %v690
        %937 = vmatpush.msra.mxu0 %v689
        %938 = vmatpush.msra.mxu0 %v688
        %939 = vmatpush.msra.mxu0 %v687
        %940 = vmatpush.msra.mxu0 %v686
        %941 = vmatpush.msra.mxu0 %v685
        %942 = vmatpush.msra.mxu0 %v684
        %943 = vmatpush.msra.mxu0 %v683
        %944 = vmatmul.f32.gmra.mxu0 %v410
        %v945 = vpop.f32.mrf.mxu0
        %v946 = vadd.f32 %v833, %v945
        %947 = vmatmul.f32.gmra.mxu0 %v411
        %v948 = vpop.f32.mrf.mxu0
        %v949 = vadd.f32 %v836, %v948
        %950 = vmatmul.f32.gmra.mxu0 %v412
        %v951 = vpop.f32.mrf.mxu0
        %v952 = vadd.f32 %v839, %v951
        %953 = vmatmul.f32.gmra.mxu0 %v413
        %v954 = vpop.f32.mrf.mxu0
        %v955 = vadd.f32 %v842, %v954
        %956 = vmatmul.f32.gmra.mxu0 %v414
        %v957 = vpop.f32.mrf.mxu0
        %v958 = vadd.f32 %v845, %v957
        %959 = vmatmul.f32.gmra.mxu0 %v415
        %v960 = vpop.f32.mrf.mxu0
        %v961 = vadd.f32 %v848, %v960
        %962 = vmatmul.f32.gmra.mxu0 %v416
        %v963 = vpop.f32.mrf.mxu0
        %v964 = vadd.f32 %v851, %v963
        %965 = vmatmul.f32.gmra.mxu0 %v417
        %v966 = vpop.f32.mrf.mxu0
        %v967 = vadd.f32 %v854, %v966
        %968 = vmatmul.f32.gmra.mxu0 %v418
        %v969 = vpop.f32.mrf.mxu0
        %v970 = vadd.f32 %v857, %v969
        %971 = vmatmul.f32.gmra.mxu0 %v419
        %v972 = vpop.f32.mrf.mxu0
        %v973 = vadd.f32 %v860, %v972
        %974 = vmatmul.f32.gmra.mxu0 %v420
        %v975 = vpop.f32.mrf.mxu0
        %v976 = vadd.f32 %v863, %v975
        %977 = vmatmul.f32.gmra.mxu0 %v421
        %v978 = vpop.f32.mrf.mxu0
        %v979 = vadd.f32 %v866, %v978
        %980 = vmatmul.f32.gmra.mxu0 %v422
        %v981 = vpop.f32.mrf.mxu0
        %v982 = vadd.f32 %v869, %v981
        %983 = vmatmul.f32.gmra.mxu0 %v423
        %v984 = vpop.f32.mrf.mxu0
        %v985 = vadd.f32 %v872, %v984
        %986 = vmatmul.f32.gmra.mxu0 %v424
        %v987 = vpop.f32.mrf.mxu0
        %v988 = vadd.f32 %v875, %v987
        %989 = vmatmul.f32.gmra.mxu0 %v425
        %v990 = vpop.f32.mrf.mxu0
        %v991 = vadd.f32 %v878, %v990
        %992 = vmatmul.f32.gmra.mxu0 %v426
        %v993 = vpop.f32.mrf.mxu0
        %v994 = vadd.f32 %v881, %v993
        %995 = vmatmul.f32.gmra.mxu0 %v427
        %v996 = vpop.f32.mrf.mxu0
        %v997 = vadd.f32 %v884, %v996
        %998 = vmatmul.f32.gmra.mxu0 %v428
        %v999 = vpop.f32.mrf.mxu0
        %v1000 = vadd.f32 %v887, %v999
        %1001 = vmatmul.f32.gmra.mxu0 %v429
        %v1002 = vpop.f32.mrf.mxu0
        %v1003 = vadd.f32 %v890, %v1002
        %1004 = vmatmul.f32.gmra.mxu0 %v430
        %v1005 = vpop.f32.mrf.mxu0
        %v1006 = vadd.f32 %v893, %v1005
        %1007 = vmatmul.f32.gmra.mxu0 %v431
        %v1008 = vpop.f32.mrf.mxu0
        %v1009 = vadd.f32 %v896, %v1008
        %1010 = vmatmul.f32.gmra.mxu0 %v432
        %v1011 = vpop.f32.mrf.mxu0
        %v1012 = vadd.f32 %v899, %v1011
        %1013 = vmatmul.f32.gmra.mxu0 %v433
        %v1014 = vpop.f32.mrf.mxu0
        %v1015 = vadd.f32 %v902, %v1014
        %1016 = vmatmul.f32.gmra.mxu0 %v434
        %v1017 = vpop.f32.mrf.mxu0
        %v1018 = vadd.f32 %v905, %v1017
        %1019 = vmatmul.f32.gmra.mxu0 %v435
        %v1020 = vpop.f32.mrf.mxu0
        %v1021 = vadd.f32 %v908, %v1020
        %1022 = vmatmul.f32.gmra.mxu0 %v436
        %v1023 = vpop.f32.mrf.mxu0
        %v1024 = vadd.f32 %v911, %v1023
        %1025 = vmatmul.f32.gmra.mxu0 %v437
        %v1026 = vpop.f32.mrf.mxu0
        %v1027 = vadd.f32 %v914, %v1026
        %1028 = vmatmul.f32.gmra.mxu0 %v438
        %v1029 = vpop.f32.mrf.mxu0
        %v1030 = vadd.f32 %v917, %v1029
        %1031 = vmatmul.f32.gmra.mxu0 %v439
        %v1032 = vpop.f32.mrf.mxu0
        %v1033 = vadd.f32 %v920, %v1032
        %1034 = vmatmul.f32.gmra.mxu0 %v440
        %v1035 = vpop.f32.mrf.mxu0
        %v1036 = vadd.f32 %v923, %v1035
        %1037 = vmatmul.f32.gmra.mxu0 %v441
        %v1038 = vpop.f32.mrf.mxu0
        %v1039 = vadd.f32 %v926, %v1038
        %1040 = vdwg.mxu0
        %1041 = vmatpush.msra.mxu0 %v714
        %1042 = vmatpush.msra.mxu0 %v713
        %1043 = vmatpush.msra.mxu0 %v712
        %1044 = vmatpush.msra.mxu0 %v711
        %1045 = vmatpush.msra.mxu0 %v710
        %1046 = vmatpush.msra.mxu0 %v709
        %1047 = vmatpush.msra.mxu0 %v708
        %1048 = vmatpush.msra.mxu0 %v707
        %1049 = vmatpush.msra.mxu0 %v706
        %1050 = vmatpush.msra.mxu0 %v705
        %1051 = vmatpush.msra.mxu0 %v704
        %1052 = vmatpush.msra.mxu0 %v703
        %1053 = vmatpush.msra.mxu0 %v702
        %1054 = vmatpush.msra.mxu0 %v701
        %1055 = vmatpush.msra.mxu0 %v700
        %1056 = vmatpush.msra.mxu0 %v699
        %1057 = vmatmul.f32.gmra.mxu0 %v442
        %v1058 = vpop.f32.mrf.mxu0
        %v1059 = vadd.f32 %v946, %v1058
        %1060 = vmatmul.f32.gmra.mxu0 %v443
        %v1061 = vpop.f32.mrf.mxu0
        %v1062 = vadd.f32 %v949, %v1061
        %1063 = vmatmul.f32.gmra.mxu0 %v444
        %v1064 = vpop.f32.mrf.mxu0
        %v1065 = vadd.f32 %v952, %v1064
        %1066 = vmatmul.f32.gmra.mxu0 %v445
        %v1067 = vpop.f32.mrf.mxu0
        %v1068 = vadd.f32 %v955, %v1067
        %1069 = vmatmul.f32.gmra.mxu0 %v446
        %v1070 = vpop.f32.mrf.mxu0
        %v1071 = vadd.f32 %v958, %v1070
        %1072 = vmatmul.f32.gmra.mxu0 %v447
        %v1073 = vpop.f32.mrf.mxu0
        %v1074 = vadd.f32 %v961, %v1073
        %1075 = vmatmul.f32.gmra.mxu0 %v448
        %v1076 = vpop.f32.mrf.mxu0
        %v1077 = vadd.f32 %v964, %v1076
        %1078 = vmatmul.f32.gmra.mxu0 %v449
        %v1079 = vpop.f32.mrf.mxu0
        %v1080 = vadd.f32 %v967, %v1079
        %1081 = vmatmul.f32.gmra.mxu0 %v450
        %v1082 = vpop.f32.mrf.mxu0
        %v1083 = vadd.f32 %v970, %v1082
        %1084 = vmatmul.f32.gmra.mxu0 %v451
        %v1085 = vpop.f32.mrf.mxu0
        %v1086 = vadd.f32 %v973, %v1085
        %1087 = vmatmul.f32.gmra.mxu0 %v452
        %v1088 = vpop.f32.mrf.mxu0
        %v1089 = vadd.f32 %v976, %v1088
        %1090 = vmatmul.f32.gmra.mxu0 %v453
        %v1091 = vpop.f32.mrf.mxu0
        %v1092 = vadd.f32 %v979, %v1091
        %1093 = vmatmul.f32.gmra.mxu0 %v454
        %v1094 = vpop.f32.mrf.mxu0
        %v1095 = vadd.f32 %v982, %v1094
        %1096 = vmatmul.f32.gmra.mxu0 %v455
        %v1097 = vpop.f32.mrf.mxu0
        %v1098 = vadd.f32 %v985, %v1097
        %1099 = vmatmul.f32.gmra.mxu0 %v456
        %v1100 = vpop.f32.mrf.mxu0
        %v1101 = vadd.f32 %v988, %v1100
        %1102 = vmatmul.f32.gmra.mxu0 %v457
        %v1103 = vpop.f32.mrf.mxu0
        %v1104 = vadd.f32 %v991, %v1103
        %1105 = vmatmul.f32.gmra.mxu0 %v458
        %v1106 = vpop.f32.mrf.mxu0
        %v1107 = vadd.f32 %v994, %v1106
        %1108 = vmatmul.f32.gmra.mxu0 %v459
        %v1109 = vpop.f32.mrf.mxu0
        %v1110 = vadd.f32 %v997, %v1109
        %1111 = vmatmul.f32.gmra.mxu0 %v460
        %v1112 = vpop.f32.mrf.mxu0
        %v1113 = vadd.f32 %v1000, %v1112
        %1114 = vmatmul.f32.gmra.mxu0 %v461
        %v1115 = vpop.f32.mrf.mxu0
        %v1116 = vadd.f32 %v1003, %v1115
        %1117 = vmatmul.f32.gmra.mxu0 %v462
        %v1118 = vpop.f32.mrf.mxu0
        %v1119 = vadd.f32 %v1006, %v1118
        %1120 = vmatmul.f32.gmra.mxu0 %v463
        %v1121 = vpop.f32.mrf.mxu0
        %v1122 = vadd.f32 %v1009, %v1121
        %1123 = vmatmul.f32.gmra.mxu0 %v464
        %v1124 = vpop.f32.mrf.mxu0
        %v1125 = vadd.f32 %v1012, %v1124
        %1126 = vmatmul.f32.gmra.mxu0 %v465
        %v1127 = vpop.f32.mrf.mxu0
        %v1128 = vadd.f32 %v1015, %v1127
        %1129 = vmatmul.f32.gmra.mxu0 %v466
        %v1130 = vpop.f32.mrf.mxu0
        %v1131 = vadd.f32 %v1018, %v1130
        %1132 = vmatmul.f32.gmra.mxu0 %v467
        %v1133 = vpop.f32.mrf.mxu0
        %v1134 = vadd.f32 %v1021, %v1133
        %1135 = vmatmul.f32.gmra.mxu0 %v468
        %v1136 = vpop.f32.mrf.mxu0
        %v1137 = vadd.f32 %v1024, %v1136
        %1138 = vmatmul.f32.gmra.mxu0 %v469
        %v1139 = vpop.f32.mrf.mxu0
        %v1140 = vadd.f32 %v1027, %v1139
        %1141 = vmatmul.f32.gmra.mxu0 %v470
        %v1142 = vpop.f32.mrf.mxu0
        %v1143 = vadd.f32 %v1030, %v1142
        %1144 = vmatmul.f32.gmra.mxu0 %v471
        %v1145 = vpop.f32.mrf.mxu0
        %v1146 = vadd.f32 %v1033, %v1145
        %1147 = vmatmul.f32.gmra.mxu0 %v472
        %v1148 = vpop.f32.mrf.mxu0
        %v1149 = vadd.f32 %v1036, %v1148
        %1150 = vmatmul.f32.gmra.mxu0 %v473
        %v1151 = vpop.f32.mrf.mxu0
        %v1152 = vadd.f32 %v1039, %v1151
        %1153 = vdwg.mxu0
        %1154 = vmatpush.msra.mxu0 %v730
        %1155 = vmatpush.msra.mxu0 %v729
        %1156 = vmatpush.msra.mxu0 %v728
        %1157 = vmatpush.msra.mxu0 %v727
        %1158 = vmatpush.msra.mxu0 %v726
        %1159 = vmatpush.msra.mxu0 %v725
        %1160 = vmatpush.msra.mxu0 %v724
        %1161 = vmatpush.msra.mxu0 %v723
        %1162 = vmatpush.msra.mxu0 %v722
        %1163 = vmatpush.msra.mxu0 %v721
        %1164 = vmatpush.msra.mxu0 %v720
        %1165 = vmatpush.msra.mxu0 %v719
        %1166 = vmatpush.msra.mxu0 %v718
        %1167 = vmatpush.msra.mxu0 %v717
        %1168 = vmatpush.msra.mxu0 %v716
        %1169 = vmatpush.msra.mxu0 %v715
        %1170 = vmatmul.f32.gmra.mxu0 %v474
        %v1171 = vpop.f32.mrf.mxu0
        %v1172 = vadd.f32 %v1059, %v1171
        %1173 = vmatmul.f32.gmra.mxu0 %v475
        %v1174 = vpop.f32.mrf.mxu0
        %v1175 = vadd.f32 %v1062, %v1174
        %1176 = vmatmul.f32.gmra.mxu0 %v476
        %v1177 = vpop.f32.mrf.mxu0
        %v1178 = vadd.f32 %v1065, %v1177
        %1179 = vmatmul.f32.gmra.mxu0 %v477
        %v1180 = vpop.f32.mrf.mxu0
        %v1181 = vadd.f32 %v1068, %v1180
        %1182 = vmatmul.f32.gmra.mxu0 %v478
        %v1183 = vpop.f32.mrf.mxu0
        %v1184 = vadd.f32 %v1071, %v1183
        %1185 = vmatmul.f32.gmra.mxu0 %v479
        %v1186 = vpop.f32.mrf.mxu0
        %v1187 = vadd.f32 %v1074, %v1186
        %1188 = vmatmul.f32.gmra.mxu0 %v480
        %v1189 = vpop.f32.mrf.mxu0
        %v1190 = vadd.f32 %v1077, %v1189
        %1191 = vmatmul.f32.gmra.mxu0 %v481
        %v1192 = vpop.f32.mrf.mxu0
        %v1193 = vadd.f32 %v1080, %v1192
        %1194 = vmatmul.f32.gmra.mxu0 %v482
        %v1195 = vpop.f32.mrf.mxu0
        %v1196 = vadd.f32 %v1083, %v1195
        %1197 = vmatmul.f32.gmra.mxu0 %v483
        %v1198 = vpop.f32.mrf.mxu0
        %v1199 = vadd.f32 %v1086, %v1198
        %1200 = vmatmul.f32.gmra.mxu0 %v484
        %v1201 = vpop.f32.mrf.mxu0
        %v1202 = vadd.f32 %v1089, %v1201
        %1203 = vmatmul.f32.gmra.mxu0 %v485
        %v1204 = vpop.f32.mrf.mxu0
        %v1205 = vadd.f32 %v1092, %v1204
        %1206 = vmatmul.f32.gmra.mxu0 %v486
        %v1207 = vpop.f32.mrf.mxu0
        %v1208 = vadd.f32 %v1095, %v1207
        %1209 = vmatmul.f32.gmra.mxu0 %v487
        %v1210 = vpop.f32.mrf.mxu0
        %v1211 = vadd.f32 %v1098, %v1210
        %1212 = vmatmul.f32.gmra.mxu0 %v488
        %v1213 = vpop.f32.mrf.mxu0
        %v1214 = vadd.f32 %v1101, %v1213
        %1215 = vmatmul.f32.gmra.mxu0 %v489
        %v1216 = vpop.f32.mrf.mxu0
        %v1217 = vadd.f32 %v1104, %v1216
        %1218 = vmatmul.f32.gmra.mxu0 %v490
        %v1219 = vpop.f32.mrf.mxu0
        %v1220 = vadd.f32 %v1107, %v1219
        %1221 = vmatmul.f32.gmra.mxu0 %v491
        %v1222 = vpop.f32.mrf.mxu0
        %v1223 = vadd.f32 %v1110, %v1222
        %1224 = vmatmul.f32.gmra.mxu0 %v492
        %v1225 = vpop.f32.mrf.mxu0
        %v1226 = vadd.f32 %v1113, %v1225
        %1227 = vmatmul.f32.gmra.mxu0 %v493
        %v1228 = vpop.f32.mrf.mxu0
        %v1229 = vadd.f32 %v1116, %v1228
        %1230 = vmatmul.f32.gmra.mxu0 %v494
        %v1231 = vpop.f32.mrf.mxu0
        %v1232 = vadd.f32 %v1119, %v1231
        %1233 = vmatmul.f32.gmra.mxu0 %v495
        %v1234 = vpop.f32.mrf.mxu0
        %v1235 = vadd.f32 %v1122, %v1234
        %1236 = vmatmul.f32.gmra.mxu0 %v496
        %v1237 = vpop.f32.mrf.mxu0
        %v1238 = vadd.f32 %v1125, %v1237
        %1239 = vmatmul.f32.gmra.mxu0 %v497
        %v1240 = vpop.f32.mrf.mxu0
        %v1241 = vadd.f32 %v1128, %v1240
        %1242 = vmatmul.f32.gmra.mxu0 %v498
        %v1243 = vpop.f32.mrf.mxu0
        %v1244 = vadd.f32 %v1131, %v1243
        %1245 = vmatmul.f32.gmra.mxu0 %v499
        %v1246 = vpop.f32.mrf.mxu0
        %v1247 = vadd.f32 %v1134, %v1246
        %1248 = vmatmul.f32.gmra.mxu0 %v500
        %v1249 = vpop.f32.mrf.mxu0
        %v1250 = vadd.f32 %v1137, %v1249
        %1251 = vmatmul.f32.gmra.mxu0 %v501
        %v1252 = vpop.f32.mrf.mxu0
        %v1253 = vadd.f32 %v1140, %v1252
        %1254 = vmatmul.f32.gmra.mxu0 %v502
        %v1255 = vpop.f32.mrf.mxu0
        %v1256 = vadd.f32 %v1143, %v1255
        %1257 = vmatmul.f32.gmra.mxu0 %v503
        %v1258 = vpop.f32.mrf.mxu0
        %v1259 = vadd.f32 %v1146, %v1258
        %1260 = vmatmul.f32.gmra.mxu0 %v504
        %v1261 = vpop.f32.mrf.mxu0
        %v1262 = vadd.f32 %v1149, %v1261
        %1263 = vmatmul.f32.gmra.mxu0 %v505
        %v1264 = vpop.f32.mrf.mxu0
        %v1265 = vadd.f32 %v1152, %v1264
        %1266 = vdwg.mxu0
        %1267 = vmatpush.msra.mxu0 %v746
        %1268 = vmatpush.msra.mxu0 %v745
        %1269 = vmatpush.msra.mxu0 %v744
        %1270 = vmatpush.msra.mxu0 %v743
        %1271 = vmatpush.msra.mxu0 %v742
        %1272 = vmatpush.msra.mxu0 %v741
        %1273 = vmatpush.msra.mxu0 %v740
        %1274 = vmatpush.msra.mxu0 %v739
        %1275 = vmatpush.msra.mxu0 %v738
        %1276 = vmatpush.msra.mxu0 %v737
        %1277 = vmatpush.msra.mxu0 %v736
        %1278 = vmatpush.msra.mxu0 %v735
        %1279 = vmatpush.msra.mxu0 %v734
        %1280 = vmatpush.msra.mxu0 %v733
        %1281 = vmatpush.msra.mxu0 %v732
        %1282 = vmatpush.msra.mxu0 %v731
        %1283 = vmatmul.f32.gmra.mxu0 %v506
        %v1284 = vpop.f32.mrf.mxu0
        %v1285 = vadd.f32 %v1172, %v1284
        %1286 = vmatmul.f32.gmra.mxu0 %v507
        %v1287 = vpop.f32.mrf.mxu0
        %v1288 = vadd.f32 %v1175, %v1287
        %1289 = vmatmul.f32.gmra.mxu0 %v508
        %v1290 = vpop.f32.mrf.mxu0
        %v1291 = vadd.f32 %v1178, %v1290
        %1292 = vmatmul.f32.gmra.mxu0 %v509
        %v1293 = vpop.f32.mrf.mxu0
        %v1294 = vadd.f32 %v1181, %v1293
        %1295 = vmatmul.f32.gmra.mxu0 %v510
        %v1296 = vpop.f32.mrf.mxu0
        %v1297 = vadd.f32 %v1184, %v1296
        %1298 = vmatmul.f32.gmra.mxu0 %v511
        %v1299 = vpop.f32.mrf.mxu0
        %v1300 = vadd.f32 %v1187, %v1299
        %1301 = vmatmul.f32.gmra.mxu0 %v512
        %v1302 = vpop.f32.mrf.mxu0
        %v1303 = vadd.f32 %v1190, %v1302
        %1304 = vmatmul.f32.gmra.mxu0 %v513
        %v1305 = vpop.f32.mrf.mxu0
        %v1306 = vadd.f32 %v1193, %v1305
        %1307 = vmatmul.f32.gmra.mxu0 %v514
        %v1308 = vpop.f32.mrf.mxu0
        %v1309 = vadd.f32 %v1196, %v1308
        %1310 = vmatmul.f32.gmra.mxu0 %v515
        %v1311 = vpop.f32.mrf.mxu0
        %v1312 = vadd.f32 %v1199, %v1311
        %1313 = vmatmul.f32.gmra.mxu0 %v516
        %v1314 = vpop.f32.mrf.mxu0
        %v1315 = vadd.f32 %v1202, %v1314
        %1316 = vmatmul.f32.gmra.mxu0 %v517
        %v1317 = vpop.f32.mrf.mxu0
        %v1318 = vadd.f32 %v1205, %v1317
        %1319 = vmatmul.f32.gmra.mxu0 %v518
        %v1320 = vpop.f32.mrf.mxu0
        %v1321 = vadd.f32 %v1208, %v1320
        %1322 = vmatmul.f32.gmra.mxu0 %v519
        %v1323 = vpop.f32.mrf.mxu0
        %v1324 = vadd.f32 %v1211, %v1323
        %1325 = vmatmul.f32.gmra.mxu0 %v520
        %v1326 = vpop.f32.mrf.mxu0
        %v1327 = vadd.f32 %v1214, %v1326
        %1328 = vmatmul.f32.gmra.mxu0 %v521
        %v1329 = vpop.f32.mrf.mxu0
        %v1330 = vadd.f32 %v1217, %v1329
        %1331 = vmatmul.f32.gmra.mxu0 %v522
        %v1332 = vpop.f32.mrf.mxu0
        %v1333 = vadd.f32 %v1220, %v1332
        %1334 = vmatmul.f32.gmra.mxu0 %v523
        %v1335 = vpop.f32.mrf.mxu0
        %v1336 = vadd.f32 %v1223, %v1335
        %1337 = vmatmul.f32.gmra.mxu0 %v524
        %v1338 = vpop.f32.mrf.mxu0
        %v1339 = vadd.f32 %v1226, %v1338
        %1340 = vmatmul.f32.gmra.mxu0 %v525
        %v1341 = vpop.f32.mrf.mxu0
        %v1342 = vadd.f32 %v1229, %v1341
        %1343 = vmatmul.f32.gmra.mxu0 %v526
        %v1344 = vpop.f32.mrf.mxu0
        %v1345 = vadd.f32 %v1232, %v1344
        %1346 = vmatmul.f32.gmra.mxu0 %v527
        %v1347 = vpop.f32.mrf.mxu0
        %v1348 = vadd.f32 %v1235, %v1347
        %1349 = vmatmul.f32.gmra.mxu0 %v528
        %v1350 = vpop.f32.mrf.mxu0
        %v1351 = vadd.f32 %v1238, %v1350
        %1352 = vmatmul.f32.gmra.mxu0 %v529
        %v1353 = vpop.f32.mrf.mxu0
        %v1354 = vadd.f32 %v1241, %v1353
        %1355 = vmatmul.f32.gmra.mxu0 %v530
        %v1356 = vpop.f32.mrf.mxu0
        %v1357 = vadd.f32 %v1244, %v1356
        %1358 = vmatmul.f32.gmra.mxu0 %v531
        %v1359 = vpop.f32.mrf.mxu0
        %v1360 = vadd.f32 %v1247, %v1359
        %1361 = vmatmul.f32.gmra.mxu0 %v532
        %v1362 = vpop.f32.mrf.mxu0
        %v1363 = vadd.f32 %v1250, %v1362
        %1364 = vmatmul.f32.gmra.mxu0 %v533
        %v1365 = vpop.f32.mrf.mxu0
        %v1366 = vadd.f32 %v1253, %v1365
        %1367 = vmatmul.f32.gmra.mxu0 %v534
        %v1368 = vpop.f32.mrf.mxu0
        %v1369 = vadd.f32 %v1256, %v1368
        %1370 = vmatmul.f32.gmra.mxu0 %v535
        %v1371 = vpop.f32.mrf.mxu0
        %v1372 = vadd.f32 %v1259, %v1371
        %1373 = vmatmul.f32.gmra.mxu0 %v536
        %v1374 = vpop.f32.mrf.mxu0
        %v1375 = vadd.f32 %v1262, %v1374
        %1376 = vmatmul.f32.gmra.mxu0 %v537
        %v1377 = vpop.f32.mrf.mxu0
        %v1378 = vadd.f32 %v1265, %v1377
        %1379 = vdwg.mxu0
        %1380 = vmatpush.msra.mxu0 %v762
        %1381 = vmatpush.msra.mxu0 %v761
        %1382 = vmatpush.msra.mxu0 %v760
        %1383 = vmatpush.msra.mxu0 %v759
        %1384 = vmatpush.msra.mxu0 %v758
        %1385 = vmatpush.msra.mxu0 %v757
        %1386 = vmatpush.msra.mxu0 %v756
        %1387 = vmatpush.msra.mxu0 %v755
        %1388 = vmatpush.msra.mxu0 %v754
        %1389 = vmatpush.msra.mxu0 %v753
        %1390 = vmatpush.msra.mxu0 %v752
        %1391 = vmatpush.msra.mxu0 %v751
        %1392 = vmatpush.msra.mxu0 %v750
        %1393 = vmatpush.msra.mxu0 %v749
        %1394 = vmatpush.msra.mxu0 %v748
        %1395 = vmatpush.msra.mxu0 %v747
        %1396 = vmatmul.f32.gmra.mxu0 %v538
        %v1397 = vpop.f32.mrf.mxu0
        %v1398 = vadd.f32 %v1285, %v1397
        %1399 = vmatmul.f32.gmra.mxu0 %v539
        %v1400 = vpop.f32.mrf.mxu0
        %v1401 = vadd.f32 %v1288, %v1400
        %1402 = vmatmul.f32.gmra.mxu0 %v540
        %v1403 = vpop.f32.mrf.mxu0
        %v1404 = vadd.f32 %v1291, %v1403
        %1405 = vmatmul.f32.gmra.mxu0 %v541
        %v1406 = vpop.f32.mrf.mxu0
        %v1407 = vadd.f32 %v1294, %v1406
        %1408 = vmatmul.f32.gmra.mxu0 %v542
        %v1409 = vpop.f32.mrf.mxu0
        %v1410 = vadd.f32 %v1297, %v1409
        %1411 = vmatmul.f32.gmra.mxu0 %v543
        %v1412 = vpop.f32.mrf.mxu0
        %v1413 = vadd.f32 %v1300, %v1412
        %1414 = vmatmul.f32.gmra.mxu0 %v544
        %v1415 = vpop.f32.mrf.mxu0
        %v1416 = vadd.f32 %v1303, %v1415
        %1417 = vmatmul.f32.gmra.mxu0 %v545
        %v1418 = vpop.f32.mrf.mxu0
        %v1419 = vadd.f32 %v1306, %v1418
        %1420 = vmatmul.f32.gmra.mxu0 %v546
        %v1421 = vpop.f32.mrf.mxu0
        %v1422 = vadd.f32 %v1309, %v1421
        %1423 = vmatmul.f32.gmra.mxu0 %v547
        %v1424 = vpop.f32.mrf.mxu0
        %v1425 = vadd.f32 %v1312, %v1424
        %1426 = vmatmul.f32.gmra.mxu0 %v548
        %v1427 = vpop.f32.mrf.mxu0
        %v1428 = vadd.f32 %v1315, %v1427
        %1429 = vmatmul.f32.gmra.mxu0 %v549
        %v1430 = vpop.f32.mrf.mxu0
        %v1431 = vadd.f32 %v1318, %v1430
        %1432 = vmatmul.f32.gmra.mxu0 %v550
        %v1433 = vpop.f32.mrf.mxu0
        %v1434 = vadd.f32 %v1321, %v1433
        %1435 = vmatmul.f32.gmra.mxu0 %v551
        %v1436 = vpop.f32.mrf.mxu0
        %v1437 = vadd.f32 %v1324, %v1436
        %1438 = vmatmul.f32.gmra.mxu0 %v552
        %v1439 = vpop.f32.mrf.mxu0
        %v1440 = vadd.f32 %v1327, %v1439
        %1441 = vmatmul.f32.gmra.mxu0 %v553
        %v1442 = vpop.f32.mrf.mxu0
        %v1443 = vadd.f32 %v1330, %v1442
        %1444 = vmatmul.f32.gmra.mxu0 %v554
        %v1445 = vpop.f32.mrf.mxu0
        %v1446 = vadd.f32 %v1333, %v1445
        %1447 = vmatmul.f32.gmra.mxu0 %v555
        %v1448 = vpop.f32.mrf.mxu0
        %v1449 = vadd.f32 %v1336, %v1448
        %1450 = vmatmul.f32.gmra.mxu0 %v556
        %v1451 = vpop.f32.mrf.mxu0
        %v1452 = vadd.f32 %v1339, %v1451
        %1453 = vmatmul.f32.gmra.mxu0 %v557
        %v1454 = vpop.f32.mrf.mxu0
        %v1455 = vadd.f32 %v1342, %v1454
        %1456 = vmatmul.f32.gmra.mxu0 %v558
        %v1457 = vpop.f32.mrf.mxu0
        %v1458 = vadd.f32 %v1345, %v1457
        %1459 = vmatmul.f32.gmra.mxu0 %v559
        %v1460 = vpop.f32.mrf.mxu0
        %v1461 = vadd.f32 %v1348, %v1460
        %1462 = vmatmul.f32.gmra.mxu0 %v560
        %v1463 = vpop.f32.mrf.mxu0
        %v1464 = vadd.f32 %v1351, %v1463
        %1465 = vmatmul.f32.gmra.mxu0 %v561
        %v1466 = vpop.f32.mrf.mxu0
        %v1467 = vadd.f32 %v1354, %v1466
        %1468 = vmatmul.f32.gmra.mxu0 %v562
        %v1469 = vpop.f32.mrf.mxu0
        %v1470 = vadd.f32 %v1357, %v1469
        %1471 = vmatmul.f32.gmra.mxu0 %v563
        %v1472 = vpop.f32.mrf.mxu0
        %v1473 = vadd.f32 %v1360, %v1472
        %1474 = vmatmul.f32.gmra.mxu0 %v564
        %v1475 = vpop.f32.mrf.mxu0
        %v1476 = vadd.f32 %v1363, %v1475
        %1477 = vmatmul.f32.gmra.mxu0 %v565
        %v1478 = vpop.f32.mrf.mxu0
        %v1479 = vadd.f32 %v1366, %v1478
        %1480 = vmatmul.f32.gmra.mxu0 %v566
        %v1481 = vpop.f32.mrf.mxu0
        %v1482 = vadd.f32 %v1369, %v1481
        %1483 = vmatmul.f32.gmra.mxu0 %v567
        %v1484 = vpop.f32.mrf.mxu0
        %v1485 = vadd.f32 %v1372, %v1484
        %1486 = vmatmul.f32.gmra.mxu0 %v568
        %v1487 = vpop.f32.mrf.mxu0
        %v1488 = vadd.f32 %v1375, %v1487
        %1489 = vmatmul.f32.gmra.mxu0 %v569
        %v1490 = vpop.f32.mrf.mxu0
        %v1491 = vadd.f32 %v1378, %v1490
        %1492 = vdwg.mxu0
        %1493 = vmatpush.msra.mxu0 %v778
        %1494 = vmatpush.msra.mxu0 %v777
        %1495 = vmatpush.msra.mxu0 %v776
        %1496 = vmatpush.msra.mxu0 %v775
        %1497 = vmatpush.msra.mxu0 %v774
        %1498 = vmatpush.msra.mxu0 %v773
        %1499 = vmatpush.msra.mxu0 %v772
        %1500 = vmatpush.msra.mxu0 %v771
        %1501 = vmatpush.msra.mxu0 %v770
        %1502 = vmatpush.msra.mxu0 %v769
        %1503 = vmatpush.msra.mxu0 %v768
        %1504 = vmatpush.msra.mxu0 %v767
        %1505 = vmatpush.msra.mxu0 %v766
        %1506 = vmatpush.msra.mxu0 %v765
        %1507 = vmatpush.msra.mxu0 %v764
        %1508 = vmatpush.msra.mxu0 %v763
        %1509 = vmatmul.f32.gmra.mxu0 %v571
        %v1510 = vpop.f32.mrf.mxu0
        %v1511 = vadd.f32 %v1398, %v1510
        %1512 = vmatmul.f32.gmra.mxu0 %v572
        %v1513 = vpop.f32.mrf.mxu0
        %v1514 = vadd.f32 %v1401, %v1513
        %1515 = vmatmul.f32.gmra.mxu0 %v573
        %v1516 = vpop.f32.mrf.mxu0
        %v1517 = vadd.f32 %v1404, %v1516
        %1518 = vmatmul.f32.gmra.mxu0 %v574
        %v1519 = vpop.f32.mrf.mxu0
        %v1520 = vadd.f32 %v1407, %v1519
        %1521 = vmatmul.f32.gmra.mxu0 %v575
        %v1522 = vpop.f32.mrf.mxu0
        %v1523 = vadd.f32 %v1410, %v1522
        %1524 = vmatmul.f32.gmra.mxu0 %v576
        %v1525 = vpop.f32.mrf.mxu0
        %v1526 = vadd.f32 %v1413, %v1525
        %1527 = vmatmul.f32.gmra.mxu0 %v577
        %v1528 = vpop.f32.mrf.mxu0
        %v1529 = vadd.f32 %v1416, %v1528
        %1530 = vmatmul.f32.gmra.mxu0 %v578
        %v1531 = vpop.f32.mrf.mxu0
        %v1532 = vadd.f32 %v1419, %v1531
        %1533 = vmatmul.f32.gmra.mxu0 %v579
        %v1534 = vpop.f32.mrf.mxu0
        %v1535 = vadd.f32 %v1422, %v1534
        %1536 = vmatmul.f32.gmra.mxu0 %v580
        %v1537 = vpop.f32.mrf.mxu0
        %v1538 = vadd.f32 %v1425, %v1537
        %1539 = vmatmul.f32.gmra.mxu0 %v581
        %v1540 = vpop.f32.mrf.mxu0
        %v1541 = vadd.f32 %v1428, %v1540
        %1542 = vmatmul.f32.gmra.mxu0 %v582
        %v1543 = vpop.f32.mrf.mxu0
        %v1544 = vadd.f32 %v1431, %v1543
        %1545 = vmatmul.f32.gmra.mxu0 %v583
        %v1546 = vpop.f32.mrf.mxu0
        %v1547 = vadd.f32 %v1434, %v1546
        %1548 = vmatmul.f32.gmra.mxu0 %v584
        %v1549 = vpop.f32.mrf.mxu0
        %v1550 = vadd.f32 %v1437, %v1549
        %1551 = vmatmul.f32.gmra.mxu0 %v585
        %v1552 = vpop.f32.mrf.mxu0
        %v1553 = vadd.f32 %v1440, %v1552
        %1554 = vmatmul.f32.gmra.mxu0 %v586
        %v1555 = vpop.f32.mrf.mxu0
        %v1556 = vadd.f32 %v1443, %v1555
        %1557 = vmatmul.f32.gmra.mxu0 %v587
        %v1558 = vpop.f32.mrf.mxu0
        %v1559 = vadd.f32 %v1446, %v1558
        %1560 = vmatmul.f32.gmra.mxu0 %v588
        %v1561 = vpop.f32.mrf.mxu0
        %v1562 = vadd.f32 %v1449, %v1561
        %1563 = vmatmul.f32.gmra.mxu0 %v589
        %v1564 = vpop.f32.mrf.mxu0
        %v1565 = vadd.f32 %v1452, %v1564
        %1566 = vmatmul.f32.gmra.mxu0 %v590
        %v1567 = vpop.f32.mrf.mxu0
        %v1568 = vadd.f32 %v1455, %v1567
        %1569 = vmatmul.f32.gmra.mxu0 %v591
        %v1570 = vpop.f32.mrf.mxu0
        %v1571 = vadd.f32 %v1458, %v1570
        %1572 = vmatmul.f32.gmra.mxu0 %v592
        %v1573 = vpop.f32.mrf.mxu0
        %v1574 = vadd.f32 %v1461, %v1573
        %1575 = vmatmul.f32.gmra.mxu0 %v593
        %v1576 = vpop.f32.mrf.mxu0
        %v1577 = vadd.f32 %v1464, %v1576
        %1578 = vmatmul.f32.gmra.mxu0 %v594
        %v1579 = vpop.f32.mrf.mxu0
        %v1580 = vadd.f32 %v1467, %v1579
        %1581 = vmatmul.f32.gmra.mxu0 %v595
        %v1582 = vpop.f32.mrf.mxu0
        %v1583 = vadd.f32 %v1470, %v1582
        %1584 = vmatmul.f32.gmra.mxu0 %v596
        %v1585 = vpop.f32.mrf.mxu0
        %v1586 = vadd.f32 %v1473, %v1585
        %1587 = vmatmul.f32.gmra.mxu0 %v597
        %v1588 = vpop.f32.mrf.mxu0
        %v1589 = vadd.f32 %v1476, %v1588
        %1590 = vmatmul.f32.gmra.mxu0 %v598
        %v1591 = vpop.f32.mrf.mxu0
        %v1592 = vadd.f32 %v1479, %v1591
        %1593 = vmatmul.f32.gmra.mxu0 %v599
        %v1594 = vpop.f32.mrf.mxu0
        %v1595 = vadd.f32 %v1482, %v1594
        %1596 = vmatmul.f32.gmra.mxu0 %v600
        %v1597 = vpop.f32.mrf.mxu0
        %v1598 = vadd.f32 %v1485, %v1597
        %1599 = vmatmul.f32.gmra.mxu0 %v601
        %v1600 = vpop.f32.mrf.mxu0
        %v1601 = vadd.f32 %v1488, %v1600
        %1602 = vmatmul.f32.gmra.mxu0 %v602
        %v1603 = vpop.f32.mrf.mxu0
        %v1604 = vadd.f32 %v1491, %v1603
        %1605 = vdwg.mxu0
        %1606 = vmatpush.msra.mxu0 %v794
        %1607 = vmatpush.msra.mxu0 %v793
        %1608 = vmatpush.msra.mxu0 %v792
        %1609 = vmatpush.msra.mxu0 %v791
        %1610 = vmatpush.msra.mxu0 %v790
        %1611 = vmatpush.msra.mxu0 %v789
        %1612 = vmatpush.msra.mxu0 %v788
        %1613 = vmatpush.msra.mxu0 %v787
        %1614 = vmatpush.msra.mxu0 %v786
        %1615 = vmatpush.msra.mxu0 %v785
        %1616 = vmatpush.msra.mxu0 %v784
        %1617 = vmatpush.msra.mxu0 %v783
        %1618 = vmatpush.msra.mxu0 %v782
        %1619 = vmatpush.msra.mxu0 %v781
        %1620 = vmatpush.msra.mxu0 %v780
        %1621 = vmatpush.msra.mxu0 %v779
        %1622 = vmatmul.f32.gmra.mxu0 %v603
        %v1623 = vpop.f32.mrf.mxu0
        %v1624 = vadd.f32 %v1511, %v1623
        %1625 = vmatmul.f32.gmra.mxu0 %v604
        %v1626 = vpop.f32.mrf.mxu0
        %v1627 = vadd.f32 %v1514, %v1626
        %1628 = vmatmul.f32.gmra.mxu0 %v605
        %v1629 = vpop.f32.mrf.mxu0
        %v1630 = vadd.f32 %v1517, %v1629
        %1631 = vmatmul.f32.gmra.mxu0 %v606
        %v1632 = vpop.f32.mrf.mxu0
        %v1633 = vadd.f32 %v1520, %v1632
        %1634 = vmatmul.f32.gmra.mxu0 %v607
        %v1635 = vpop.f32.mrf.mxu0
        %v1636 = vadd.f32 %v1523, %v1635
        %1637 = vmatmul.f32.gmra.mxu0 %v608
        %v1638 = vpop.f32.mrf.mxu0
        %v1639 = vadd.f32 %v1526, %v1638
        %1640 = vmatmul.f32.gmra.mxu0 %v609
        %v1641 = vpop.f32.mrf.mxu0
        %v1642 = vadd.f32 %v1529, %v1641
        %1643 = vmatmul.f32.gmra.mxu0 %v610
        %v1644 = vpop.f32.mrf.mxu0
        %v1645 = vadd.f32 %v1532, %v1644
        %1646 = vmatmul.f32.gmra.mxu0 %v611
        %v1647 = vpop.f32.mrf.mxu0
        %v1648 = vadd.f32 %v1535, %v1647
        %1649 = vmatmul.f32.gmra.mxu0 %v612
        %v1650 = vpop.f32.mrf.mxu0
        %v1651 = vadd.f32 %v1538, %v1650
        %1652 = vmatmul.f32.gmra.mxu0 %v613
        %v1653 = vpop.f32.mrf.mxu0
        %v1654 = vadd.f32 %v1541, %v1653
        %1655 = vmatmul.f32.gmra.mxu0 %v614
        %v1656 = vpop.f32.mrf.mxu0
        %v1657 = vadd.f32 %v1544, %v1656
        %1658 = vmatmul.f32.gmra.mxu0 %v615
        %v1659 = vpop.f32.mrf.mxu0
        %v1660 = vadd.f32 %v1547, %v1659
        %1661 = vmatmul.f32.gmra.mxu0 %v616
        %v1662 = vpop.f32.mrf.mxu0
        %v1663 = vadd.f32 %v1550, %v1662
        %1664 = vmatmul.f32.gmra.mxu0 %v617
        %v1665 = vpop.f32.mrf.mxu0
        %v1666 = vadd.f32 %v1553, %v1665
        %1667 = vmatmul.f32.gmra.mxu0 %v618
        %v1668 = vpop.f32.mrf.mxu0
        %v1669 = vadd.f32 %v1556, %v1668
        %1670 = vmatmul.f32.gmra.mxu0 %v619
        %v1671 = vpop.f32.mrf.mxu0
        %v1672 = vadd.f32 %v1559, %v1671
        %1673 = vmatmul.f32.gmra.mxu0 %v620
        %v1674 = vpop.f32.mrf.mxu0
        %v1675 = vadd.f32 %v1562, %v1674
        %1676 = vmatmul.f32.gmra.mxu0 %v621
        %v1677 = vpop.f32.mrf.mxu0
        %v1678 = vadd.f32 %v1565, %v1677
        %1679 = vmatmul.f32.gmra.mxu0 %v622
        %v1680 = vpop.f32.mrf.mxu0
        %v1681 = vadd.f32 %v1568, %v1680
        %1682 = vmatmul.f32.gmra.mxu0 %v623
        %v1683 = vpop.f32.mrf.mxu0
        %v1684 = vadd.f32 %v1571, %v1683
        %1685 = vmatmul.f32.gmra.mxu0 %v624
        %v1686 = vpop.f32.mrf.mxu0
        %v1687 = vadd.f32 %v1574, %v1686
        %1688 = vmatmul.f32.gmra.mxu0 %v625
        %v1689 = vpop.f32.mrf.mxu0
        %v1690 = vadd.f32 %v1577, %v1689
        %1691 = vmatmul.f32.gmra.mxu0 %v626
        %v1692 = vpop.f32.mrf.mxu0
        %v1693 = vadd.f32 %v1580, %v1692
        %1694 = vmatmul.f32.gmra.mxu0 %v627
        %v1695 = vpop.f32.mrf.mxu0
        %v1696 = vadd.f32 %v1583, %v1695
        %1697 = vmatmul.f32.gmra.mxu0 %v628
        %v1698 = vpop.f32.mrf.mxu0
        %v1699 = vadd.f32 %v1586, %v1698
        %1700 = vmatmul.f32.gmra.mxu0 %v629
        %v1701 = vpop.f32.mrf.mxu0
        %v1702 = vadd.f32 %v1589, %v1701
        %1703 = vmatmul.f32.gmra.mxu0 %v630
        %v1704 = vpop.f32.mrf.mxu0
        %v1705 = vadd.f32 %v1592, %v1704
        %1706 = vmatmul.f32.gmra.mxu0 %v631
        %v1707 = vpop.f32.mrf.mxu0
        %v1708 = vadd.f32 %v1595, %v1707
        %1709 = vmatmul.f32.gmra.mxu0 %v632
        %v1710 = vpop.f32.mrf.mxu0
        %v1711 = vadd.f32 %v1598, %v1710
        %1712 = vmatmul.f32.gmra.mxu0 %v633
        %v1713 = vpop.f32.mrf.mxu0
        %v1714 = vadd.f32 %v1601, %v1713
        %1715 = vmatmul.f32.gmra.mxu0 %v634
        %v1716 = vpop.f32.mrf.mxu0
        %v1717 = vadd.f32 %v1604, %v1716
        %1718 = vdwg.mxu0
        %1719 = vmatpush.msra.mxu0 %v810
        %1720 = vmatpush.msra.mxu0 %v809
        %1721 = vmatpush.msra.mxu0 %v808
        %1722 = vmatpush.msra.mxu0 %v807
        %1723 = vmatpush.msra.mxu0 %v806
        %1724 = vmatpush.msra.mxu0 %v805
        %1725 = vmatpush.msra.mxu0 %v804
        %1726 = vmatpush.msra.mxu0 %v803
        %1727 = vmatpush.msra.mxu0 %v802
        %1728 = vmatpush.msra.mxu0 %v801
        %1729 = vmatpush.msra.mxu0 %v800
        %1730 = vmatpush.msra.mxu0 %v799
        %1731 = vmatpush.msra.mxu0 %v798
        %1732 = vmatpush.msra.mxu0 %v797
        %1733 = vmatpush.msra.mxu0 %v796
        %1734 = vmatpush.msra.mxu0 %v795
        %1735 = vmatmul.f32.gmra.mxu0 %v635
        %v1736 = vpop.f32.mrf.mxu0
        %v1737 = vadd.f32 %v1624, %v1736
        %1738 = vmatmul.f32.gmra.mxu0 %v636
        %v1739 = vpop.f32.mrf.mxu0
        %v1740 = vadd.f32 %v1627, %v1739
        %1741 = vmatmul.f32.gmra.mxu0 %v637
        %v1742 = vpop.f32.mrf.mxu0
        %v1743 = vadd.f32 %v1630, %v1742
        %1744 = vmatmul.f32.gmra.mxu0 %v638
        %v1745 = vpop.f32.mrf.mxu0
        %v1746 = vadd.f32 %v1633, %v1745
        %1747 = vmatmul.f32.gmra.mxu0 %v639
        %v1748 = vpop.f32.mrf.mxu0
        %v1749 = vadd.f32 %v1636, %v1748
        %1750 = vmatmul.f32.gmra.mxu0 %v640
        %v1751 = vpop.f32.mrf.mxu0
        %v1752 = vadd.f32 %v1639, %v1751
        %1753 = vmatmul.f32.gmra.mxu0 %v641
        %v1754 = vpop.f32.mrf.mxu0
        %v1755 = vadd.f32 %v1642, %v1754
        %1756 = vmatmul.f32.gmra.mxu0 %v642
        %v1757 = vpop.f32.mrf.mxu0
        %v1758 = vadd.f32 %v1645, %v1757
        %1759 = vmatmul.f32.gmra.mxu0 %v643
        %v1760 = vpop.f32.mrf.mxu0
        %v1761 = vadd.f32 %v1648, %v1760
        %1762 = vmatmul.f32.gmra.mxu0 %v644
        %v1763 = vpop.f32.mrf.mxu0
        %v1764 = vadd.f32 %v1651, %v1763
        %1765 = vmatmul.f32.gmra.mxu0 %v645
        %v1766 = vpop.f32.mrf.mxu0
        %v1767 = vadd.f32 %v1654, %v1766
        %1768 = vmatmul.f32.gmra.mxu0 %v646
        %v1769 = vpop.f32.mrf.mxu0
        %v1770 = vadd.f32 %v1657, %v1769
        %1771 = vmatmul.f32.gmra.mxu0 %v647
        %v1772 = vpop.f32.mrf.mxu0
        %v1773 = vadd.f32 %v1660, %v1772
        %1774 = vmatmul.f32.gmra.mxu0 %v648
        %v1775 = vpop.f32.mrf.mxu0
        %v1776 = vadd.f32 %v1663, %v1775
        %1777 = vmatmul.f32.gmra.mxu0 %v649
        %v1778 = vpop.f32.mrf.mxu0
        %v1779 = vadd.f32 %v1666, %v1778
        %1780 = vmatmul.f32.gmra.mxu0 %v650
        %v1781 = vpop.f32.mrf.mxu0
        %v1782 = vadd.f32 %v1669, %v1781
        %1783 = vmatmul.f32.gmra.mxu0 %v651
        %v1784 = vpop.f32.mrf.mxu0
        %v1785 = vadd.f32 %v1672, %v1784
        %1786 = vmatmul.f32.gmra.mxu0 %v652
        %v1787 = vpop.f32.mrf.mxu0
        %v1788 = vadd.f32 %v1675, %v1787
        %1789 = vmatmul.f32.gmra.mxu0 %v653
        %v1790 = vpop.f32.mrf.mxu0
        %v1791 = vadd.f32 %v1678, %v1790
        %1792 = vmatmul.f32.gmra.mxu0 %v654
        %v1793 = vpop.f32.mrf.mxu0
        %v1794 = vadd.f32 %v1681, %v1793
        %1795 = vmatmul.f32.gmra.mxu0 %v655
        %v1796 = vpop.f32.mrf.mxu0
        %v1797 = vadd.f32 %v1684, %v1796
        %1798 = vmatmul.f32.gmra.mxu0 %v656
        %v1799 = vpop.f32.mrf.mxu0
        %v1800 = vadd.f32 %v1687, %v1799
        %1801 = vmatmul.f32.gmra.mxu0 %v657
        %v1802 = vpop.f32.mrf.mxu0
        %v1803 = vadd.f32 %v1690, %v1802
        %1804 = vmatmul.f32.gmra.mxu0 %v658
        %v1805 = vpop.f32.mrf.mxu0
        %v1806 = vadd.f32 %v1693, %v1805
        %1807 = vmatmul.f32.gmra.mxu0 %v659
        %v1808 = vpop.f32.mrf.mxu0
        %v1809 = vadd.f32 %v1696, %v1808
        %1810 = vmatmul.f32.gmra.mxu0 %v660
        %v1811 = vpop.f32.mrf.mxu0
        %v1812 = vadd.f32 %v1699, %v1811
        %1813 = vmatmul.f32.gmra.mxu0 %v661
        %v1814 = vpop.f32.mrf.mxu0
        %v1815 = vadd.f32 %v1702, %v1814
        %1816 = vmatmul.f32.gmra.mxu0 %v662
        %v1817 = vpop.f32.mrf.mxu0
        %v1818 = vadd.f32 %v1705, %v1817
        %1819 = vmatmul.f32.gmra.mxu0 %v663
        %v1820 = vpop.f32.mrf.mxu0
        %v1821 = vadd.f32 %v1708, %v1820
        %1822 = vmatmul.f32.gmra.mxu0 %v664
        %v1823 = vpop.f32.mrf.mxu0
        %v1824 = vadd.f32 %v1711, %v1823
        %1825 = vmatmul.f32.gmra.mxu0 %v665
        %v1826 = vpop.f32.mrf.mxu0
        %v1827 = vadd.f32 %v1714, %v1826
        %1828 = vmatmul.f32.gmra.mxu0 %v666
        %v1829 = vpop.f32.mrf.mxu0
        %v1830 = vadd.f32 %v1717, %v1829
        %1831 = vdwg.mxu0
        %vm1832 = vcmp.gt.f32.partialorder %v1737, 0.0
        %vm1833 = vcmp.gt.f32.partialorder %v1740, 0.0
        %vm1834 = vcmp.gt.f32.partialorder %v1743, 0.0
        %vm1835 = vcmp.gt.f32.partialorder %v1746, 0.0
        %vm1836 = vcmp.gt.f32.partialorder %v1749, 0.0
        %vm1837 = vcmp.gt.f32.partialorder %v1752, 0.0
        %vm1838 = vcmp.gt.f32.partialorder %v1755, 0.0
        %vm1839 = vcmp.gt.f32.partialorder %v1758, 0.0
        %vm1840 = vcmp.gt.f32.partialorder %v1761, 0.0
        %vm1841 = vcmp.gt.f32.partialorder %v1764, 0.0
        %vm1842 = vcmp.gt.f32.partialorder %v1767, 0.0
        %vm1843 = vcmp.gt.f32.partialorder %v1770, 0.0
        %vm1844 = vcmp.gt.f32.partialorder %v1773, 0.0
        %vm1845 = vcmp.gt.f32.partialorder %v1776, 0.0
        %vm1846 = vcmp.gt.f32.partialorder %v1779, 0.0
        %vm1847 = vcmp.gt.f32.partialorder %v1782, 0.0
        %vm1848 = vcmp.gt.f32.partialorder %v1785, 0.0
        %vm1849 = vcmp.gt.f32.partialorder %v1788, 0.0
        %vm1850 = vcmp.gt.f32.partialorder %v1791, 0.0
        %vm1851 = vcmp.gt.f32.partialorder %v1794, 0.0
        %vm1852 = vcmp.gt.f32.partialorder %v1797, 0.0
        %vm1853 = vcmp.gt.f32.partialorder %v1800, 0.0
        %vm1854 = vcmp.gt.f32.partialorder %v1803, 0.0
        %vm1855 = vcmp.gt.f32.partialorder %v1806, 0.0
        %vm1856 = vcmp.gt.f32.partialorder %v1809, 0.0
        %vm1857 = vcmp.gt.f32.partialorder %v1812, 0.0
        %vm1858 = vcmp.gt.f32.partialorder %v1815, 0.0
        %vm1859 = vcmp.gt.f32.partialorder %v1818, 0.0
        %vm1860 = vcmp.gt.f32.partialorder %v1821, 0.0
        %vm1861 = vcmp.gt.f32.partialorder %v1824, 0.0
        %vm1862 = vcmp.gt.f32.partialorder %v1827, 0.0
        %vm1863 = vcmp.gt.f32.partialorder %v1830, 0.0
        %v1864 = vmul.f32 %v1737, 0.01
        %v1865 = vmul.f32 %v1740, 0.01
        %v1866 = vmul.f32 %v1743, 0.01
        %v1867 = vmul.f32 %v1746, 0.01
        %v1868 = vmul.f32 %v1749, 0.01
        %v1869 = vmul.f32 %v1752, 0.01
        %v1870 = vmul.f32 %v1755, 0.01
        %v1871 = vmul.f32 %v1758, 0.01
        %v1872 = vmul.f32 %v1761, 0.01
        %v1873 = vmul.f32 %v1764, 0.01
        %v1874 = vmul.f32 %v1767, 0.01
        %v1875 = vmul.f32 %v1770, 0.01
        %v1876 = vmul.f32 %v1773, 0.01
        %v1877 = vmul.f32 %v1776, 0.01
        %v1878 = vmul.f32 %v1779, 0.01
        %v1879 = vmul.f32 %v1782, 0.01
        %v1880 = vmul.f32 %v1785, 0.01
        %v1881 = vmul.f32 %v1788, 0.01
        %v1882 = vmul.f32 %v1791, 0.01
        %v1883 = vmul.f32 %v1794, 0.01
        %v1884 = vmul.f32 %v1797, 0.01
        %v1885 = vmul.f32 %v1800, 0.01
        %v1886 = vmul.f32 %v1803, 0.01
        %v1887 = vmul.f32 %v1806, 0.01
        %v1888 = vmul.f32 %v1809, 0.01
        %v1889 = vmul.f32 %v1812, 0.01
        %v1890 = vmul.f32 %v1815, 0.01
        %v1891 = vmul.f32 %v1818, 0.01
        %v1892 = vmul.f32 %v1821, 0.01
        %v1893 = vmul.f32 %v1824, 0.01
        %v1894 = vmul.f32 %v1827, 0.01
        %v1895 = vmul.f32 %v1830, 0.01
        %v1896 = vsel %vm1832, %v1737, %v1864
        %v1897 = vsel %vm1833, %v1740, %v1865
        %v1898 = vsel %vm1834, %v1743, %v1866
        %v1899 = vsel %vm1835, %v1746, %v1867
        %v1900 = vsel %vm1836, %v1749, %v1868
        %v1901 = vsel %vm1837, %v1752, %v1869
        %v1902 = vsel %vm1838, %v1755, %v1870
        %v1903 = vsel %vm1839, %v1758, %v1871
        %v1904 = vsel %vm1840, %v1761, %v1872
        %v1905 = vsel %vm1841, %v1764, %v1873
        %v1906 = vsel %vm1842, %v1767, %v1874
        %v1907 = vsel %vm1843, %v1770, %v1875
        %v1908 = vsel %vm1844, %v1773, %v1876
        %v1909 = vsel %vm1845, %v1776, %v1877
        %v1910 = vsel %vm1846, %v1779, %v1878
        %v1911 = vsel %vm1847, %v1782, %v1879
        %v1912 = vsel %vm1848, %v1785, %v1880
        %v1913 = vsel %vm1849, %v1788, %v1881
        %v1914 = vsel %vm1850, %v1791, %v1882
        %v1915 = vsel %vm1851, %v1794, %v1883
        %v1916 = vsel %vm1852, %v1797, %v1884
        %v1917 = vsel %vm1853, %v1800, %v1885
        %v1918 = vsel %vm1854, %v1803, %v1886
        %v1919 = vsel %vm1855, %v1806, %v1887
        %v1920 = vsel %vm1856, %v1809, %v1888
        %v1921 = vsel %vm1857, %v1812, %v1889
        %v1922 = vsel %vm1858, %v1815, %v1890
        %v1923 = vsel %vm1859, %v1818, %v1891
        %v1924 = vsel %vm1860, %v1821, %v1892
        %v1925 = vsel %vm1861, %v1824, %v1893
        %v1926 = vsel %vm1862, %v1827, %v1894
        %v1927 = vsel %vm1863, %v1830, %v1895
        %s1928 = scalar_lea.vmem [#allocation2], 456
        %1929 = vst [vmem:[%s1928 + $0x1] sm:$0xff] %v1896
        %1930 = vst [vmem:[%s1928 + $0x9] sm:$0xff] %v1897
        %1931 = vst [vmem:[%s1928 + $0x19] sm:$0xff] %v1898
        %1932 = vst [vmem:[%s1928 + $0x21] sm:$0xff] %v1899
        %1933 = vst [vmem:[%s1928 + $0x31] sm:$0xff] %v1900
        %1934 = vst [vmem:[%s1928 + $0x39] sm:$0xff] %v1901
        %1935 = vst [vmem:[%s1928 + $0x49] sm:$0xff] %v1902
        %1936 = vst [vmem:[%s1928 + $0x51] sm:$0xff] %v1903
        %1937 = vst [vmem:[%s1928 + $0x61] sm:$0xff] %v1904
        %1938 = vst [vmem:[%s1928 + $0x69] sm:$0xff] %v1905
        %1939 = vst [vmem:[%s1928 + $0x79] sm:$0xff] %v1906
        %1940 = vst [vmem:[%s1928 + $0x81] sm:$0xff] %v1907
        %1941 = vst [vmem:[%s1928 + $0x91] sm:$0xff] %v1908
        %1942 = vst [vmem:[%s1928 + $0x99] sm:$0xff] %v1909
        %1943 = vst [vmem:[%s1928 + $0xa9] sm:$0xff] %v1910
        %1944 = vst [vmem:[%s1928 + $0xb1] sm:$0xff] %v1911
        %1945 = vst [vmem:[%s1928 + $0xc1] sm:$0xff] %v1912
        %1946 = vst [vmem:[%s1928 + $0xc9] sm:$0xff] %v1913
        %1947 = vst [vmem:[%s1928 + $0xd9] sm:$0xff] %v1914
        %1948 = vst [vmem:[%s1928 + $0xe1] sm:$0xff] %v1915
        %1949 = vst [vmem:[%s1928 + $0xf1] sm:$0xff] %v1916
        %1950 = vst [vmem:[%s1928 + $0xf9] sm:$0xff] %v1917
        %1951 = vst [vmem:[%s1928 + $0x109] sm:$0xff] %v1918
        %1952 = vst [vmem:[%s1928 + $0x111] sm:$0xff] %v1919
        %1953 = vst [vmem:[%s1928 + $0x121] sm:$0xff] %v1920
        %1954 = vst [vmem:[%s1928 + $0x129] sm:$0xff] %v1921
        %1955 = vst [vmem:[%s1928 + $0x139] sm:$0xff] %v1922
        %1956 = vst [vmem:[%s1928 + $0x141] sm:$0xff] %v1923
        %1957 = vst [vmem:[%s1928 + $0x151] sm:$0xff] %v1924
        %1958 = vst [vmem:[%s1928 + $0x159] sm:$0xff] %v1925
        %1959 = vst [vmem:[%s1928 + $0x169] sm:$0xff] %v1926
        %1960 = vst [vmem:[%s1928 + $0x171] sm:$0xff] %v1927
        %s1961 = scalar_lea.vmem [#allocation2], 432
        %v1962 = vld [vmem:[%s1961] sm:$0xff]
        %v1963 = vld [vmem:[%s1961 + $0x8] sm:$0xff]
        %v1964 = vld [vmem:[%s1961 + $0x18] sm:$0xff]
        %v1965 = vld [vmem:[%s1961 + $0x20] sm:$0xff]
        %v1966 = vld [vmem:[%s1961 + $0x30] sm:$0xff]
        %v1967 = vld [vmem:[%s1961 + $0x38] sm:$0xff]
        %v1968 = vld [vmem:[%s1961 + $0x48] sm:$0xff]
        %v1969 = vld [vmem:[%s1961 + $0x50] sm:$0xff]
        %v1970 = vld [vmem:[%s1961 + $0x60] sm:$0xff]
        %v1971 = vld [vmem:[%s1961 + $0x68] sm:$0xff]
        %v1972 = vld [vmem:[%s1961 + $0x78] sm:$0xff]
        %v1973 = vld [vmem:[%s1961 + $0x80] sm:$0xff]
        %v1974 = vld [vmem:[%s1961 + $0x90] sm:$0xff]
        %v1975 = vld [vmem:[%s1961 + $0x98] sm:$0xff]
        %v1976 = vld [vmem:[%s1961 + $0xa8] sm:$0xff]
        %v1977 = vld [vmem:[%s1961 + $0xb0] sm:$0xff]
        %v1978 = vld [vmem:[%s1961 + $0xc0] sm:$0xff]
        %v1979 = vld [vmem:[%s1961 + $0xc8] sm:$0xff]
        %v1980 = vld [vmem:[%s1961 + $0xd8] sm:$0xff]
        %v1981 = vld [vmem:[%s1961 + $0xe0] sm:$0xff]
        %v1982 = vld [vmem:[%s1961 + $0xf0] sm:$0xff]
        %v1983 = vld [vmem:[%s1961 + $0xf8] sm:$0xff]
        %v1984 = vld [vmem:[%s1961 + $0x108] sm:$0xff]
        %v1985 = vld [vmem:[%s1961 + $0x110] sm:$0xff]
        %v1986 = vld [vmem:[%s1961 + $0x120] sm:$0xff]
        %v1987 = vld [vmem:[%s1961 + $0x128] sm:$0xff]
        %v1988 = vld [vmem:[%s1961 + $0x138] sm:$0xff]
        %v1989 = vld [vmem:[%s1961 + $0x140] sm:$0xff]
        %v1990 = vld [vmem:[%s1961 + $0x150] sm:$0xff]
        %v1991 = vld [vmem:[%s1961 + $0x158] sm:$0xff]
        %v1992 = vld [vmem:[%s1961 + $0x168] sm:$0xff]
        %v1993 = vld [vmem:[%s1961 + $0x170] sm:$0xff]
        %v1994 = vld [vmem:[%s1961 + $0x1] sm:$0xff]
        %v1995 = vld [vmem:[%s1961 + $0x9] sm:$0xff]
        %v1996 = vld [vmem:[%s1961 + $0x19] sm:$0xff]
        %v1997 = vld [vmem:[%s1961 + $0x21] sm:$0xff]
        %v1998 = vld [vmem:[%s1961 + $0x31] sm:$0xff]
        %v1999 = vld [vmem:[%s1961 + $0x39] sm:$0xff]
        %v2000 = vld [vmem:[%s1961 + $0x49] sm:$0xff]
        %v2001 = vld [vmem:[%s1961 + $0x51] sm:$0xff]
        %v2002 = vld [vmem:[%s1961 + $0x61] sm:$0xff]
        %v2003 = vld [vmem:[%s1961 + $0x69] sm:$0xff]
        %v2004 = vld [vmem:[%s1961 + $0x79] sm:$0xff]
        %v2005 = vld [vmem:[%s1961 + $0x81] sm:$0xff]
        %v2006 = vld [vmem:[%s1961 + $0x91] sm:$0xff]
        %v2007 = vld [vmem:[%s1961 + $0x99] sm:$0xff]
        %v2008 = vld [vmem:[%s1961 + $0xa9] sm:$0xff]
        %v2009 = vld [vmem:[%s1961 + $0xb1] sm:$0xff]
        %v2010 = vld [vmem:[%s1961 + $0xc1] sm:$0xff]
        %v2011 = vld [vmem:[%s1961 + $0xc9] sm:$0xff]
        %v2012 = vld [vmem:[%s1961 + $0xd9] sm:$0xff]
        %v2013 = vld [vmem:[%s1961 + $0xe1] sm:$0xff]
        %v2014 = vld [vmem:[%s1961 + $0xf1] sm:$0xff]
        %v2015 = vld [vmem:[%s1961 + $0xf9] sm:$0xff]
        %v2016 = vld [vmem:[%s1961 + $0x109] sm:$0xff]
        %v2017 = vld [vmem:[%s1961 + $0x111] sm:$0xff]
        %v2018 = vld [vmem:[%s1961 + $0x121] sm:$0xff]
        %v2019 = vld [vmem:[%s1961 + $0x129] sm:$0xff]
        %v2020 = vld [vmem:[%s1961 + $0x139] sm:$0xff]
        %v2021 = vld [vmem:[%s1961 + $0x141] sm:$0xff]
        %v2022 = vld [vmem:[%s1961 + $0x151] sm:$0xff]
        %v2023 = vld [vmem:[%s1961 + $0x159] sm:$0xff]
        %v2024 = vld [vmem:[%s1961 + $0x169] sm:$0xff]
        %v2025 = vld [vmem:[%s1961 + $0x171] sm:$0xff]
        %v2026 = vld [vmem:[%s1961 + $0x2] sm:$0xff]
        %v2027 = vld [vmem:[%s1961 + $0xa] sm:$0xff]
        %v2028 = vld [vmem:[%s1961 + $0x1a] sm:$0xff]
        %v2029 = vld [vmem:[%s1961 + $0x22] sm:$0xff]
        %v2030 = vld [vmem:[%s1961 + $0x32] sm:$0xff]
        %v2031 = vld [vmem:[%s1961 + $0x3a] sm:$0xff]
        %v2032 = vld [vmem:[%s1961 + $0x4a] sm:$0xff]
        %v2033 = vld [vmem:[%s1961 + $0x52] sm:$0xff]
        %v2034 = vld [vmem:[%s1961 + $0x62] sm:$0xff]
        %v2035 = vld [vmem:[%s1961 + $0x6a] sm:$0xff]
        %v2036 = vld [vmem:[%s1961 + $0x7a] sm:$0xff]
        %v2037 = vld [vmem:[%s1961 + $0x82] sm:$0xff]
        %v2038 = vld [vmem:[%s1961 + $0x92] sm:$0xff]
        %v2039 = vld [vmem:[%s1961 + $0x9a] sm:$0xff]
        %v2040 = vld [vmem:[%s1961 + $0xaa] sm:$0xff]
        %v2041 = vld [vmem:[%s1961 + $0xb2] sm:$0xff]
        %v2042 = vld [vmem:[%s1961 + $0xc2] sm:$0xff]
        %v2043 = vld [vmem:[%s1961 + $0xca] sm:$0xff]
        %v2044 = vld [vmem:[%s1961 + $0xda] sm:$0xff]
        %v2045 = vld [vmem:[%s1961 + $0xe2] sm:$0xff]
        %v2046 = vld [vmem:[%s1961 + $0xf2] sm:$0xff]
        %v2047 = vld [vmem:[%s1961 + $0xfa] sm:$0xff]
        %v2048 = vld [vmem:[%s1961 + $0x10a] sm:$0xff]
        %v2049 = vld [vmem:[%s1961 + $0x112] sm:$0xff]
        %v2050 = vld [vmem:[%s1961 + $0x122] sm:$0xff]
        %v2051 = vld [vmem:[%s1961 + $0x12a] sm:$0xff]
        %v2052 = vld [vmem:[%s1961 + $0x13a] sm:$0xff]
        %v2053 = vld [vmem:[%s1961 + $0x142] sm:$0xff]
        %v2054 = vld [vmem:[%s1961 + $0x152] sm:$0xff]
        %v2055 = vld [vmem:[%s1961 + $0x15a] sm:$0xff]
        %v2056 = vld [vmem:[%s1961 + $0x16a] sm:$0xff]
        %v2057 = vld [vmem:[%s1961 + $0x172] sm:$0xff]
        %v2058 = vld [vmem:[%s1928] sm:$0xff]
        %v2059 = vld [vmem:[%s1928 + $0x8] sm:$0xff]
        %v2060 = vld [vmem:[%s1928 + $0x18] sm:$0xff]
        %v2061 = vld [vmem:[%s1928 + $0x20] sm:$0xff]
        %v2062 = vld [vmem:[%s1928 + $0x30] sm:$0xff]
        %v2063 = vld [vmem:[%s1928 + $0x38] sm:$0xff]
        %v2064 = vld [vmem:[%s1928 + $0x48] sm:$0xff]
        %v2065 = vld [vmem:[%s1928 + $0x50] sm:$0xff]
        %v2066 = vld [vmem:[%s1928 + $0x60] sm:$0xff]
        %v2067 = vld [vmem:[%s1928 + $0x68] sm:$0xff]
        %v2068 = vld [vmem:[%s1928 + $0x78] sm:$0xff]
        %v2069 = vld [vmem:[%s1928 + $0x80] sm:$0xff]
        %v2070 = vld [vmem:[%s1928 + $0x90] sm:$0xff]
        %v2071 = vld [vmem:[%s1928 + $0x98] sm:$0xff]
        %v2072 = vld [vmem:[%s1928 + $0xa8] sm:$0xff]
        %v2073 = vld [vmem:[%s1928 + $0xb0] sm:$0xff]
        %v2074 = vld [vmem:[%s1928 + $0xc0] sm:$0xff]
        %v2075 = vld [vmem:[%s1928 + $0xc8] sm:$0xff]
        %v2076 = vld [vmem:[%s1928 + $0xd8] sm:$0xff]
        %v2077 = vld [vmem:[%s1928 + $0xe0] sm:$0xff]
        %v2078 = vld [vmem:[%s1928 + $0xf0] sm:$0xff]
        %v2079 = vld [vmem:[%s1928 + $0xf8] sm:$0xff]
        %v2080 = vld [vmem:[%s1928 + $0x108] sm:$0xff]
        %v2081 = vld [vmem:[%s1928 + $0x110] sm:$0xff]
        %v2082 = vld [vmem:[%s1928 + $0x120] sm:$0xff]
        %v2083 = vld [vmem:[%s1928 + $0x128] sm:$0xff]
        %v2084 = vld [vmem:[%s1928 + $0x138] sm:$0xff]
        %v2085 = vld [vmem:[%s1928 + $0x140] sm:$0xff]
        %v2086 = vld [vmem:[%s1928 + $0x150] sm:$0xff]
        %v2087 = vld [vmem:[%s1928 + $0x158] sm:$0xff]
        %v2088 = vld [vmem:[%s1928 + $0x168] sm:$0xff]
        %v2089 = vld [vmem:[%s1928 + $0x170] sm:$0xff]
        %v2090 = vld [vmem:[%s1928 + $0x1] sm:$0xff]
        %v2091 = vld [vmem:[%s1928 + $0x9] sm:$0xff]
        %v2092 = vld [vmem:[%s1928 + $0x19] sm:$0xff]
        %v2093 = vld [vmem:[%s1928 + $0x21] sm:$0xff]
        %v2094 = vld [vmem:[%s1928 + $0x31] sm:$0xff]
        %v2095 = vld [vmem:[%s1928 + $0x39] sm:$0xff]
        %v2096 = vld [vmem:[%s1928 + $0x49] sm:$0xff]
        %v2097 = vld [vmem:[%s1928 + $0x51] sm:$0xff]
        %v2098 = vld [vmem:[%s1928 + $0x61] sm:$0xff]
        %v2099 = vld [vmem:[%s1928 + $0x69] sm:$0xff]
        %v2100 = vld [vmem:[%s1928 + $0x79] sm:$0xff]
        %v2101 = vld [vmem:[%s1928 + $0x81] sm:$0xff]
        %v2102 = vld [vmem:[%s1928 + $0x91] sm:$0xff]
        %v2103 = vld [vmem:[%s1928 + $0x99] sm:$0xff]
        %v2104 = vld [vmem:[%s1928 + $0xa9] sm:$0xff]
        %v2105 = vld [vmem:[%s1928 + $0xb1] sm:$0xff]
        %v2106 = vld [vmem:[%s1928 + $0xc1] sm:$0xff]
        %v2107 = vld [vmem:[%s1928 + $0xc9] sm:$0xff]
        %v2108 = vld [vmem:[%s1928 + $0xd9] sm:$0xff]
        %v2109 = vld [vmem:[%s1928 + $0xe1] sm:$0xff]
        %v2110 = vld [vmem:[%s1928 + $0xf1] sm:$0xff]
        %v2111 = vld [vmem:[%s1928 + $0xf9] sm:$0xff]
        %v2112 = vld [vmem:[%s1928 + $0x109] sm:$0xff]
        %v2113 = vld [vmem:[%s1928 + $0x111] sm:$0xff]
        %v2114 = vld [vmem:[%s1928 + $0x121] sm:$0xff]
        %v2115 = vld [vmem:[%s1928 + $0x129] sm:$0xff]
        %v2116 = vld [vmem:[%s1928 + $0x139] sm:$0xff]
        %v2117 = vld [vmem:[%s1928 + $0x141] sm:$0xff]
        %v2118 = vld [vmem:[%s1928 + $0x151] sm:$0xff]
        %v2119 = vld [vmem:[%s1928 + $0x159] sm:$0xff]
        %v2120 = vld [vmem:[%s1928 + $0x169] sm:$0xff]
        %v2121 = vld [vmem:[%s1928 + $0x171] sm:$0xff]
        %v2122 = vld [vmem:[%s1928 + $0x2] sm:$0xff]
        %v2123 = vld [vmem:[%s1928 + $0xa] sm:$0xff]
        %v2124 = vld [vmem:[%s1928 + $0x1a] sm:$0xff]
        %v2125 = vld [vmem:[%s1928 + $0x22] sm:$0xff]
        %v2126 = vld [vmem:[%s1928 + $0x32] sm:$0xff]
        %v2127 = vld [vmem:[%s1928 + $0x3a] sm:$0xff]
        %v2128 = vld [vmem:[%s1928 + $0x4a] sm:$0xff]
        %v2129 = vld [vmem:[%s1928 + $0x52] sm:$0xff]
        %v2130 = vld [vmem:[%s1928 + $0x62] sm:$0xff]
        %v2131 = vld [vmem:[%s1928 + $0x6a] sm:$0xff]
        %v2132 = vld [vmem:[%s1928 + $0x7a] sm:$0xff]
        %v2133 = vld [vmem:[%s1928 + $0x82] sm:$0xff]
        %v2134 = vld [vmem:[%s1928 + $0x92] sm:$0xff]
        %v2135 = vld [vmem:[%s1928 + $0x9a] sm:$0xff]
        %v2136 = vld [vmem:[%s1928 + $0xaa] sm:$0xff]
        %v2137 = vld [vmem:[%s1928 + $0xb2] sm:$0xff]
        %v2138 = vld [vmem:[%s1928 + $0xc2] sm:$0xff]
        %v2139 = vld [vmem:[%s1928 + $0xca] sm:$0xff]
        %v2140 = vld [vmem:[%s1928 + $0xda] sm:$0xff]
        %v2141 = vld [vmem:[%s1928 + $0xe2] sm:$0xff]
        %v2142 = vld [vmem:[%s1928 + $0xf2] sm:$0xff]
        %v2143 = vld [vmem:[%s1928 + $0xfa] sm:$0xff]
        %v2144 = vld [vmem:[%s1928 + $0x10a] sm:$0xff]
        %v2145 = vld [vmem:[%s1928 + $0x112] sm:$0xff]
        %v2146 = vld [vmem:[%s1928 + $0x122] sm:$0xff]
        %v2147 = vld [vmem:[%s1928 + $0x12a] sm:$0xff]
        %v2148 = vld [vmem:[%s1928 + $0x13a] sm:$0xff]
        %v2149 = vld [vmem:[%s1928 + $0x142] sm:$0xff]
        %v2150 = vld [vmem:[%s1928 + $0x152] sm:$0xff]
        %v2151 = vld [vmem:[%s1928 + $0x15a] sm:$0xff]
        %v2152 = vld [vmem:[%s1928 + $0x16a] sm:$0xff]
        %v2153 = vld [vmem:[%s1928 + $0x172] sm:$0xff]
        %s2154 = scalar_lea.vmem [#allocation2], 480
        %v2155 = vld [vmem:[%s2154] sm:$0xff]
        %v2156 = vld [vmem:[%s2154 + $0x8] sm:$0xff]
        %v2157 = vld [vmem:[%s2154 + $0x18] sm:$0xff]
        %v2158 = vld [vmem:[%s2154 + $0x20] sm:$0xff]
        %v2159 = vld [vmem:[%s2154 + $0x30] sm:$0xff]
        %v2160 = vld [vmem:[%s2154 + $0x38] sm:$0xff]
        %v2161 = vld [vmem:[%s2154 + $0x48] sm:$0xff]
        %v2162 = vld [vmem:[%s2154 + $0x50] sm:$0xff]
        %v2163 = vld [vmem:[%s2154 + $0x60] sm:$0xff]
        %v2164 = vld [vmem:[%s2154 + $0x68] sm:$0xff]
        %v2165 = vld [vmem:[%s2154 + $0x78] sm:$0xff]
        %v2166 = vld [vmem:[%s2154 + $0x80] sm:$0xff]
        %v2167 = vld [vmem:[%s2154 + $0x90] sm:$0xff]
        %v2168 = vld [vmem:[%s2154 + $0x98] sm:$0xff]
        %v2169 = vld [vmem:[%s2154 + $0xa8] sm:$0xff]
        %v2170 = vld [vmem:[%s2154 + $0xb0] sm:$0xff]
        %v2171 = vld [vmem:[%s2154 + $0xc0] sm:$0xff]
        %v2172 = vld [vmem:[%s2154 + $0xc8] sm:$0xff]
        %v2173 = vld [vmem:[%s2154 + $0xd8] sm:$0xff]
        %v2174 = vld [vmem:[%s2154 + $0xe0] sm:$0xff]
        %v2175 = vld [vmem:[%s2154 + $0xf0] sm:$0xff]
        %v2176 = vld [vmem:[%s2154 + $0xf8] sm:$0xff]
        %v2177 = vld [vmem:[%s2154 + $0x108] sm:$0xff]
        %v2178 = vld [vmem:[%s2154 + $0x110] sm:$0xff]
        %v2179 = vld [vmem:[%s2154 + $0x120] sm:$0xff]
        %v2180 = vld [vmem:[%s2154 + $0x128] sm:$0xff]
        %v2181 = vld [vmem:[%s2154 + $0x138] sm:$0xff]
        %v2182 = vld [vmem:[%s2154 + $0x140] sm:$0xff]
        %v2183 = vld [vmem:[%s2154 + $0x150] sm:$0xff]
        %v2184 = vld [vmem:[%s2154 + $0x158] sm:$0xff]
        %v2185 = vld [vmem:[%s2154 + $0x168] sm:$0xff]
        %v2186 = vld [vmem:[%s2154 + $0x170] sm:$0xff]
        %v2187 = vld [vmem:[%s2154 + $0x1] sm:$0xff]
        %v2188 = vld [vmem:[%s2154 + $0x9] sm:$0xff]
        %v2189 = vld [vmem:[%s2154 + $0x19] sm:$0xff]
        %v2190 = vld [vmem:[%s2154 + $0x21] sm:$0xff]
        %v2191 = vld [vmem:[%s2154 + $0x31] sm:$0xff]
        %v2192 = vld [vmem:[%s2154 + $0x39] sm:$0xff]
        %v2193 = vld [vmem:[%s2154 + $0x49] sm:$0xff]
        %v2194 = vld [vmem:[%s2154 + $0x51] sm:$0xff]
        %v2195 = vld [vmem:[%s2154 + $0x61] sm:$0xff]
        %v2196 = vld [vmem:[%s2154 + $0x69] sm:$0xff]
        %v2197 = vld [vmem:[%s2154 + $0x79] sm:$0xff]
        %v2198 = vld [vmem:[%s2154 + $0x81] sm:$0xff]
        %v2199 = vld [vmem:[%s2154 + $0x91] sm:$0xff]
        %v2200 = vld [vmem:[%s2154 + $0x99] sm:$0xff]
        %v2201 = vld [vmem:[%s2154 + $0xa9] sm:$0xff]
        %v2202 = vld [vmem:[%s2154 + $0xb1] sm:$0xff]
        %v2203 = vld [vmem:[%s2154 + $0xc1] sm:$0xff]
        %v2204 = vld [vmem:[%s2154 + $0xc9] sm:$0xff]
        %v2205 = vld [vmem:[%s2154 + $0xd9] sm:$0xff]
        %v2206 = vld [vmem:[%s2154 + $0xe1] sm:$0xff]
        %v2207 = vld [vmem:[%s2154 + $0xf1] sm:$0xff]
        %v2208 = vld [vmem:[%s2154 + $0xf9] sm:$0xff]
        %v2209 = vld [vmem:[%s2154 + $0x109] sm:$0xff]
        %v2210 = vld [vmem:[%s2154 + $0x111] sm:$0xff]
        %v2211 = vld [vmem:[%s2154 + $0x121] sm:$0xff]
        %v2212 = vld [vmem:[%s2154 + $0x129] sm:$0xff]
        %v2213 = vld [vmem:[%s2154 + $0x139] sm:$0xff]
        %v2214 = vld [vmem:[%s2154 + $0x141] sm:$0xff]
        %v2215 = vld [vmem:[%s2154 + $0x151] sm:$0xff]
        %v2216 = vld [vmem:[%s2154 + $0x159] sm:$0xff]
        %v2217 = vld [vmem:[%s2154 + $0x169] sm:$0xff]
        %v2218 = vld [vmem:[%s2154 + $0x171] sm:$0xff]
        %v2219 = vld [vmem:[%s2154 + $0x2] sm:$0xff]
        %v2220 = vld [vmem:[%s2154 + $0xa] sm:$0xff]
        %v2221 = vld [vmem:[%s2154 + $0x1a] sm:$0xff]
        %v2222 = vld [vmem:[%s2154 + $0x22] sm:$0xff]
        %v2223 = vld [vmem:[%s2154 + $0x32] sm:$0xff]
        %v2224 = vld [vmem:[%s2154 + $0x3a] sm:$0xff]
        %v2225 = vld [vmem:[%s2154 + $0x4a] sm:$0xff]
        %v2226 = vld [vmem:[%s2154 + $0x52] sm:$0xff]
        %v2227 = vld [vmem:[%s2154 + $0x62] sm:$0xff]
        %v2228 = vld [vmem:[%s2154 + $0x6a] sm:$0xff]
        %v2229 = vld [vmem:[%s2154 + $0x7a] sm:$0xff]
        %v2230 = vld [vmem:[%s2154 + $0x82] sm:$0xff]
        %v2231 = vld [vmem:[%s2154 + $0x92] sm:$0xff]
        %v2232 = vld [vmem:[%s2154 + $0x9a] sm:$0xff]
        %v2233 = vld [vmem:[%s2154 + $0xaa] sm:$0xff]
        %v2234 = vld [vmem:[%s2154 + $0xb2] sm:$0xff]
        %v2235 = vld [vmem:[%s2154 + $0xc2] sm:$0xff]
        %v2236 = vld [vmem:[%s2154 + $0xca] sm:$0xff]
        %v2237 = vld [vmem:[%s2154 + $0xda] sm:$0xff]
        %v2238 = vld [vmem:[%s2154 + $0xe2] sm:$0xff]
        %v2239 = vld [vmem:[%s2154 + $0xf2] sm:$0xff]
        %v2240 = vld [vmem:[%s2154 + $0xfa] sm:$0xff]
        %v2241 = vld [vmem:[%s2154 + $0x10a] sm:$0xff]
        %v2242 = vld [vmem:[%s2154 + $0x112] sm:$0xff]
        %v2243 = vld [vmem:[%s2154 + $0x122] sm:$0xff]
        %v2244 = vld [vmem:[%s2154 + $0x12a] sm:$0xff]
        %v2245 = vld [vmem:[%s2154 + $0x13a] sm:$0xff]
        %v2246 = vld [vmem:[%s2154 + $0x142] sm:$0xff]
        %v2247 = vld [vmem:[%s2154 + $0x152] sm:$0xff]
        %v2248 = vld [vmem:[%s2154 + $0x15a] sm:$0xff]
        %v2249 = vld [vmem:[%s2154 + $0x16a] sm:$0xff]
        %v2250 = vld [vmem:[%s2154 + $0x172] sm:$0xff]
        %s2251 = scalar_lea.vmem [#allocation3], 1152
        %v2252 = vld [vmem:[%s2251] sm:$0xff]
        %v2253 = vld [vmem:[%s2251 + $0x8] sm:$0xff]
        %v2254 = vld [vmem:[%s2251 + $0x10] sm:$0xff]
        %v2255 = vld [vmem:[%s2251 + $0x18] sm:$0xff]
        %v2256 = vld [vmem:[%s2251 + $0x20] sm:$0xff]
        %v2257 = vld [vmem:[%s2251 + $0x28] sm:$0xff]
        %v2258 = vld [vmem:[%s2251 + $0x30] sm:$0xff]
        %v2259 = vld [vmem:[%s2251 + $0x38] sm:$0xff]
        %v2260 = vld [vmem:[%s2251 + $0x40] sm:$0xff]
        %v2261 = vld [vmem:[%s2251 + $0x48] sm:$0xff]
        %v2262 = vld [vmem:[%s2251 + $0x50] sm:$0xff]
        %v2263 = vld [vmem:[%s2251 + $0x58] sm:$0xff]
        %v2264 = vld [vmem:[%s2251 + $0x60] sm:$0xff]
        %v2265 = vld [vmem:[%s2251 + $0x68] sm:$0xff]
        %v2266 = vld [vmem:[%s2251 + $0x70] sm:$0xff]
        %v2267 = vld [vmem:[%s2251 + $0x78] sm:$0xff]
        %v2268 = vld [vmem:[%s2251 + $0x80] sm:$0xff]
        %v2269 = vld [vmem:[%s2251 + $0x88] sm:$0xff]
        %v2270 = vld [vmem:[%s2251 + $0x90] sm:$0xff]
        %v2271 = vld [vmem:[%s2251 + $0x98] sm:$0xff]
        %v2272 = vld [vmem:[%s2251 + $0xa0] sm:$0xff]
        %v2273 = vld [vmem:[%s2251 + $0xa8] sm:$0xff]
        %v2274 = vld [vmem:[%s2251 + $0xb0] sm:$0xff]
        %v2275 = vld [vmem:[%s2251 + $0xb8] sm:$0xff]
        %v2276 = vld [vmem:[%s2251 + $0xc0] sm:$0xff]
        %v2277 = vld [vmem:[%s2251 + $0xc8] sm:$0xff]
        %v2278 = vld [vmem:[%s2251 + $0xd0] sm:$0xff]
        %v2279 = vld [vmem:[%s2251 + $0xd8] sm:$0xff]
        %v2280 = vld [vmem:[%s2251 + $0xe0] sm:$0xff]
        %v2281 = vld [vmem:[%s2251 + $0xe8] sm:$0xff]
        %v2282 = vld [vmem:[%s2251 + $0xf0] sm:$0xff]
        %v2283 = vld [vmem:[%s2251 + $0xf8] sm:$0xff]
        %v2284 = vld [vmem:[%s2251 + $0x100] sm:$0xff]
        %v2285 = vld [vmem:[%s2251 + $0x108] sm:$0xff]
        %v2286 = vld [vmem:[%s2251 + $0x110] sm:$0xff]
        %v2287 = vld [vmem:[%s2251 + $0x118] sm:$0xff]
        %v2288 = vld [vmem:[%s2251 + $0x120] sm:$0xff]
        %v2289 = vld [vmem:[%s2251 + $0x128] sm:$0xff]
        %v2290 = vld [vmem:[%s2251 + $0x130] sm:$0xff]
        %v2291 = vld [vmem:[%s2251 + $0x138] sm:$0xff]
        %v2292 = vld [vmem:[%s2251 + $0x140] sm:$0xff]
        %v2293 = vld [vmem:[%s2251 + $0x148] sm:$0xff]
        %v2294 = vld [vmem:[%s2251 + $0x150] sm:$0xff]
        %v2295 = vld [vmem:[%s2251 + $0x158] sm:$0xff]
        %v2296 = vld [vmem:[%s2251 + $0x160] sm:$0xff]
        %v2297 = vld [vmem:[%s2251 + $0x168] sm:$0xff]
        %v2298 = vld [vmem:[%s2251 + $0x170] sm:$0xff]
        %v2299 = vld [vmem:[%s2251 + $0x178] sm:$0xff]
        %v2300 = vld [vmem:[%s2251 + $0x180] sm:$0xff]
        %v2301 = vld [vmem:[%s2251 + $0x188] sm:$0xff]
        %v2302 = vld [vmem:[%s2251 + $0x190] sm:$0xff]
        %v2303 = vld [vmem:[%s2251 + $0x198] sm:$0xff]
        %v2304 = vld [vmem:[%s2251 + $0x1a0] sm:$0xff]
        %v2305 = vld [vmem:[%s2251 + $0x1a8] sm:$0xff]
        %v2306 = vld [vmem:[%s2251 + $0x1b0] sm:$0xff]
        %v2307 = vld [vmem:[%s2251 + $0x1b8] sm:$0xff]
        %v2308 = vld [vmem:[%s2251 + $0x1c0] sm:$0xff]
        %v2309 = vld [vmem:[%s2251 + $0x1c8] sm:$0xff]
        %v2310 = vld [vmem:[%s2251 + $0x1d0] sm:$0xff]
        %v2311 = vld [vmem:[%s2251 + $0x1d8] sm:$0xff]
        %v2312 = vld [vmem:[%s2251 + $0x1e0] sm:$0xff]
        %v2313 = vld [vmem:[%s2251 + $0x1e8] sm:$0xff]
        %v2314 = vld [vmem:[%s2251 + $0x1f0] sm:$0xff]
        %v2315 = vld [vmem:[%s2251 + $0x1f8] sm:$0xff]
        %v2316 = vld [vmem:[%s2251 + $0x200] sm:$0xff]
        %v2317 = vld [vmem:[%s2251 + $0x208] sm:$0xff]
        %v2318 = vld [vmem:[%s2251 + $0x210] sm:$0xff]
        %v2319 = vld [vmem:[%s2251 + $0x218] sm:$0xff]
        %v2320 = vld [vmem:[%s2251 + $0x220] sm:$0xff]
        %v2321 = vld [vmem:[%s2251 + $0x228] sm:$0xff]
        %v2322 = vld [vmem:[%s2251 + $0x230] sm:$0xff]
        %v2323 = vld [vmem:[%s2251 + $0x238] sm:$0xff]
        %v2324 = vld [vmem:[%s2251 + $0x240] sm:$0xff]
        %v2325 = vld [vmem:[%s2251 + $0x248] sm:$0xff]
        %v2326 = vld [vmem:[%s2251 + $0x250] sm:$0xff]
        %v2327 = vld [vmem:[%s2251 + $0x258] sm:$0xff]
        %v2328 = vld [vmem:[%s2251 + $0x260] sm:$0xff]
        %v2329 = vld [vmem:[%s2251 + $0x268] sm:$0xff]
        %v2330 = vld [vmem:[%s2251 + $0x270] sm:$0xff]
        %v2331 = vld [vmem:[%s2251 + $0x278] sm:$0xff]
        %v2332 = vld [vmem:[%s2251 + $0x280] sm:$0xff]
        %v2333 = vld [vmem:[%s2251 + $0x288] sm:$0xff]
        %v2334 = vld [vmem:[%s2251 + $0x290] sm:$0xff]
        %v2335 = vld [vmem:[%s2251 + $0x298] sm:$0xff]
        %v2336 = vld [vmem:[%s2251 + $0x2a0] sm:$0xff]
        %v2337 = vld [vmem:[%s2251 + $0x2a8] sm:$0xff]
        %v2338 = vld [vmem:[%s2251 + $0x2b0] sm:$0xff]
        %v2339 = vld [vmem:[%s2251 + $0x2b8] sm:$0xff]
        %v2340 = vld [vmem:[%s2251 + $0x2c0] sm:$0xff]
        %v2341 = vld [vmem:[%s2251 + $0x2c8] sm:$0xff]
        %v2342 = vld [vmem:[%s2251 + $0x2d0] sm:$0xff]
        %v2343 = vld [vmem:[%s2251 + $0x2d8] sm:$0xff]
        %v2344 = vld [vmem:[%s2251 + $0x2e0] sm:$0xff]
        %v2345 = vld [vmem:[%s2251 + $0x2e8] sm:$0xff]
        %v2346 = vld [vmem:[%s2251 + $0x2f0] sm:$0xff]
        %v2347 = vld [vmem:[%s2251 + $0x2f8] sm:$0xff]
        %v2348 = vld [vmem:[%s2251 + $0x300] sm:$0xff]
        %v2349 = vld [vmem:[%s2251 + $0x308] sm:$0xff]
        %v2350 = vld [vmem:[%s2251 + $0x310] sm:$0xff]
        %v2351 = vld [vmem:[%s2251 + $0x318] sm:$0xff]
        %v2352 = vld [vmem:[%s2251 + $0x320] sm:$0xff]
        %v2353 = vld [vmem:[%s2251 + $0x328] sm:$0xff]
        %v2354 = vld [vmem:[%s2251 + $0x330] sm:$0xff]
        %v2355 = vld [vmem:[%s2251 + $0x338] sm:$0xff]
        %v2356 = vld [vmem:[%s2251 + $0x340] sm:$0xff]
        %v2357 = vld [vmem:[%s2251 + $0x348] sm:$0xff]
        %v2358 = vld [vmem:[%s2251 + $0x350] sm:$0xff]
        %v2359 = vld [vmem:[%s2251 + $0x358] sm:$0xff]
        %v2360 = vld [vmem:[%s2251 + $0x360] sm:$0xff]
        %v2361 = vld [vmem:[%s2251 + $0x368] sm:$0xff]
        %v2362 = vld [vmem:[%s2251 + $0x370] sm:$0xff]
        %v2363 = vld [vmem:[%s2251 + $0x378] sm:$0xff]
        %v2364 = vld [vmem:[%s2251 + $0x380] sm:$0xff]
        %v2365 = vld [vmem:[%s2251 + $0x388] sm:$0xff]
        %v2366 = vld [vmem:[%s2251 + $0x390] sm:$0xff]
        %v2367 = vld [vmem:[%s2251 + $0x398] sm:$0xff]
        %v2368 = vld [vmem:[%s2251 + $0x3a0] sm:$0xff]
        %v2369 = vld [vmem:[%s2251 + $0x3a8] sm:$0xff]
        %v2370 = vld [vmem:[%s2251 + $0x3b0] sm:$0xff]
        %v2371 = vld [vmem:[%s2251 + $0x3b8] sm:$0xff]
        %v2372 = vld [vmem:[%s2251 + $0x3c0] sm:$0xff]
        %v2373 = vld [vmem:[%s2251 + $0x3c8] sm:$0xff]
        %v2374 = vld [vmem:[%s2251 + $0x3d0] sm:$0xff]
        %v2375 = vld [vmem:[%s2251 + $0x3d8] sm:$0xff]
        %v2376 = vld [vmem:[%s2251 + $0x3e0] sm:$0xff]
        %v2377 = vld [vmem:[%s2251 + $0x3e8] sm:$0xff]
        %v2378 = vld [vmem:[%s2251 + $0x3f0] sm:$0xff]
        %v2379 = vld [vmem:[%s2251 + $0x3f8] sm:$0xff]
        %v2380 = vld [vmem:[%s2251 + $0x400] sm:$0xff]
        %v2381 = vld [vmem:[%s2251 + $0x408] sm:$0xff]
        %v2382 = vld [vmem:[%s2251 + $0x410] sm:$0xff]
        %v2383 = vld [vmem:[%s2251 + $0x418] sm:$0xff]
        %v2384 = vld [vmem:[%s2251 + $0x420] sm:$0xff]
        %v2385 = vld [vmem:[%s2251 + $0x428] sm:$0xff]
        %v2386 = vld [vmem:[%s2251 + $0x430] sm:$0xff]
        %v2387 = vld [vmem:[%s2251 + $0x438] sm:$0xff]
        %v2388 = vld [vmem:[%s2251 + $0x440] sm:$0xff]
        %v2389 = vld [vmem:[%s2251 + $0x448] sm:$0xff]
        %v2390 = vld [vmem:[%s2251 + $0x450] sm:$0xff]
        %v2391 = vld [vmem:[%s2251 + $0x458] sm:$0xff]
        %v2392 = vld [vmem:[%s2251 + $0x460] sm:$0xff]
        %v2393 = vld [vmem:[%s2251 + $0x468] sm:$0xff]
        %v2394 = vld [vmem:[%s2251 + $0x470] sm:$0xff]
        %v2395 = vld [vmem:[%s2251 + $0x478] sm:$0xff]
        %s2396 = scalar_lea.vmem [#allocation5], 1
        %v2397 = vld [vmem:[%s2396] sm:$0x1]
        %v2399 = vperm.slane %v2397, 0
        %2401 = vmatpush.msra.mxu0 %v2267
        %2402 = vmatpush.msra.mxu0 %v2266
        %2403 = vmatpush.msra.mxu0 %v2265
        %2404 = vmatpush.msra.mxu0 %v2264
        %2405 = vmatpush.msra.mxu0 %v2263
        %2406 = vmatpush.msra.mxu0 %v2262
        %2407 = vmatpush.msra.mxu0 %v2261
        %2408 = vmatpush.msra.mxu0 %v2260
        %2409 = vmatpush.msra.mxu0 %v2259
        %2410 = vmatpush.msra.mxu0 %v2258
        %2411 = vmatpush.msra.mxu0 %v2257
        %2412 = vmatpush.msra.mxu0 %v2256
        %2413 = vmatpush.msra.mxu0 %v2255
        %2414 = vmatpush.msra.mxu0 %v2254
        %2415 = vmatpush.msra.mxu0 %v2253
        %2416 = vmatpush.msra.mxu0 %v2252
        %2417 = vmatmul.f32.gmra.mxu0 %v1962
        %v2418 = vpop.f32.mrf.mxu0
        %v2419 = vadd.f32 %v2399, %v2418
        %2420 = vmatmul.f32.gmra.mxu0 %v1963
        %v2421 = vpop.f32.mrf.mxu0
        %v2422 = vadd.f32 %v2399, %v2421
        %2423 = vmatmul.f32.gmra.mxu0 %v1964
        %v2424 = vpop.f32.mrf.mxu0
        %v2425 = vadd.f32 %v2399, %v2424
        %2426 = vmatmul.f32.gmra.mxu0 %v1965
        %v2427 = vpop.f32.mrf.mxu0
        %v2428 = vadd.f32 %v2399, %v2427
        %2429 = vmatmul.f32.gmra.mxu0 %v1966
        %v2430 = vpop.f32.mrf.mxu0
        %v2431 = vadd.f32 %v2399, %v2430
        %2432 = vmatmul.f32.gmra.mxu0 %v1967
        %v2433 = vpop.f32.mrf.mxu0
        %v2434 = vadd.f32 %v2399, %v2433
        %2435 = vmatmul.f32.gmra.mxu0 %v1968
        %v2436 = vpop.f32.mrf.mxu0
        %v2437 = vadd.f32 %v2399, %v2436
        %2438 = vmatmul.f32.gmra.mxu0 %v1969
        %v2439 = vpop.f32.mrf.mxu0
        %v2440 = vadd.f32 %v2399, %v2439
        %2441 = vmatmul.f32.gmra.mxu0 %v1970
        %v2442 = vpop.f32.mrf.mxu0
        %v2443 = vadd.f32 %v2399, %v2442
        %2444 = vmatmul.f32.gmra.mxu0 %v1971
        %v2445 = vpop.f32.mrf.mxu0
        %v2446 = vadd.f32 %v2399, %v2445
        %2447 = vmatmul.f32.gmra.mxu0 %v1972
        %v2448 = vpop.f32.mrf.mxu0
        %v2449 = vadd.f32 %v2399, %v2448
        %2450 = vmatmul.f32.gmra.mxu0 %v1973
        %v2451 = vpop.f32.mrf.mxu0
        %v2452 = vadd.f32 %v2399, %v2451
        %2453 = vmatmul.f32.gmra.mxu0 %v1974
        %v2454 = vpop.f32.mrf.mxu0
        %v2455 = vadd.f32 %v2399, %v2454
        %2456 = vmatmul.f32.gmra.mxu0 %v1975
        %v2457 = vpop.f32.mrf.mxu0
        %v2458 = vadd.f32 %v2399, %v2457
        %2459 = vmatmul.f32.gmra.mxu0 %v1976
        %v2460 = vpop.f32.mrf.mxu0
        %v2461 = vadd.f32 %v2399, %v2460
        %2462 = vmatmul.f32.gmra.mxu0 %v1977
        %v2463 = vpop.f32.mrf.mxu0
        %v2464 = vadd.f32 %v2399, %v2463
        %2465 = vmatmul.f32.gmra.mxu0 %v1978
        %v2466 = vpop.f32.mrf.mxu0
        %v2467 = vadd.f32 %v2399, %v2466
        %2468 = vmatmul.f32.gmra.mxu0 %v1979
        %v2469 = vpop.f32.mrf.mxu0
        %v2470 = vadd.f32 %v2399, %v2469
        %2471 = vmatmul.f32.gmra.mxu0 %v1980
        %v2472 = vpop.f32.mrf.mxu0
        %v2473 = vadd.f32 %v2399, %v2472
        %2474 = vmatmul.f32.gmra.mxu0 %v1981
        %v2475 = vpop.f32.mrf.mxu0
        %v2476 = vadd.f32 %v2399, %v2475
        %2477 = vmatmul.f32.gmra.mxu0 %v1982
        %v2478 = vpop.f32.mrf.mxu0
        %v2479 = vadd.f32 %v2399, %v2478
        %2480 = vmatmul.f32.gmra.mxu0 %v1983
        %v2481 = vpop.f32.mrf.mxu0
        %v2482 = vadd.f32 %v2399, %v2481
        %2483 = vmatmul.f32.gmra.mxu0 %v1984
        %v2484 = vpop.f32.mrf.mxu0
        %v2485 = vadd.f32 %v2399, %v2484
        %2486 = vmatmul.f32.gmra.mxu0 %v1985
        %v2487 = vpop.f32.mrf.mxu0
        %v2488 = vadd.f32 %v2399, %v2487
        %2489 = vmatmul.f32.gmra.mxu0 %v1986
        %v2490 = vpop.f32.mrf.mxu0
        %v2491 = vadd.f32 %v2399, %v2490
        %2492 = vmatmul.f32.gmra.mxu0 %v1987
        %v2493 = vpop.f32.mrf.mxu0
        %v2494 = vadd.f32 %v2399, %v2493
        %2495 = vmatmul.f32.gmra.mxu0 %v1988
        %v2496 = vpop.f32.mrf.mxu0
        %v2497 = vadd.f32 %v2399, %v2496
        %2498 = vmatmul.f32.gmra.mxu0 %v1989
        %v2499 = vpop.f32.mrf.mxu0
        %v2500 = vadd.f32 %v2399, %v2499
        %2501 = vmatmul.f32.gmra.mxu0 %v1990
        %v2502 = vpop.f32.mrf.mxu0
        %v2503 = vadd.f32 %v2399, %v2502
        %2504 = vmatmul.f32.gmra.mxu0 %v1991
        %v2505 = vpop.f32.mrf.mxu0
        %v2506 = vadd.f32 %v2399, %v2505
        %2507 = vmatmul.f32.gmra.mxu0 %v1992
        %v2508 = vpop.f32.mrf.mxu0
        %v2509 = vadd.f32 %v2399, %v2508
        %2510 = vmatmul.f32.gmra.mxu0 %v1993
        %v2511 = vpop.f32.mrf.mxu0
        %v2512 = vadd.f32 %v2399, %v2511
        %2513 = vdwg.mxu0
        %2514 = vmatpush.msra.mxu0 %v2283
        %2515 = vmatpush.msra.mxu0 %v2282
        %2516 = vmatpush.msra.mxu0 %v2281
        %2517 = vmatpush.msra.mxu0 %v2280
        %2518 = vmatpush.msra.mxu0 %v2279
        %2519 = vmatpush.msra.mxu0 %v2278
        %2520 = vmatpush.msra.mxu0 %v2277
        %2521 = vmatpush.msra.mxu0 %v2276
        %2522 = vmatpush.msra.mxu0 %v2275
        %2523 = vmatpush.msra.mxu0 %v2274
        %2524 = vmatpush.msra.mxu0 %v2273
        %2525 = vmatpush.msra.mxu0 %v2272
        %2526 = vmatpush.msra.mxu0 %v2271
        %2527 = vmatpush.msra.mxu0 %v2270
        %2528 = vmatpush.msra.mxu0 %v2269
        %2529 = vmatpush.msra.mxu0 %v2268
        %2530 = vmatmul.f32.gmra.mxu0 %v1994
        %v2531 = vpop.f32.mrf.mxu0
        %v2532 = vadd.f32 %v2419, %v2531
        %2533 = vmatmul.f32.gmra.mxu0 %v1995
        %v2534 = vpop.f32.mrf.mxu0
        %v2535 = vadd.f32 %v2422, %v2534
        %2536 = vmatmul.f32.gmra.mxu0 %v1996
        %v2537 = vpop.f32.mrf.mxu0
        %v2538 = vadd.f32 %v2425, %v2537
        %2539 = vmatmul.f32.gmra.mxu0 %v1997
        %v2540 = vpop.f32.mrf.mxu0
        %v2541 = vadd.f32 %v2428, %v2540
        %2542 = vmatmul.f32.gmra.mxu0 %v1998
        %v2543 = vpop.f32.mrf.mxu0
        %v2544 = vadd.f32 %v2431, %v2543
        %2545 = vmatmul.f32.gmra.mxu0 %v1999
        %v2546 = vpop.f32.mrf.mxu0
        %v2547 = vadd.f32 %v2434, %v2546
        %2548 = vmatmul.f32.gmra.mxu0 %v2000
        %v2549 = vpop.f32.mrf.mxu0
        %v2550 = vadd.f32 %v2437, %v2549
        %2551 = vmatmul.f32.gmra.mxu0 %v2001
        %v2552 = vpop.f32.mrf.mxu0
        %v2553 = vadd.f32 %v2440, %v2552
        %2554 = vmatmul.f32.gmra.mxu0 %v2002
        %v2555 = vpop.f32.mrf.mxu0
        %v2556 = vadd.f32 %v2443, %v2555
        %2557 = vmatmul.f32.gmra.mxu0 %v2003
        %v2558 = vpop.f32.mrf.mxu0
        %v2559 = vadd.f32 %v2446, %v2558
        %2560 = vmatmul.f32.gmra.mxu0 %v2004
        %v2561 = vpop.f32.mrf.mxu0
        %v2562 = vadd.f32 %v2449, %v2561
        %2563 = vmatmul.f32.gmra.mxu0 %v2005
        %v2564 = vpop.f32.mrf.mxu0
        %v2565 = vadd.f32 %v2452, %v2564
        %2566 = vmatmul.f32.gmra.mxu0 %v2006
        %v2567 = vpop.f32.mrf.mxu0
        %v2568 = vadd.f32 %v2455, %v2567
        %2569 = vmatmul.f32.gmra.mxu0 %v2007
        %v2570 = vpop.f32.mrf.mxu0
        %v2571 = vadd.f32 %v2458, %v2570
        %2572 = vmatmul.f32.gmra.mxu0 %v2008
        %v2573 = vpop.f32.mrf.mxu0
        %v2574 = vadd.f32 %v2461, %v2573
        %2575 = vmatmul.f32.gmra.mxu0 %v2009
        %v2576 = vpop.f32.mrf.mxu0
        %v2577 = vadd.f32 %v2464, %v2576
        %2578 = vmatmul.f32.gmra.mxu0 %v2010
        %v2579 = vpop.f32.mrf.mxu0
        %v2580 = vadd.f32 %v2467, %v2579
        %2581 = vmatmul.f32.gmra.mxu0 %v2011
        %v2582 = vpop.f32.mrf.mxu0
        %v2583 = vadd.f32 %v2470, %v2582
        %2584 = vmatmul.f32.gmra.mxu0 %v2012
        %v2585 = vpop.f32.mrf.mxu0
        %v2586 = vadd.f32 %v2473, %v2585
        %2587 = vmatmul.f32.gmra.mxu0 %v2013
        %v2588 = vpop.f32.mrf.mxu0
        %v2589 = vadd.f32 %v2476, %v2588
        %2590 = vmatmul.f32.gmra.mxu0 %v2014
        %v2591 = vpop.f32.mrf.mxu0
        %v2592 = vadd.f32 %v2479, %v2591
        %2593 = vmatmul.f32.gmra.mxu0 %v2015
        %v2594 = vpop.f32.mrf.mxu0
        %v2595 = vadd.f32 %v2482, %v2594
        %2596 = vmatmul.f32.gmra.mxu0 %v2016
        %v2597 = vpop.f32.mrf.mxu0
        %v2598 = vadd.f32 %v2485, %v2597
        %2599 = vmatmul.f32.gmra.mxu0 %v2017
        %v2600 = vpop.f32.mrf.mxu0
        %v2601 = vadd.f32 %v2488, %v2600
        %2602 = vmatmul.f32.gmra.mxu0 %v2018
        %v2603 = vpop.f32.mrf.mxu0
        %v2604 = vadd.f32 %v2491, %v2603
        %2605 = vmatmul.f32.gmra.mxu0 %v2019
        %v2606 = vpop.f32.mrf.mxu0
        %v2607 = vadd.f32 %v2494, %v2606
        %2608 = vmatmul.f32.gmra.mxu0 %v2020
        %v2609 = vpop.f32.mrf.mxu0
        %v2610 = vadd.f32 %v2497, %v2609
        %2611 = vmatmul.f32.gmra.mxu0 %v2021
        %v2612 = vpop.f32.mrf.mxu0
        %v2613 = vadd.f32 %v2500, %v2612
        %2614 = vmatmul.f32.gmra.mxu0 %v2022
        %v2615 = vpop.f32.mrf.mxu0
        %v2616 = vadd.f32 %v2503, %v2615
        %2617 = vmatmul.f32.gmra.mxu0 %v2023
        %v2618 = vpop.f32.mrf.mxu0
        %v2619 = vadd.f32 %v2506, %v2618
        %2620 = vmatmul.f32.gmra.mxu0 %v2024
        %v2621 = vpop.f32.mrf.mxu0
        %v2622 = vadd.f32 %v2509, %v2621
        %2623 = vmatmul.f32.gmra.mxu0 %v2025
        %v2624 = vpop.f32.mrf.mxu0
        %v2625 = vadd.f32 %v2512, %v2624
        %2626 = vdwg.mxu0
        %2627 = vmatpush.msra.mxu0 %v2299
        %2628 = vmatpush.msra.mxu0 %v2298
        %2629 = vmatpush.msra.mxu0 %v2297
        %2630 = vmatpush.msra.mxu0 %v2296
        %2631 = vmatpush.msra.mxu0 %v2295
        %2632 = vmatpush.msra.mxu0 %v2294
        %2633 = vmatpush.msra.mxu0 %v2293
        %2634 = vmatpush.msra.mxu0 %v2292
        %2635 = vmatpush.msra.mxu0 %v2291
        %2636 = vmatpush.msra.mxu0 %v2290
        %2637 = vmatpush.msra.mxu0 %v2289
        %2638 = vmatpush.msra.mxu0 %v2288
        %2639 = vmatpush.msra.mxu0 %v2287
        %2640 = vmatpush.msra.mxu0 %v2286
        %2641 = vmatpush.msra.mxu0 %v2285
        %2642 = vmatpush.msra.mxu0 %v2284
        %2643 = vmatmul.f32.gmra.mxu0 %v2026
        %v2644 = vpop.f32.mrf.mxu0
        %v2645 = vadd.f32 %v2532, %v2644
        %2646 = vmatmul.f32.gmra.mxu0 %v2027
        %v2647 = vpop.f32.mrf.mxu0
        %v2648 = vadd.f32 %v2535, %v2647
        %2649 = vmatmul.f32.gmra.mxu0 %v2028
        %v2650 = vpop.f32.mrf.mxu0
        %v2651 = vadd.f32 %v2538, %v2650
        %2652 = vmatmul.f32.gmra.mxu0 %v2029
        %v2653 = vpop.f32.mrf.mxu0
        %v2654 = vadd.f32 %v2541, %v2653
        %2655 = vmatmul.f32.gmra.mxu0 %v2030
        %v2656 = vpop.f32.mrf.mxu0
        %v2657 = vadd.f32 %v2544, %v2656
        %2658 = vmatmul.f32.gmra.mxu0 %v2031
        %v2659 = vpop.f32.mrf.mxu0
        %v2660 = vadd.f32 %v2547, %v2659
        %2661 = vmatmul.f32.gmra.mxu0 %v2032
        %v2662 = vpop.f32.mrf.mxu0
        %v2663 = vadd.f32 %v2550, %v2662
        %2664 = vmatmul.f32.gmra.mxu0 %v2033
        %v2665 = vpop.f32.mrf.mxu0
        %v2666 = vadd.f32 %v2553, %v2665
        %2667 = vmatmul.f32.gmra.mxu0 %v2034
        %v2668 = vpop.f32.mrf.mxu0
        %v2669 = vadd.f32 %v2556, %v2668
        %2670 = vmatmul.f32.gmra.mxu0 %v2035
        %v2671 = vpop.f32.mrf.mxu0
        %v2672 = vadd.f32 %v2559, %v2671
        %2673 = vmatmul.f32.gmra.mxu0 %v2036
        %v2674 = vpop.f32.mrf.mxu0
        %v2675 = vadd.f32 %v2562, %v2674
        %2676 = vmatmul.f32.gmra.mxu0 %v2037
        %v2677 = vpop.f32.mrf.mxu0
        %v2678 = vadd.f32 %v2565, %v2677
        %2679 = vmatmul.f32.gmra.mxu0 %v2038
        %v2680 = vpop.f32.mrf.mxu0
        %v2681 = vadd.f32 %v2568, %v2680
        %2682 = vmatmul.f32.gmra.mxu0 %v2039
        %v2683 = vpop.f32.mrf.mxu0
        %v2684 = vadd.f32 %v2571, %v2683
        %2685 = vmatmul.f32.gmra.mxu0 %v2040
        %v2686 = vpop.f32.mrf.mxu0
        %v2687 = vadd.f32 %v2574, %v2686
        %2688 = vmatmul.f32.gmra.mxu0 %v2041
        %v2689 = vpop.f32.mrf.mxu0
        %v2690 = vadd.f32 %v2577, %v2689
        %2691 = vmatmul.f32.gmra.mxu0 %v2042
        %v2692 = vpop.f32.mrf.mxu0
        %v2693 = vadd.f32 %v2580, %v2692
        %2694 = vmatmul.f32.gmra.mxu0 %v2043
        %v2695 = vpop.f32.mrf.mxu0
        %v2696 = vadd.f32 %v2583, %v2695
        %2697 = vmatmul.f32.gmra.mxu0 %v2044
        %v2698 = vpop.f32.mrf.mxu0
        %v2699 = vadd.f32 %v2586, %v2698
        %2700 = vmatmul.f32.gmra.mxu0 %v2045
        %v2701 = vpop.f32.mrf.mxu0
        %v2702 = vadd.f32 %v2589, %v2701
        %2703 = vmatmul.f32.gmra.mxu0 %v2046
        %v2704 = vpop.f32.mrf.mxu0
        %v2705 = vadd.f32 %v2592, %v2704
        %2706 = vmatmul.f32.gmra.mxu0 %v2047
        %v2707 = vpop.f32.mrf.mxu0
        %v2708 = vadd.f32 %v2595, %v2707
        %2709 = vmatmul.f32.gmra.mxu0 %v2048
        %v2710 = vpop.f32.mrf.mxu0
        %v2711 = vadd.f32 %v2598, %v2710
        %2712 = vmatmul.f32.gmra.mxu0 %v2049
        %v2713 = vpop.f32.mrf.mxu0
        %v2714 = vadd.f32 %v2601, %v2713
        %2715 = vmatmul.f32.gmra.mxu0 %v2050
        %v2716 = vpop.f32.mrf.mxu0
        %v2717 = vadd.f32 %v2604, %v2716
        %2718 = vmatmul.f32.gmra.mxu0 %v2051
        %v2719 = vpop.f32.mrf.mxu0
        %v2720 = vadd.f32 %v2607, %v2719
        %2721 = vmatmul.f32.gmra.mxu0 %v2052
        %v2722 = vpop.f32.mrf.mxu0
        %v2723 = vadd.f32 %v2610, %v2722
        %2724 = vmatmul.f32.gmra.mxu0 %v2053
        %v2725 = vpop.f32.mrf.mxu0
        %v2726 = vadd.f32 %v2613, %v2725
        %2727 = vmatmul.f32.gmra.mxu0 %v2054
        %v2728 = vpop.f32.mrf.mxu0
        %v2729 = vadd.f32 %v2616, %v2728
        %2730 = vmatmul.f32.gmra.mxu0 %v2055
        %v2731 = vpop.f32.mrf.mxu0
        %v2732 = vadd.f32 %v2619, %v2731
        %2733 = vmatmul.f32.gmra.mxu0 %v2056
        %v2734 = vpop.f32.mrf.mxu0
        %v2735 = vadd.f32 %v2622, %v2734
        %2736 = vmatmul.f32.gmra.mxu0 %v2057
        %v2737 = vpop.f32.mrf.mxu0
        %v2738 = vadd.f32 %v2625, %v2737
        %2739 = vdwg.mxu0
        %2740 = vmatpush.msra.mxu0 %v2315
        %2741 = vmatpush.msra.mxu0 %v2314
        %2742 = vmatpush.msra.mxu0 %v2313
        %2743 = vmatpush.msra.mxu0 %v2312
        %2744 = vmatpush.msra.mxu0 %v2311
        %2745 = vmatpush.msra.mxu0 %v2310
        %2746 = vmatpush.msra.mxu0 %v2309
        %2747 = vmatpush.msra.mxu0 %v2308
        %2748 = vmatpush.msra.mxu0 %v2307
        %2749 = vmatpush.msra.mxu0 %v2306
        %2750 = vmatpush.msra.mxu0 %v2305
        %2751 = vmatpush.msra.mxu0 %v2304
        %2752 = vmatpush.msra.mxu0 %v2303
        %2753 = vmatpush.msra.mxu0 %v2302
        %2754 = vmatpush.msra.mxu0 %v2301
        %2755 = vmatpush.msra.mxu0 %v2300
        %2756 = vmatmul.f32.gmra.mxu0 %v2058
        %v2757 = vpop.f32.mrf.mxu0
        %v2758 = vadd.f32 %v2645, %v2757
        %2759 = vmatmul.f32.gmra.mxu0 %v2059
        %v2760 = vpop.f32.mrf.mxu0
        %v2761 = vadd.f32 %v2648, %v2760
        %2762 = vmatmul.f32.gmra.mxu0 %v2060
        %v2763 = vpop.f32.mrf.mxu0
        %v2764 = vadd.f32 %v2651, %v2763
        %2765 = vmatmul.f32.gmra.mxu0 %v2061
        %v2766 = vpop.f32.mrf.mxu0
        %v2767 = vadd.f32 %v2654, %v2766
        %2768 = vmatmul.f32.gmra.mxu0 %v2062
        %v2769 = vpop.f32.mrf.mxu0
        %v2770 = vadd.f32 %v2657, %v2769
        %2771 = vmatmul.f32.gmra.mxu0 %v2063
        %v2772 = vpop.f32.mrf.mxu0
        %v2773 = vadd.f32 %v2660, %v2772
        %2774 = vmatmul.f32.gmra.mxu0 %v2064
        %v2775 = vpop.f32.mrf.mxu0
        %v2776 = vadd.f32 %v2663, %v2775
        %2777 = vmatmul.f32.gmra.mxu0 %v2065
        %v2778 = vpop.f32.mrf.mxu0
        %v2779 = vadd.f32 %v2666, %v2778
        %2780 = vmatmul.f32.gmra.mxu0 %v2066
        %v2781 = vpop.f32.mrf.mxu0
        %v2782 = vadd.f32 %v2669, %v2781
        %2783 = vmatmul.f32.gmra.mxu0 %v2067
        %v2784 = vpop.f32.mrf.mxu0
        %v2785 = vadd.f32 %v2672, %v2784
        %2786 = vmatmul.f32.gmra.mxu0 %v2068
        %v2787 = vpop.f32.mrf.mxu0
        %v2788 = vadd.f32 %v2675, %v2787
        %2789 = vmatmul.f32.gmra.mxu0 %v2069
        %v2790 = vpop.f32.mrf.mxu0
        %v2791 = vadd.f32 %v2678, %v2790
        %2792 = vmatmul.f32.gmra.mxu0 %v2070
        %v2793 = vpop.f32.mrf.mxu0
        %v2794 = vadd.f32 %v2681, %v2793
        %2795 = vmatmul.f32.gmra.mxu0 %v2071
        %v2796 = vpop.f32.mrf.mxu0
        %v2797 = vadd.f32 %v2684, %v2796
        %2798 = vmatmul.f32.gmra.mxu0 %v2072
        %v2799 = vpop.f32.mrf.mxu0
        %v2800 = vadd.f32 %v2687, %v2799
        %2801 = vmatmul.f32.gmra.mxu0 %v2073
        %v2802 = vpop.f32.mrf.mxu0
        %v2803 = vadd.f32 %v2690, %v2802
        %2804 = vmatmul.f32.gmra.mxu0 %v2074
        %v2805 = vpop.f32.mrf.mxu0
        %v2806 = vadd.f32 %v2693, %v2805
        %2807 = vmatmul.f32.gmra.mxu0 %v2075
        %v2808 = vpop.f32.mrf.mxu0
        %v2809 = vadd.f32 %v2696, %v2808
        %2810 = vmatmul.f32.gmra.mxu0 %v2076
        %v2811 = vpop.f32.mrf.mxu0
        %v2812 = vadd.f32 %v2699, %v2811
        %2813 = vmatmul.f32.gmra.mxu0 %v2077
        %v2814 = vpop.f32.mrf.mxu0
        %v2815 = vadd.f32 %v2702, %v2814
        %2816 = vmatmul.f32.gmra.mxu0 %v2078
        %v2817 = vpop.f32.mrf.mxu0
        %v2818 = vadd.f32 %v2705, %v2817
        %2819 = vmatmul.f32.gmra.mxu0 %v2079
        %v2820 = vpop.f32.mrf.mxu0
        %v2821 = vadd.f32 %v2708, %v2820
        %2822 = vmatmul.f32.gmra.mxu0 %v2080
        %v2823 = vpop.f32.mrf.mxu0
        %v2824 = vadd.f32 %v2711, %v2823
        %2825 = vmatmul.f32.gmra.mxu0 %v2081
        %v2826 = vpop.f32.mrf.mxu0
        %v2827 = vadd.f32 %v2714, %v2826
        %2828 = vmatmul.f32.gmra.mxu0 %v2082
        %v2829 = vpop.f32.mrf.mxu0
        %v2830 = vadd.f32 %v2717, %v2829
        %2831 = vmatmul.f32.gmra.mxu0 %v2083
        %v2832 = vpop.f32.mrf.mxu0
        %v2833 = vadd.f32 %v2720, %v2832
        %2834 = vmatmul.f32.gmra.mxu0 %v2084
        %v2835 = vpop.f32.mrf.mxu0
        %v2836 = vadd.f32 %v2723, %v2835
        %2837 = vmatmul.f32.gmra.mxu0 %v2085
        %v2838 = vpop.f32.mrf.mxu0
        %v2839 = vadd.f32 %v2726, %v2838
        %2840 = vmatmul.f32.gmra.mxu0 %v2086
        %v2841 = vpop.f32.mrf.mxu0
        %v2842 = vadd.f32 %v2729, %v2841
        %2843 = vmatmul.f32.gmra.mxu0 %v2087
        %v2844 = vpop.f32.mrf.mxu0
        %v2845 = vadd.f32 %v2732, %v2844
        %2846 = vmatmul.f32.gmra.mxu0 %v2088
        %v2847 = vpop.f32.mrf.mxu0
        %v2848 = vadd.f32 %v2735, %v2847
        %2849 = vmatmul.f32.gmra.mxu0 %v2089
        %v2850 = vpop.f32.mrf.mxu0
        %v2851 = vadd.f32 %v2738, %v2850
        %2852 = vdwg.mxu0
        %2853 = vmatpush.msra.mxu0 %v2331
        %2854 = vmatpush.msra.mxu0 %v2330
        %2855 = vmatpush.msra.mxu0 %v2329
        %2856 = vmatpush.msra.mxu0 %v2328
        %2857 = vmatpush.msra.mxu0 %v2327
        %2858 = vmatpush.msra.mxu0 %v2326
        %2859 = vmatpush.msra.mxu0 %v2325
        %2860 = vmatpush.msra.mxu0 %v2324
        %2861 = vmatpush.msra.mxu0 %v2323
        %2862 = vmatpush.msra.mxu0 %v2322
        %2863 = vmatpush.msra.mxu0 %v2321
        %2864 = vmatpush.msra.mxu0 %v2320
        %2865 = vmatpush.msra.mxu0 %v2319
        %2866 = vmatpush.msra.mxu0 %v2318
        %2867 = vmatpush.msra.mxu0 %v2317
        %2868 = vmatpush.msra.mxu0 %v2316
        %2869 = vmatmul.f32.gmra.mxu0 %v2090
        %v2870 = vpop.f32.mrf.mxu0
        %v2871 = vadd.f32 %v2758, %v2870
        %2872 = vmatmul.f32.gmra.mxu0 %v2091
        %v2873 = vpop.f32.mrf.mxu0
        %v2874 = vadd.f32 %v2761, %v2873
        %2875 = vmatmul.f32.gmra.mxu0 %v2092
        %v2876 = vpop.f32.mrf.mxu0
        %v2877 = vadd.f32 %v2764, %v2876
        %2878 = vmatmul.f32.gmra.mxu0 %v2093
        %v2879 = vpop.f32.mrf.mxu0
        %v2880 = vadd.f32 %v2767, %v2879
        %2881 = vmatmul.f32.gmra.mxu0 %v2094
        %v2882 = vpop.f32.mrf.mxu0
        %v2883 = vadd.f32 %v2770, %v2882
        %2884 = vmatmul.f32.gmra.mxu0 %v2095
        %v2885 = vpop.f32.mrf.mxu0
        %v2886 = vadd.f32 %v2773, %v2885
        %2887 = vmatmul.f32.gmra.mxu0 %v2096
        %v2888 = vpop.f32.mrf.mxu0
        %v2889 = vadd.f32 %v2776, %v2888
        %2890 = vmatmul.f32.gmra.mxu0 %v2097
        %v2891 = vpop.f32.mrf.mxu0
        %v2892 = vadd.f32 %v2779, %v2891
        %2893 = vmatmul.f32.gmra.mxu0 %v2098
        %v2894 = vpop.f32.mrf.mxu0
        %v2895 = vadd.f32 %v2782, %v2894
        %2896 = vmatmul.f32.gmra.mxu0 %v2099
        %v2897 = vpop.f32.mrf.mxu0
        %v2898 = vadd.f32 %v2785, %v2897
        %2899 = vmatmul.f32.gmra.mxu0 %v2100
        %v2900 = vpop.f32.mrf.mxu0
        %v2901 = vadd.f32 %v2788, %v2900
        %2902 = vmatmul.f32.gmra.mxu0 %v2101
        %v2903 = vpop.f32.mrf.mxu0
        %v2904 = vadd.f32 %v2791, %v2903
        %2905 = vmatmul.f32.gmra.mxu0 %v2102
        %v2906 = vpop.f32.mrf.mxu0
        %v2907 = vadd.f32 %v2794, %v2906
        %2908 = vmatmul.f32.gmra.mxu0 %v2103
        %v2909 = vpop.f32.mrf.mxu0
        %v2910 = vadd.f32 %v2797, %v2909
        %2911 = vmatmul.f32.gmra.mxu0 %v2104
        %v2912 = vpop.f32.mrf.mxu0
        %v2913 = vadd.f32 %v2800, %v2912
        %2914 = vmatmul.f32.gmra.mxu0 %v2105
        %v2915 = vpop.f32.mrf.mxu0
        %v2916 = vadd.f32 %v2803, %v2915
        %2917 = vmatmul.f32.gmra.mxu0 %v2106
        %v2918 = vpop.f32.mrf.mxu0
        %v2919 = vadd.f32 %v2806, %v2918
        %2920 = vmatmul.f32.gmra.mxu0 %v2107
        %v2921 = vpop.f32.mrf.mxu0
        %v2922 = vadd.f32 %v2809, %v2921
        %2923 = vmatmul.f32.gmra.mxu0 %v2108
        %v2924 = vpop.f32.mrf.mxu0
        %v2925 = vadd.f32 %v2812, %v2924
        %2926 = vmatmul.f32.gmra.mxu0 %v2109
        %v2927 = vpop.f32.mrf.mxu0
        %v2928 = vadd.f32 %v2815, %v2927
        %2929 = vmatmul.f32.gmra.mxu0 %v2110
        %v2930 = vpop.f32.mrf.mxu0
        %v2931 = vadd.f32 %v2818, %v2930
        %2932 = vmatmul.f32.gmra.mxu0 %v2111
        %v2933 = vpop.f32.mrf.mxu0
        %v2934 = vadd.f32 %v2821, %v2933
        %2935 = vmatmul.f32.gmra.mxu0 %v2112
        %v2936 = vpop.f32.mrf.mxu0
        %v2937 = vadd.f32 %v2824, %v2936
        %2938 = vmatmul.f32.gmra.mxu0 %v2113
        %v2939 = vpop.f32.mrf.mxu0
        %v2940 = vadd.f32 %v2827, %v2939
        %2941 = vmatmul.f32.gmra.mxu0 %v2114
        %v2942 = vpop.f32.mrf.mxu0
        %v2943 = vadd.f32 %v2830, %v2942
        %2944 = vmatmul.f32.gmra.mxu0 %v2115
        %v2945 = vpop.f32.mrf.mxu0
        %v2946 = vadd.f32 %v2833, %v2945
        %2947 = vmatmul.f32.gmra.mxu0 %v2116
        %v2948 = vpop.f32.mrf.mxu0
        %v2949 = vadd.f32 %v2836, %v2948
        %2950 = vmatmul.f32.gmra.mxu0 %v2117
        %v2951 = vpop.f32.mrf.mxu0
        %v2952 = vadd.f32 %v2839, %v2951
        %2953 = vmatmul.f32.gmra.mxu0 %v2118
        %v2954 = vpop.f32.mrf.mxu0
        %v2955 = vadd.f32 %v2842, %v2954
        %2956 = vmatmul.f32.gmra.mxu0 %v2119
        %v2957 = vpop.f32.mrf.mxu0
        %v2958 = vadd.f32 %v2845, %v2957
        %2959 = vmatmul.f32.gmra.mxu0 %v2120
        %v2960 = vpop.f32.mrf.mxu0
        %v2961 = vadd.f32 %v2848, %v2960
        %2962 = vmatmul.f32.gmra.mxu0 %v2121
        %v2963 = vpop.f32.mrf.mxu0
        %v2964 = vadd.f32 %v2851, %v2963
        %2965 = vdwg.mxu0
        %2966 = vmatpush.msra.mxu0 %v2347
        %2967 = vmatpush.msra.mxu0 %v2346
        %2968 = vmatpush.msra.mxu0 %v2345
        %2969 = vmatpush.msra.mxu0 %v2344
        %2970 = vmatpush.msra.mxu0 %v2343
        %2971 = vmatpush.msra.mxu0 %v2342
        %2972 = vmatpush.msra.mxu0 %v2341
        %2973 = vmatpush.msra.mxu0 %v2340
        %2974 = vmatpush.msra.mxu0 %v2339
        %2975 = vmatpush.msra.mxu0 %v2338
        %2976 = vmatpush.msra.mxu0 %v2337
        %2977 = vmatpush.msra.mxu0 %v2336
        %2978 = vmatpush.msra.mxu0 %v2335
        %2979 = vmatpush.msra.mxu0 %v2334
        %2980 = vmatpush.msra.mxu0 %v2333
        %2981 = vmatpush.msra.mxu0 %v2332
        %2982 = vmatmul.f32.gmra.mxu0 %v2122
        %v2983 = vpop.f32.mrf.mxu0
        %v2984 = vadd.f32 %v2871, %v2983
        %2985 = vmatmul.f32.gmra.mxu0 %v2123
        %v2986 = vpop.f32.mrf.mxu0
        %v2987 = vadd.f32 %v2874, %v2986
        %2988 = vmatmul.f32.gmra.mxu0 %v2124
        %v2989 = vpop.f32.mrf.mxu0
        %v2990 = vadd.f32 %v2877, %v2989
        %2991 = vmatmul.f32.gmra.mxu0 %v2125
        %v2992 = vpop.f32.mrf.mxu0
        %v2993 = vadd.f32 %v2880, %v2992
        %2994 = vmatmul.f32.gmra.mxu0 %v2126
        %v2995 = vpop.f32.mrf.mxu0
        %v2996 = vadd.f32 %v2883, %v2995
        %2997 = vmatmul.f32.gmra.mxu0 %v2127
        %v2998 = vpop.f32.mrf.mxu0
        %v2999 = vadd.f32 %v2886, %v2998
        %3000 = vmatmul.f32.gmra.mxu0 %v2128
        %v3001 = vpop.f32.mrf.mxu0
        %v3002 = vadd.f32 %v2889, %v3001
        %3003 = vmatmul.f32.gmra.mxu0 %v2129
        %v3004 = vpop.f32.mrf.mxu0
        %v3005 = vadd.f32 %v2892, %v3004
        %3006 = vmatmul.f32.gmra.mxu0 %v2130
        %v3007 = vpop.f32.mrf.mxu0
        %v3008 = vadd.f32 %v2895, %v3007
        %3009 = vmatmul.f32.gmra.mxu0 %v2131
        %v3010 = vpop.f32.mrf.mxu0
        %v3011 = vadd.f32 %v2898, %v3010
        %3012 = vmatmul.f32.gmra.mxu0 %v2132
        %v3013 = vpop.f32.mrf.mxu0
        %v3014 = vadd.f32 %v2901, %v3013
        %3015 = vmatmul.f32.gmra.mxu0 %v2133
        %v3016 = vpop.f32.mrf.mxu0
        %v3017 = vadd.f32 %v2904, %v3016
        %3018 = vmatmul.f32.gmra.mxu0 %v2134
        %v3019 = vpop.f32.mrf.mxu0
        %v3020 = vadd.f32 %v2907, %v3019
        %3021 = vmatmul.f32.gmra.mxu0 %v2135
        %v3022 = vpop.f32.mrf.mxu0
        %v3023 = vadd.f32 %v2910, %v3022
        %3024 = vmatmul.f32.gmra.mxu0 %v2136
        %v3025 = vpop.f32.mrf.mxu0
        %v3026 = vadd.f32 %v2913, %v3025
        %3027 = vmatmul.f32.gmra.mxu0 %v2137
        %v3028 = vpop.f32.mrf.mxu0
        %v3029 = vadd.f32 %v2916, %v3028
        %3030 = vmatmul.f32.gmra.mxu0 %v2138
        %v3031 = vpop.f32.mrf.mxu0
        %v3032 = vadd.f32 %v2919, %v3031
        %3033 = vmatmul.f32.gmra.mxu0 %v2139
        %v3034 = vpop.f32.mrf.mxu0
        %v3035 = vadd.f32 %v2922, %v3034
        %3036 = vmatmul.f32.gmra.mxu0 %v2140
        %v3037 = vpop.f32.mrf.mxu0
        %v3038 = vadd.f32 %v2925, %v3037
        %3039 = vmatmul.f32.gmra.mxu0 %v2141
        %v3040 = vpop.f32.mrf.mxu0
        %v3041 = vadd.f32 %v2928, %v3040
        %3042 = vmatmul.f32.gmra.mxu0 %v2142
        %v3043 = vpop.f32.mrf.mxu0
        %v3044 = vadd.f32 %v2931, %v3043
        %3045 = vmatmul.f32.gmra.mxu0 %v2143
        %v3046 = vpop.f32.mrf.mxu0
        %v3047 = vadd.f32 %v2934, %v3046
        %3048 = vmatmul.f32.gmra.mxu0 %v2144
        %v3049 = vpop.f32.mrf.mxu0
        %v3050 = vadd.f32 %v2937, %v3049
        %3051 = vmatmul.f32.gmra.mxu0 %v2145
        %v3052 = vpop.f32.mrf.mxu0
        %v3053 = vadd.f32 %v2940, %v3052
        %3054 = vmatmul.f32.gmra.mxu0 %v2146
        %v3055 = vpop.f32.mrf.mxu0
        %v3056 = vadd.f32 %v2943, %v3055
        %3057 = vmatmul.f32.gmra.mxu0 %v2147
        %v3058 = vpop.f32.mrf.mxu0
        %v3059 = vadd.f32 %v2946, %v3058
        %3060 = vmatmul.f32.gmra.mxu0 %v2148
        %v3061 = vpop.f32.mrf.mxu0
        %v3062 = vadd.f32 %v2949, %v3061
        %3063 = vmatmul.f32.gmra.mxu0 %v2149
        %v3064 = vpop.f32.mrf.mxu0
        %v3065 = vadd.f32 %v2952, %v3064
        %3066 = vmatmul.f32.gmra.mxu0 %v2150
        %v3067 = vpop.f32.mrf.mxu0
        %v3068 = vadd.f32 %v2955, %v3067
        %3069 = vmatmul.f32.gmra.mxu0 %v2151
        %v3070 = vpop.f32.mrf.mxu0
        %v3071 = vadd.f32 %v2958, %v3070
        %3072 = vmatmul.f32.gmra.mxu0 %v2152
        %v3073 = vpop.f32.mrf.mxu0
        %v3074 = vadd.f32 %v2961, %v3073
        %3075 = vmatmul.f32.gmra.mxu0 %v2153
        %v3076 = vpop.f32.mrf.mxu0
        %v3077 = vadd.f32 %v2964, %v3076
        %3078 = vdwg.mxu0
        %3079 = vmatpush.msra.mxu0 %v2363
        %3080 = vmatpush.msra.mxu0 %v2362
        %3081 = vmatpush.msra.mxu0 %v2361
        %3082 = vmatpush.msra.mxu0 %v2360
        %3083 = vmatpush.msra.mxu0 %v2359
        %3084 = vmatpush.msra.mxu0 %v2358
        %3085 = vmatpush.msra.mxu0 %v2357
        %3086 = vmatpush.msra.mxu0 %v2356
        %3087 = vmatpush.msra.mxu0 %v2355
        %3088 = vmatpush.msra.mxu0 %v2354
        %3089 = vmatpush.msra.mxu0 %v2353
        %3090 = vmatpush.msra.mxu0 %v2352
        %3091 = vmatpush.msra.mxu0 %v2351
        %3092 = vmatpush.msra.mxu0 %v2350
        %3093 = vmatpush.msra.mxu0 %v2349
        %3094 = vmatpush.msra.mxu0 %v2348
        %3095 = vmatmul.f32.gmra.mxu0 %v2155
        %v3096 = vpop.f32.mrf.mxu0
        %v3097 = vadd.f32 %v2984, %v3096
        %3098 = vmatmul.f32.gmra.mxu0 %v2156
        %v3099 = vpop.f32.mrf.mxu0
        %v3100 = vadd.f32 %v2987, %v3099
        %3101 = vmatmul.f32.gmra.mxu0 %v2157
        %v3102 = vpop.f32.mrf.mxu0
        %v3103 = vadd.f32 %v2990, %v3102
        %3104 = vmatmul.f32.gmra.mxu0 %v2158
        %v3105 = vpop.f32.mrf.mxu0
        %v3106 = vadd.f32 %v2993, %v3105
        %3107 = vmatmul.f32.gmra.mxu0 %v2159
        %v3108 = vpop.f32.mrf.mxu0
        %v3109 = vadd.f32 %v2996, %v3108
        %3110 = vmatmul.f32.gmra.mxu0 %v2160
        %v3111 = vpop.f32.mrf.mxu0
        %v3112 = vadd.f32 %v2999, %v3111
        %3113 = vmatmul.f32.gmra.mxu0 %v2161
        %v3114 = vpop.f32.mrf.mxu0
        %v3115 = vadd.f32 %v3002, %v3114
        %3116 = vmatmul.f32.gmra.mxu0 %v2162
        %v3117 = vpop.f32.mrf.mxu0
        %v3118 = vadd.f32 %v3005, %v3117
        %3119 = vmatmul.f32.gmra.mxu0 %v2163
        %v3120 = vpop.f32.mrf.mxu0
        %v3121 = vadd.f32 %v3008, %v3120
        %3122 = vmatmul.f32.gmra.mxu0 %v2164
        %v3123 = vpop.f32.mrf.mxu0
        %v3124 = vadd.f32 %v3011, %v3123
        %3125 = vmatmul.f32.gmra.mxu0 %v2165
        %v3126 = vpop.f32.mrf.mxu0
        %v3127 = vadd.f32 %v3014, %v3126
        %3128 = vmatmul.f32.gmra.mxu0 %v2166
        %v3129 = vpop.f32.mrf.mxu0
        %v3130 = vadd.f32 %v3017, %v3129
        %3131 = vmatmul.f32.gmra.mxu0 %v2167
        %v3132 = vpop.f32.mrf.mxu0
        %v3133 = vadd.f32 %v3020, %v3132
        %3134 = vmatmul.f32.gmra.mxu0 %v2168
        %v3135 = vpop.f32.mrf.mxu0
        %v3136 = vadd.f32 %v3023, %v3135
        %3137 = vmatmul.f32.gmra.mxu0 %v2169
        %v3138 = vpop.f32.mrf.mxu0
        %v3139 = vadd.f32 %v3026, %v3138
        %3140 = vmatmul.f32.gmra.mxu0 %v2170
        %v3141 = vpop.f32.mrf.mxu0
        %v3142 = vadd.f32 %v3029, %v3141
        %3143 = vmatmul.f32.gmra.mxu0 %v2171
        %v3144 = vpop.f32.mrf.mxu0
        %v3145 = vadd.f32 %v3032, %v3144
        %3146 = vmatmul.f32.gmra.mxu0 %v2172
        %v3147 = vpop.f32.mrf.mxu0
        %v3148 = vadd.f32 %v3035, %v3147
        %3149 = vmatmul.f32.gmra.mxu0 %v2173
        %v3150 = vpop.f32.mrf.mxu0
        %v3151 = vadd.f32 %v3038, %v3150
        %3152 = vmatmul.f32.gmra.mxu0 %v2174
        %v3153 = vpop.f32.mrf.mxu0
        %v3154 = vadd.f32 %v3041, %v3153
        %3155 = vmatmul.f32.gmra.mxu0 %v2175
        %v3156 = vpop.f32.mrf.mxu0
        %v3157 = vadd.f32 %v3044, %v3156
        %3158 = vmatmul.f32.gmra.mxu0 %v2176
        %v3159 = vpop.f32.mrf.mxu0
        %v3160 = vadd.f32 %v3047, %v3159
        %3161 = vmatmul.f32.gmra.mxu0 %v2177
        %v3162 = vpop.f32.mrf.mxu0
        %v3163 = vadd.f32 %v3050, %v3162
        %3164 = vmatmul.f32.gmra.mxu0 %v2178
        %v3165 = vpop.f32.mrf.mxu0
        %v3166 = vadd.f32 %v3053, %v3165
        %3167 = vmatmul.f32.gmra.mxu0 %v2179
        %v3168 = vpop.f32.mrf.mxu0
        %v3169 = vadd.f32 %v3056, %v3168
        %3170 = vmatmul.f32.gmra.mxu0 %v2180
        %v3171 = vpop.f32.mrf.mxu0
        %v3172 = vadd.f32 %v3059, %v3171
        %3173 = vmatmul.f32.gmra.mxu0 %v2181
        %v3174 = vpop.f32.mrf.mxu0
        %v3175 = vadd.f32 %v3062, %v3174
        %3176 = vmatmul.f32.gmra.mxu0 %v2182
        %v3177 = vpop.f32.mrf.mxu0
        %v3178 = vadd.f32 %v3065, %v3177
        %3179 = vmatmul.f32.gmra.mxu0 %v2183
        %v3180 = vpop.f32.mrf.mxu0
        %v3181 = vadd.f32 %v3068, %v3180
        %3182 = vmatmul.f32.gmra.mxu0 %v2184
        %v3183 = vpop.f32.mrf.mxu0
        %v3184 = vadd.f32 %v3071, %v3183
        %3185 = vmatmul.f32.gmra.mxu0 %v2185
        %v3186 = vpop.f32.mrf.mxu0
        %v3187 = vadd.f32 %v3074, %v3186
        %3188 = vmatmul.f32.gmra.mxu0 %v2186
        %v3189 = vpop.f32.mrf.mxu0
        %v3190 = vadd.f32 %v3077, %v3189
        %3191 = vdwg.mxu0
        %3192 = vmatpush.msra.mxu0 %v2379
        %3193 = vmatpush.msra.mxu0 %v2378
        %3194 = vmatpush.msra.mxu0 %v2377
        %3195 = vmatpush.msra.mxu0 %v2376
        %3196 = vmatpush.msra.mxu0 %v2375
        %3197 = vmatpush.msra.mxu0 %v2374
        %3198 = vmatpush.msra.mxu0 %v2373
        %3199 = vmatpush.msra.mxu0 %v2372
        %3200 = vmatpush.msra.mxu0 %v2371
        %3201 = vmatpush.msra.mxu0 %v2370
        %3202 = vmatpush.msra.mxu0 %v2369
        %3203 = vmatpush.msra.mxu0 %v2368
        %3204 = vmatpush.msra.mxu0 %v2367
        %3205 = vmatpush.msra.mxu0 %v2366
        %3206 = vmatpush.msra.mxu0 %v2365
        %3207 = vmatpush.msra.mxu0 %v2364
        %3208 = vmatmul.f32.gmra.mxu0 %v2187
        %v3209 = vpop.f32.mrf.mxu0
        %v3210 = vadd.f32 %v3097, %v3209
        %3211 = vmatmul.f32.gmra.mxu0 %v2188
        %v3212 = vpop.f32.mrf.mxu0
        %v3213 = vadd.f32 %v3100, %v3212
        %3214 = vmatmul.f32.gmra.mxu0 %v2189
        %v3215 = vpop.f32.mrf.mxu0
        %v3216 = vadd.f32 %v3103, %v3215
        %3217 = vmatmul.f32.gmra.mxu0 %v2190
        %v3218 = vpop.f32.mrf.mxu0
        %v3219 = vadd.f32 %v3106, %v3218
        %3220 = vmatmul.f32.gmra.mxu0 %v2191
        %v3221 = vpop.f32.mrf.mxu0
        %v3222 = vadd.f32 %v3109, %v3221
        %3223 = vmatmul.f32.gmra.mxu0 %v2192
        %v3224 = vpop.f32.mrf.mxu0
        %v3225 = vadd.f32 %v3112, %v3224
        %3226 = vmatmul.f32.gmra.mxu0 %v2193
        %v3227 = vpop.f32.mrf.mxu0
        %v3228 = vadd.f32 %v3115, %v3227
        %3229 = vmatmul.f32.gmra.mxu0 %v2194
        %v3230 = vpop.f32.mrf.mxu0
        %v3231 = vadd.f32 %v3118, %v3230
        %3232 = vmatmul.f32.gmra.mxu0 %v2195
        %v3233 = vpop.f32.mrf.mxu0
        %v3234 = vadd.f32 %v3121, %v3233
        %3235 = vmatmul.f32.gmra.mxu0 %v2196
        %v3236 = vpop.f32.mrf.mxu0
        %v3237 = vadd.f32 %v3124, %v3236
        %3238 = vmatmul.f32.gmra.mxu0 %v2197
        %v3239 = vpop.f32.mrf.mxu0
        %v3240 = vadd.f32 %v3127, %v3239
        %3241 = vmatmul.f32.gmra.mxu0 %v2198
        %v3242 = vpop.f32.mrf.mxu0
        %v3243 = vadd.f32 %v3130, %v3242
        %3244 = vmatmul.f32.gmra.mxu0 %v2199
        %v3245 = vpop.f32.mrf.mxu0
        %v3246 = vadd.f32 %v3133, %v3245
        %3247 = vmatmul.f32.gmra.mxu0 %v2200
        %v3248 = vpop.f32.mrf.mxu0
        %v3249 = vadd.f32 %v3136, %v3248
        %3250 = vmatmul.f32.gmra.mxu0 %v2201
        %v3251 = vpop.f32.mrf.mxu0
        %v3252 = vadd.f32 %v3139, %v3251
        %3253 = vmatmul.f32.gmra.mxu0 %v2202
        %v3254 = vpop.f32.mrf.mxu0
        %v3255 = vadd.f32 %v3142, %v3254
        %3256 = vmatmul.f32.gmra.mxu0 %v2203
        %v3257 = vpop.f32.mrf.mxu0
        %v3258 = vadd.f32 %v3145, %v3257
        %3259 = vmatmul.f32.gmra.mxu0 %v2204
        %v3260 = vpop.f32.mrf.mxu0
        %v3261 = vadd.f32 %v3148, %v3260
        %3262 = vmatmul.f32.gmra.mxu0 %v2205
        %v3263 = vpop.f32.mrf.mxu0
        %v3264 = vadd.f32 %v3151, %v3263
        %3265 = vmatmul.f32.gmra.mxu0 %v2206
        %v3266 = vpop.f32.mrf.mxu0
        %v3267 = vadd.f32 %v3154, %v3266
        %3268 = vmatmul.f32.gmra.mxu0 %v2207
        %v3269 = vpop.f32.mrf.mxu0
        %v3270 = vadd.f32 %v3157, %v3269
        %3271 = vmatmul.f32.gmra.mxu0 %v2208
        %v3272 = vpop.f32.mrf.mxu0
        %v3273 = vadd.f32 %v3160, %v3272
        %3274 = vmatmul.f32.gmra.mxu0 %v2209
        %v3275 = vpop.f32.mrf.mxu0
        %v3276 = vadd.f32 %v3163, %v3275
        %3277 = vmatmul.f32.gmra.mxu0 %v2210
        %v3278 = vpop.f32.mrf.mxu0
        %v3279 = vadd.f32 %v3166, %v3278
        %3280 = vmatmul.f32.gmra.mxu0 %v2211
        %v3281 = vpop.f32.mrf.mxu0
        %v3282 = vadd.f32 %v3169, %v3281
        %3283 = vmatmul.f32.gmra.mxu0 %v2212
        %v3284 = vpop.f32.mrf.mxu0
        %v3285 = vadd.f32 %v3172, %v3284
        %3286 = vmatmul.f32.gmra.mxu0 %v2213
        %v3287 = vpop.f32.mrf.mxu0
        %v3288 = vadd.f32 %v3175, %v3287
        %3289 = vmatmul.f32.gmra.mxu0 %v2214
        %v3290 = vpop.f32.mrf.mxu0
        %v3291 = vadd.f32 %v3178, %v3290
        %3292 = vmatmul.f32.gmra.mxu0 %v2215
        %v3293 = vpop.f32.mrf.mxu0
        %v3294 = vadd.f32 %v3181, %v3293
        %3295 = vmatmul.f32.gmra.mxu0 %v2216
        %v3296 = vpop.f32.mrf.mxu0
        %v3297 = vadd.f32 %v3184, %v3296
        %3298 = vmatmul.f32.gmra.mxu0 %v2217
        %v3299 = vpop.f32.mrf.mxu0
        %v3300 = vadd.f32 %v3187, %v3299
        %3301 = vmatmul.f32.gmra.mxu0 %v2218
        %v3302 = vpop.f32.mrf.mxu0
        %v3303 = vadd.f32 %v3190, %v3302
        %3304 = vdwg.mxu0
        %3305 = vmatpush.msra.mxu0 %v2395
        %3306 = vmatpush.msra.mxu0 %v2394
        %3307 = vmatpush.msra.mxu0 %v2393
        %3308 = vmatpush.msra.mxu0 %v2392
        %3309 = vmatpush.msra.mxu0 %v2391
        %3310 = vmatpush.msra.mxu0 %v2390
        %3311 = vmatpush.msra.mxu0 %v2389
        %3312 = vmatpush.msra.mxu0 %v2388
        %3313 = vmatpush.msra.mxu0 %v2387
        %3314 = vmatpush.msra.mxu0 %v2386
        %3315 = vmatpush.msra.mxu0 %v2385
        %3316 = vmatpush.msra.mxu0 %v2384
        %3317 = vmatpush.msra.mxu0 %v2383
        %3318 = vmatpush.msra.mxu0 %v2382
        %3319 = vmatpush.msra.mxu0 %v2381
        %3320 = vmatpush.msra.mxu0 %v2380
        %3321 = vmatmul.f32.gmra.mxu0 %v2219
        %v3322 = vpop.f32.mrf.mxu0
        %v3323 = vadd.f32 %v3210, %v3322
        %3324 = vmatmul.f32.gmra.mxu0 %v2220
        %v3325 = vpop.f32.mrf.mxu0
        %v3326 = vadd.f32 %v3213, %v3325
        %3327 = vmatmul.f32.gmra.mxu0 %v2221
        %v3328 = vpop.f32.mrf.mxu0
        %v3329 = vadd.f32 %v3216, %v3328
        %3330 = vmatmul.f32.gmra.mxu0 %v2222
        %v3331 = vpop.f32.mrf.mxu0
        %v3332 = vadd.f32 %v3219, %v3331
        %3333 = vmatmul.f32.gmra.mxu0 %v2223
        %v3334 = vpop.f32.mrf.mxu0
        %v3335 = vadd.f32 %v3222, %v3334
        %3336 = vmatmul.f32.gmra.mxu0 %v2224
        %v3337 = vpop.f32.mrf.mxu0
        %v3338 = vadd.f32 %v3225, %v3337
        %3339 = vmatmul.f32.gmra.mxu0 %v2225
        %v3340 = vpop.f32.mrf.mxu0
        %v3341 = vadd.f32 %v3228, %v3340
        %3342 = vmatmul.f32.gmra.mxu0 %v2226
        %v3343 = vpop.f32.mrf.mxu0
        %v3344 = vadd.f32 %v3231, %v3343
        %3345 = vmatmul.f32.gmra.mxu0 %v2227
        %v3346 = vpop.f32.mrf.mxu0
        %v3347 = vadd.f32 %v3234, %v3346
        %3348 = vmatmul.f32.gmra.mxu0 %v2228
        %v3349 = vpop.f32.mrf.mxu0
        %v3350 = vadd.f32 %v3237, %v3349
        %3351 = vmatmul.f32.gmra.mxu0 %v2229
        %v3352 = vpop.f32.mrf.mxu0
        %v3353 = vadd.f32 %v3240, %v3352
        %3354 = vmatmul.f32.gmra.mxu0 %v2230
        %v3355 = vpop.f32.mrf.mxu0
        %v3356 = vadd.f32 %v3243, %v3355
        %3357 = vmatmul.f32.gmra.mxu0 %v2231
        %v3358 = vpop.f32.mrf.mxu0
        %v3359 = vadd.f32 %v3246, %v3358
        %3360 = vmatmul.f32.gmra.mxu0 %v2232
        %v3361 = vpop.f32.mrf.mxu0
        %v3362 = vadd.f32 %v3249, %v3361
        %3363 = vmatmul.f32.gmra.mxu0 %v2233
        %v3364 = vpop.f32.mrf.mxu0
        %v3365 = vadd.f32 %v3252, %v3364
        %3366 = vmatmul.f32.gmra.mxu0 %v2234
        %v3367 = vpop.f32.mrf.mxu0
        %v3368 = vadd.f32 %v3255, %v3367
        %3369 = vmatmul.f32.gmra.mxu0 %v2235
        %v3370 = vpop.f32.mrf.mxu0
        %v3371 = vadd.f32 %v3258, %v3370
        %3372 = vmatmul.f32.gmra.mxu0 %v2236
        %v3373 = vpop.f32.mrf.mxu0
        %v3374 = vadd.f32 %v3261, %v3373
        %3375 = vmatmul.f32.gmra.mxu0 %v2237
        %v3376 = vpop.f32.mrf.mxu0
        %v3377 = vadd.f32 %v3264, %v3376
        %3378 = vmatmul.f32.gmra.mxu0 %v2238
        %v3379 = vpop.f32.mrf.mxu0
        %v3380 = vadd.f32 %v3267, %v3379
        %3381 = vmatmul.f32.gmra.mxu0 %v2239
        %v3382 = vpop.f32.mrf.mxu0
        %v3383 = vadd.f32 %v3270, %v3382
        %3384 = vmatmul.f32.gmra.mxu0 %v2240
        %v3385 = vpop.f32.mrf.mxu0
        %v3386 = vadd.f32 %v3273, %v3385
        %3387 = vmatmul.f32.gmra.mxu0 %v2241
        %v3388 = vpop.f32.mrf.mxu0
        %v3389 = vadd.f32 %v3276, %v3388
        %3390 = vmatmul.f32.gmra.mxu0 %v2242
        %v3391 = vpop.f32.mrf.mxu0
        %v3392 = vadd.f32 %v3279, %v3391
        %3393 = vmatmul.f32.gmra.mxu0 %v2243
        %v3394 = vpop.f32.mrf.mxu0
        %v3395 = vadd.f32 %v3282, %v3394
        %3396 = vmatmul.f32.gmra.mxu0 %v2244
        %v3397 = vpop.f32.mrf.mxu0
        %v3398 = vadd.f32 %v3285, %v3397
        %3399 = vmatmul.f32.gmra.mxu0 %v2245
        %v3400 = vpop.f32.mrf.mxu0
        %v3401 = vadd.f32 %v3288, %v3400
        %3402 = vmatmul.f32.gmra.mxu0 %v2246
        %v3403 = vpop.f32.mrf.mxu0
        %v3404 = vadd.f32 %v3291, %v3403
        %3405 = vmatmul.f32.gmra.mxu0 %v2247
        %v3406 = vpop.f32.mrf.mxu0
        %v3407 = vadd.f32 %v3294, %v3406
        %3408 = vmatmul.f32.gmra.mxu0 %v2248
        %v3409 = vpop.f32.mrf.mxu0
        %v3410 = vadd.f32 %v3297, %v3409
        %3411 = vmatmul.f32.gmra.mxu0 %v2249
        %v3412 = vpop.f32.mrf.mxu0
        %v3413 = vadd.f32 %v3300, %v3412
        %3414 = vmatmul.f32.gmra.mxu0 %v2250
        %v3415 = vpop.f32.mrf.mxu0
        %v3416 = vadd.f32 %v3303, %v3415
        %3417 = vdwg.mxu0
        %vm3418 = vcmp.gt.f32.partialorder %v3323, 0.0
        %vm3419 = vcmp.gt.f32.partialorder %v3326, 0.0
        %vm3420 = vcmp.gt.f32.partialorder %v3329, 0.0
        %vm3421 = vcmp.gt.f32.partialorder %v3332, 0.0
        %vm3422 = vcmp.gt.f32.partialorder %v3335, 0.0
        %vm3423 = vcmp.gt.f32.partialorder %v3338, 0.0
        %vm3424 = vcmp.gt.f32.partialorder %v3341, 0.0
        %vm3425 = vcmp.gt.f32.partialorder %v3344, 0.0
        %vm3426 = vcmp.gt.f32.partialorder %v3347, 0.0
        %vm3427 = vcmp.gt.f32.partialorder %v3350, 0.0
        %vm3428 = vcmp.gt.f32.partialorder %v3353, 0.0
        %vm3429 = vcmp.gt.f32.partialorder %v3356, 0.0
        %vm3430 = vcmp.gt.f32.partialorder %v3359, 0.0
        %vm3431 = vcmp.gt.f32.partialorder %v3362, 0.0
        %vm3432 = vcmp.gt.f32.partialorder %v3365, 0.0
        %vm3433 = vcmp.gt.f32.partialorder %v3368, 0.0
        %vm3434 = vcmp.gt.f32.partialorder %v3371, 0.0
        %vm3435 = vcmp.gt.f32.partialorder %v3374, 0.0
        %vm3436 = vcmp.gt.f32.partialorder %v3377, 0.0
        %vm3437 = vcmp.gt.f32.partialorder %v3380, 0.0
        %vm3438 = vcmp.gt.f32.partialorder %v3383, 0.0
        %vm3439 = vcmp.gt.f32.partialorder %v3386, 0.0
        %vm3440 = vcmp.gt.f32.partialorder %v3389, 0.0
        %vm3441 = vcmp.gt.f32.partialorder %v3392, 0.0
        %vm3442 = vcmp.gt.f32.partialorder %v3395, 0.0
        %vm3443 = vcmp.gt.f32.partialorder %v3398, 0.0
        %vm3444 = vcmp.gt.f32.partialorder %v3401, 0.0
        %vm3445 = vcmp.gt.f32.partialorder %v3404, 0.0
        %vm3446 = vcmp.gt.f32.partialorder %v3407, 0.0
        %vm3447 = vcmp.gt.f32.partialorder %v3410, 0.0
        %vm3448 = vcmp.gt.f32.partialorder %v3413, 0.0
        %vm3449 = vcmp.gt.f32.partialorder %v3416, 0.0
        %v3450 = vmul.f32 %v3323, 0.01
        %v3451 = vmul.f32 %v3326, 0.01
        %v3452 = vmul.f32 %v3329, 0.01
        %v3453 = vmul.f32 %v3332, 0.01
        %v3454 = vmul.f32 %v3335, 0.01
        %v3455 = vmul.f32 %v3338, 0.01
        %v3456 = vmul.f32 %v3341, 0.01
        %v3457 = vmul.f32 %v3344, 0.01
        %v3458 = vmul.f32 %v3347, 0.01
        %v3459 = vmul.f32 %v3350, 0.01
        %v3460 = vmul.f32 %v3353, 0.01
        %v3461 = vmul.f32 %v3356, 0.01
        %v3462 = vmul.f32 %v3359, 0.01
        %v3463 = vmul.f32 %v3362, 0.01
        %v3464 = vmul.f32 %v3365, 0.01
        %v3465 = vmul.f32 %v3368, 0.01
        %v3466 = vmul.f32 %v3371, 0.01
        %v3467 = vmul.f32 %v3374, 0.01
        %v3468 = vmul.f32 %v3377, 0.01
        %v3469 = vmul.f32 %v3380, 0.01
        %v3470 = vmul.f32 %v3383, 0.01
        %v3471 = vmul.f32 %v3386, 0.01
        %v3472 = vmul.f32 %v3389, 0.01
        %v3473 = vmul.f32 %v3392, 0.01
        %v3474 = vmul.f32 %v3395, 0.01
        %v3475 = vmul.f32 %v3398, 0.01
        %v3476 = vmul.f32 %v3401, 0.01
        %v3477 = vmul.f32 %v3404, 0.01
        %v3478 = vmul.f32 %v3407, 0.01
        %v3479 = vmul.f32 %v3410, 0.01
        %v3480 = vmul.f32 %v3413, 0.01
        %v3481 = vmul.f32 %v3416, 0.01
        %v3482 = vsel %vm3418, %v3323, %v3450
        %v3483 = vsel %vm3419, %v3326, %v3451
        %v3484 = vsel %vm3420, %v3329, %v3452
        %v3485 = vsel %vm3421, %v3332, %v3453
        %v3486 = vsel %vm3422, %v3335, %v3454
        %v3487 = vsel %vm3423, %v3338, %v3455
        %v3488 = vsel %vm3424, %v3341, %v3456
        %v3489 = vsel %vm3425, %v3344, %v3457
        %v3490 = vsel %vm3426, %v3347, %v3458
        %v3491 = vsel %vm3427, %v3350, %v3459
        %v3492 = vsel %vm3428, %v3353, %v3460
        %v3493 = vsel %vm3429, %v3356, %v3461
        %v3494 = vsel %vm3430, %v3359, %v3462
        %v3495 = vsel %vm3431, %v3362, %v3463
        %v3496 = vsel %vm3432, %v3365, %v3464
        %v3497 = vsel %vm3433, %v3368, %v3465
        %v3498 = vsel %vm3434, %v3371, %v3466
        %v3499 = vsel %vm3435, %v3374, %v3467
        %v3500 = vsel %vm3436, %v3377, %v3468
        %v3501 = vsel %vm3437, %v3380, %v3469
        %v3502 = vsel %vm3438, %v3383, %v3470
        %v3503 = vsel %vm3439, %v3386, %v3471
        %v3504 = vsel %vm3440, %v3389, %v3472
        %v3505 = vsel %vm3441, %v3392, %v3473
        %v3506 = vsel %vm3442, %v3395, %v3474
        %v3507 = vsel %vm3443, %v3398, %v3475
        %v3508 = vsel %vm3444, %v3401, %v3476
        %v3509 = vsel %vm3445, %v3404, %v3477
        %v3510 = vsel %vm3446, %v3407, %v3478
        %v3511 = vsel %vm3447, %v3410, %v3479
        %v3512 = vsel %vm3448, %v3413, %v3480
        %v3513 = vsel %vm3449, %v3416, %v3481
        %3514 = vst [vmem:[%s204] sm:$0xff] %v3482
        %3515 = vst [vmem:[%s204 + $0x8] sm:$0xff] %v3483
        %3516 = vst [vmem:[%s204 + $0x10] sm:$0xff] %v3484
        %3517 = vst [vmem:[%s204 + $0x18] sm:$0xff] %v3485
        %3518 = vst [vmem:[%s204 + $0x20] sm:$0xff] %v3486
        %3519 = vst [vmem:[%s204 + $0x28] sm:$0xff] %v3487
        %3520 = vst [vmem:[%s204 + $0x30] sm:$0xff] %v3488
        %3521 = vst [vmem:[%s204 + $0x38] sm:$0xff] %v3489
        %3522 = vst [vmem:[%s204 + $0x40] sm:$0xff] %v3490
        %3523 = vst [vmem:[%s204 + $0x48] sm:$0xff] %v3491
        %3524 = vst [vmem:[%s204 + $0x50] sm:$0xff] %v3492
        %3525 = vst [vmem:[%s204 + $0x58] sm:$0xff] %v3493
        %3526 = vst [vmem:[%s204 + $0x60] sm:$0xff] %v3494
        %3527 = vst [vmem:[%s204 + $0x68] sm:$0xff] %v3495
        %3528 = vst [vmem:[%s204 + $0x70] sm:$0xff] %v3496
        %3529 = vst [vmem:[%s204 + $0x78] sm:$0xff] %v3497
        %3530 = vst [vmem:[%s204 + $0x80] sm:$0xff] %v3498
        %3531 = vst [vmem:[%s204 + $0x88] sm:$0xff] %v3499
        %3532 = vst [vmem:[%s204 + $0x90] sm:$0xff] %v3500
        %3533 = vst [vmem:[%s204 + $0x98] sm:$0xff] %v3501
        %3534 = vst [vmem:[%s204 + $0xa0] sm:$0xff] %v3502
        %3535 = vst [vmem:[%s204 + $0xa8] sm:$0xff] %v3503
        %3536 = vst [vmem:[%s204 + $0xb0] sm:$0xff] %v3504
        %3537 = vst [vmem:[%s204 + $0xb8] sm:$0xff] %v3505
        %3538 = vst [vmem:[%s204 + $0xc0] sm:$0xff] %v3506
        %3539 = vst [vmem:[%s204 + $0xc8] sm:$0xff] %v3507
        %3540 = vst [vmem:[%s204 + $0xd0] sm:$0xff] %v3508
        %3541 = vst [vmem:[%s204 + $0xd8] sm:$0xff] %v3509
        %3542 = vst [vmem:[%s204 + $0xe0] sm:$0xff] %v3510
        %3543 = vst [vmem:[%s204 + $0xe8] sm:$0xff] %v3511
        %3544 = vst [vmem:[%s204 + $0xf0] sm:$0xff] %v3512
        %3545 = vst [vmem:[%s204 + $0xf8] sm:$0xff] %v3513
        %p3546 = scmp.lt.s32.totalorder %s16, 1
        %s3547 = scalar_select %p3546, %s16, 1
        %s3548 = smul.addr %s3547, 32
        %s3549 = smul.addr %s3548, 8
        %s3550 = scalar_lea.vmem %s3, %s3549
        // Predicated region
        $region41: #{multilayer_conv_dropout_norm_nonlin.1} parent=31 // pred_check
          %p3551 = pneg %p102
        $region42: #{multilayer_conv_dropout_norm_nonlin.1} parent=31 // pred_check_branch
          %3553 = sbr.rel (%p3551) target = $region44
        $region43: #{multilayer_conv_dropout_norm_nonlin.1} parent=31 // pred_region
          _
        $region44: #{multilayer_conv_dropout_norm_nonlin.1} parent=31 // pred_fallthru
          _
      $region32: #{multilayer_conv_dropout_norm_nonlin.1} parent=5 // pred_fallthru
        _
      %p3554 = scmp.le.s32.totalorder 2, %s11
      // Predicated region
      $region45: #{multilayer_conv_dropout_norm_nonlin.1} parent=5 // pred_check
        %p3555 = pneg %p3554
      $region46: #{multilayer_conv_dropout_norm_nonlin.1} parent=5 // pred_check_branch
        %3557 = sbr.rel (%p3555) target = $region48
      $region47: #{multilayer_conv_dropout_norm_nonlin.1} parent=5 // pred_region
        %s3558 = ssub.s32 %s11, 2
        // Predicated region
        $region49: #{multilayer_conv_dropout_norm_nonlin.1} parent=47 // pred_check
          %p3559 = pneg %p108
        $region50: #{multilayer_conv_dropout_norm_nonlin.1} parent=47 // pred_check_branch
          %3561 = sbr.rel (%p3559) target = $region52
        $region51: #{multilayer_conv_dropout_norm_nonlin.1} parent=47 // pred_region
          %p3562 = scmp.lt.s32.totalorder %s17, 1
          %s3563 = scalar_select %p3562, %s17, 1
          %s3564 = smul.addr %s3563, 32
          %s3565 = smul.addr %s3564, 8
          %s3566 = scalar_lea.vmem %s3, %s3565
        $region52: #{multilayer_conv_dropout_norm_nonlin.1} parent=47 // pred_fallthru
          _
      $region48: #{multilayer_conv_dropout_norm_nonlin.1} parent=5 // pred_fallthru
        _
    $region6: #{multilayer_conv_dropout_norm_nonlin.1} parent=1 // loop_footer
      %s15 = sadd.s32 1, %s11
    $region7: #{multilayer_conv_dropout_norm_nonlin.1} parent=1 // loop_footer_branch
      %10 = sbr.rel target = $region3
    $region8: #{multilayer_conv_dropout_norm_nonlin.1} parent=1 // loop_exit
      _
    %3567 = vsyncpa [#allocation4], 1
    %s3568 = scalar_lea.sflag [#allocation4], 1
    %3569 = vsyncpa %s3568, 1
    %3570 = vsyncpa [#allocation6], 1

</llo_original>
